<compile_context>
chip_gen: v5e
topology: v5e:2x2
jax: 0.10.0
libtpu: 0.0.40
codegen_flags: <defaults>
</compile_context>

<pallas_src>
import functools

import numpy as np
import jax
import jax.numpy as jnp
from jax.experimental import pallas as pl
from jax.experimental.pallas import tpu as pltpu

LN_EPS = 1e-5


# ----------------------------------------------------------------------------
# Pallas kernels
# ----------------------------------------------------------------------------
def _ln_kernel(eps):
    """LayerNorm over the last dim of a (TL, C) row tile."""

    def kernel(x_ref, g_ref, b_ref, o_ref):
        x = x_ref[...].astype(jnp.float32)
        mu = jnp.mean(x, axis=-1, keepdims=True)
        xc = x - mu
        var = jnp.mean(xc * xc, axis=-1, keepdims=True)
        y = xc * jax.lax.rsqrt(var + eps)
        o_ref[...] = (y * g_ref[...] + b_ref[...]).astype(o_ref.dtype)

    return kernel


def _gelu_tanh(x):
    # TODO(synk): tanh approximation; PyTorch nn.GELU default is exact erf.
    c = 0.7978845608028654  # sqrt(2/pi)
    return 0.5 * x * (1.0 + jnp.tanh(c * (x + 0.044715 * x * x * x)))


def _mlp_res_kernel(eps):
    """out = h + fc2(gelu(fc1(LN(h)))) with h = shortcut + attn_out (fused)."""

    def kernel(s_ref, a_ref, g_ref, b_ref, w1_ref, b1_ref, w2_ref, b2_ref, o_ref):
        h = s_ref[...].astype(jnp.float32) + a_ref[...].astype(jnp.float32)
        mu = jnp.mean(h, axis=-1, keepdims=True)
        hc = h - mu
        var = jnp.mean(hc * hc, axis=-1, keepdims=True)
        ln = hc * jax.lax.rsqrt(var + eps) * g_ref[...] + b_ref[...]
        z = jnp.dot(ln, w1_ref[...], preferred_element_type=jnp.float32) + b1_ref[...]
        z = _gelu_tanh(z)
        y = jnp.dot(z, w2_ref[...], preferred_element_type=jnp.float32) + b2_ref[...]
        o_ref[...] = (h + y).astype(o_ref.dtype)

    return kernel


def _win_attn_kernel(num_heads, N, C, scale):
    """Fused window attention for one (BW, N, C) tile of windows."""
    Dh = C // num_heads

    def kernel(x_ref, wqkv_ref, bqkv_ref, wp_ref, bp_ref, bias_ref, mask_ref, o_ref):
        x = x_ref[0].astype(jnp.float32)                     # (BW, N, C)
        BW = x.shape[0]
        xm = x.reshape(BW * N, C)
        # One big qkv matmul (K = C) instead of per-head tiny matmuls.
        qkv = jnp.dot(xm, wqkv_ref[...], preferred_element_type=jnp.float32)
        qkv = qkv + bqkv_ref[...]                            # (BW*N, 3C)
        mask = mask_ref[...]                                 # (BW, N, N)

        heads = []
        for h in range(num_heads):
            q = qkv[:, h * Dh:(h + 1) * Dh].reshape(BW, N, Dh) * scale
            k = qkv[:, C + h * Dh:C + (h + 1) * Dh].reshape(BW, N, Dh)
            v = qkv[:, 2 * C + h * Dh:2 * C + (h + 1) * Dh].reshape(BW, N, Dh)
            attn = jnp.einsum("bnd,bmd->bnm", q, k,
                              preferred_element_type=jnp.float32)
            attn = attn + bias_ref[h][None, :, :] + mask
            attn = attn - jnp.max(attn, axis=-1, keepdims=True)
            p = jnp.exp(attn)
            p = p / jnp.sum(p, axis=-1, keepdims=True)
            heads.append(jnp.einsum("bnm,bmd->bnd", p, v,
                                    preferred_element_type=jnp.float32))

        out = jnp.concatenate(heads, axis=-1).reshape(BW * N, C)
        y = jnp.dot(out, wp_ref[...], preferred_element_type=jnp.float32) + bp_ref[...]
        o_ref[0] = y.reshape(BW, N, C).astype(o_ref.dtype)

    return kernel


# ----------------------------------------------------------------------------
# pallas_call wrappers
# ----------------------------------------------------------------------------
def _row_tiling(M, cap=512):
    """Pick a row-tile size (multiple of 8) and padded row count."""
    Mp = ((M + 7) // 8) * 8
    tl = 8
    for t in (512, 256, 128, 64, 32, 16, 8):
        if t <= cap and Mp % t == 0:
            tl = t
            break
    return tl, Mp


def layer_norm(x2d, gamma, beta, eps=LN_EPS):
    M, C = x2d.shape
    TL, Mp = _row_tiling(M)
    xp = x2d if Mp == M else jnp.pad(x2d, ((0, Mp - M), (0, 0)))
    out = pl.pallas_call(
        _ln_kernel(eps),
        out_shape=jax.ShapeDtypeStruct((Mp, C), jnp.float32),
        grid=(Mp // TL,),
        in_specs=[
            pl.BlockSpec((TL, C), lambda i: (i, 0)),
            pl.BlockSpec((1, C), lambda i: (0, 0)),
            pl.BlockSpec((1, C), lambda i: (0, 0)),
        ],
        out_specs=pl.BlockSpec((TL, C), lambda i: (i, 0)),
        compiler_params=pltpu.CompilerParams(dimension_semantics=("parallel",)),
    )(xp, gamma.reshape(1, C), beta.reshape(1, C))
    return out[:M] if Mp != M else out


def mlp_residual(shortcut2d, attn2d, p, eps=LN_EPS):
    M, C = shortcut2d.shape
    Hd = p["w_fc1"].shape[1]
    TL, Mp = _row_tiling(M)
    if Mp != M:
        shortcut2d = jnp.pad(shortcut2d, ((0, Mp - M), (0, 0)))
        attn2d = jnp.pad(attn2d, ((0, Mp - M), (0, 0)))
    out = pl.pallas_call(
        _mlp_res_kernel(eps),
        out_shape=jax.ShapeDtypeStruct((Mp, C), jnp.float32),
        grid=(Mp // TL,),
        in_specs=[
            pl.BlockSpec((TL, C), lambda i: (i, 0)),
            pl.BlockSpec((TL, C), lambda i: (i, 0)),
            pl.BlockSpec((1, C), lambda i: (0, 0)),
            pl.BlockSpec((1, C), lambda i: (0, 0)),
            pl.BlockSpec((C, Hd), lambda i: (0, 0)),
            pl.BlockSpec((1, Hd), lambda i: (0, 0)),
            pl.BlockSpec((Hd, C), lambda i: (0, 0)),
            pl.BlockSpec((1, C), lambda i: (0, 0)),
        ],
        out_specs=pl.BlockSpec((TL, C), lambda i: (i, 0)),
        compiler_params=pltpu.CompilerParams(dimension_semantics=("parallel",)),
    )(shortcut2d, attn2d,
      p["ln2_g"].reshape(1, C), p["ln2_b"].reshape(1, C),
      p["w_fc1"], p["b_fc1"].reshape(1, Hd),
      p["w_fc2"], p["b_fc2"].reshape(1, C))
    return out[:M] if Mp != M else out


def _pick_bw(nW, N):
    """Largest divisor of nW keeping ~<=2048 tokens per window tile."""
    cap = max(1, 2048 // max(N, 1))
    bw = 1
    for d in range(1, nW + 1):
        if nW % d == 0 and d <= cap:
            bw = d
    return bw


def window_attention(xw, p, rel_bias, mask, num_heads, scale):
    """xw: (B, nW, N, C), mask: (nW, N, N), rel_bias: (num_heads, N, N)."""
    B, nW, N, C = xw.shape
    BW = _pick_bw(nW, N)
    grid = (B, nW // BW)
    kernel = _win_attn_kernel(num_heads, N, C, scale)
    return pl.pallas_call(
        kernel,
        out_shape=jax.ShapeDtypeStruct((B, nW, N, C), jnp.float32),
        grid=grid,
        in_specs=[
            pl.BlockSpec((1, BW, N, C), lambda b, j: (b, j, 0, 0)),
            pl.BlockSpec((C, 3 * C), lambda b, j: (0, 0)),
            pl.BlockSpec((1, 3 * C), lambda b, j: (0, 0)),
            pl.BlockSpec((C, C), lambda b, j: (0, 0)),
            pl.BlockSpec((1, C), lambda b, j: (0, 0)),
            pl.BlockSpec((num_heads, N, N), lambda b, j: (0, 0, 0)),
            pl.BlockSpec((BW, N, N), lambda b, j: (j, 0, 0)),
        ],
        out_specs=pl.BlockSpec((1, BW, N, C), lambda b, j: (b, j, 0, 0)),
        compiler_params=pltpu.CompilerParams(
            dimension_semantics=("parallel", "parallel")),
    )(xw, p["w_qkv"], p["b_qkv"].reshape(1, 3 * C),
      p["w_proj"], p["b_proj"].reshape(1, C), rel_bias, mask)


# ----------------------------------------------------------------------------
# Static (trace-time) helpers: relative-position index, shift-window mask
# ----------------------------------------------------------------------------
def _rel_pos_index(ws):
    coords = np.stack(np.meshgrid(np.arange(ws), np.arange(ws), indexing="ij"))
    flat = coords.reshape(2, -1)                              # (2, N)
    rel = (flat[:, :, None] - flat[:, None, :]).transpose(1, 2, 0).astype(np.int64)
    rel[:, :, 0] += ws - 1
    rel[:, :, 1] += ws - 1
    rel[:, :, 0] *= 2 * ws - 1
    return rel.sum(-1)                                        # (N, N)


def _compute_attn_mask(Hp, Wp, ws, shift):
    nW = (Hp // ws) * (Wp // ws)
    N = ws * ws
    if shift == 0:
        return np.zeros((nW, N, N), np.float32)
    img = np.zeros((Hp, Wp), np.float32)
    cnt = 0
    slices = (slice(0, -ws), slice(-ws, -shift), slice(-shift, None))
    for hs in slices:
        for wsl in slices:
            img[hs, wsl] = cnt
            cnt += 1
    mw = img.reshape(Hp // ws, ws, Wp // ws, ws).transpose(0, 2, 1, 3).reshape(nW, N)
    diff = mw[:, None, :] - mw[:, :, None]
    return np.where(diff != 0, -100.0, 0.0).astype(np.float32)


# ----------------------------------------------------------------------------
# SwinTransformerBlock / BasicLayer composition (glue in plain JAX)
# ----------------------------------------------------------------------------
def _swin_block(p, x, H, W, ws, shift, mask, num_heads):
    B, L, C = x.shape
    N = ws * ws
    shortcut = x

    # norm1 (Pallas), then pad / roll / window-partition (data movement in JAX)
    xn = layer_norm(x.reshape(B * L, C), p["ln1_g"], p["ln1_b"]).reshape(B, H, W, C)
    pad_b = (ws - H % ws) % ws
    pad_r = (ws - W % ws) % ws
    if pad_b or pad_r:
        xn = jnp.pad(xn, ((0, 0), (0, pad_b), (0, pad_r), (0, 0)))
    Hp, Wp = H + pad_b, W + pad_r
    if shift > 0:
        xn = jnp.roll(xn, (-shift, -shift), axis=(1, 2))
    nW = (Hp // ws) * (Wp // ws)
    xw = xn.reshape(B, Hp // ws, ws, Wp // ws, ws, C).transpose(0, 1, 3, 2, 4, 5)
    xw = xw.reshape(B, nW, N, C)

    idx = _rel_pos_index(ws)
    rel_bias = jnp.transpose(
        p["rel_table"][idx.reshape(-1)].reshape(N, N, num_heads), (2, 0, 1))
    scale = float(C // num_heads) ** -0.5

    aw = window_attention(xw, p, rel_bias, mask, num_heads, scale)  # (B,nW,N,C)

    # window reverse / un-roll / un-pad
    ar = aw.reshape(B, Hp // ws, Wp // ws, ws, ws, C).transpose(0, 1, 3, 2, 4, 5)
    ar = ar.reshape(B, Hp, Wp, C)
    if shift > 0:
        ar = jnp.roll(ar, (shift, shift), axis=(1, 2))
    if pad_b or pad_r:
        ar = ar[:, :H, :W, :]
    ar = ar.reshape(B * L, C)

    # residual-add + norm2 + MLP + residual-add, fused in one Pallas kernel
    out = mlp_residual(shortcut.reshape(B * L, C), ar, p)
    return out.reshape(B, L, C)


@functools.partial(jax.jit, static_argnames=("H", "W", "window_size", "num_heads"))
def basic_layer_forward(params, x, *, H, W, window_size, num_heads):
    """BasicLayer.forward with downsample=None (PyTorch returns (x,H,W,x,H,W))."""
    ws = window_size
    shift = ws // 2
    Hp = -(-H // ws) * ws
    Wp = -(-W // ws) * ws
    attn_mask = jnp.asarray(_compute_attn_mask(Hp, Wp, ws, shift))
    zero_mask = jnp.zeros_like(attn_mask)
    for i, blk in enumerate(params["blocks"]):
        s = 0 if i % 2 == 0 else shift
        x = _swin_block(blk, x, H, W, ws, s,
                        attn_mask if s > 0 else zero_mask, num_heads)
    return x


# ----------------------------------------------------------------------------
# Deterministic parameter initialization (shapes follow SwinTransformerBlock)
# ----------------------------------------------------------------------------
def init_params(key, *, dim, depth, num_heads, window_size, mlp_ratio=4.0):
    hidden = int(dim * mlp_ratio)
    nbias = (2 * window_size - 1) ** 2
    blocks = []
    for bkey in jax.random.split(key, depth):
        ks = iter(jax.random.split(bkey, 12))
        blocks.append(dict(
            ln1_g=jnp.ones((dim,), jnp.float32),
            ln1_b=jnp.zeros((dim,), jnp.float32),
            w_qkv=0.05 * jax.random.normal(next(ks), (dim, 3 * dim), jnp.float32),
            b_qkv=0.05 * jax.random.normal(next(ks), (3 * dim,), jnp.float32),
            rel_table=0.02 * jax.random.normal(next(ks), (nbias, num_heads), jnp.float32),
            w_proj=0.05 * jax.random.normal(next(ks), (dim, dim), jnp.float32),
            b_proj=0.05 * jax.random.normal(next(ks), (dim,), jnp.float32),
            ln2_g=jnp.ones((dim,), jnp.float32),
            ln2_b=jnp.zeros((dim,), jnp.float32),
            w_fc1=0.05 * jax.random.normal(next(ks), (dim, hidden), jnp.float32),
            b_fc1=0.05 * jax.random.normal(next(ks), (hidden,), jnp.float32),
            w_fc2=0.05 * jax.random.normal(next(ks), (hidden, dim), jnp.float32),
            b_fc2=0.05 * jax.random.normal(next(ks), (dim,), jnp.float32),
        ))
    return dict(blocks=blocks)


# ----------------------------------------------------------------------------
if __name__ == "__main__":
    key = jax.random.PRNGKey(0)
    kp, kx = jax.random.split(key)

    # Small stand-in config: dim=32, 4 heads, window 4, depth 2 (one regular
    # block + one shifted block so the attention mask path is exercised).
    B, C, H, W = 2, 32, 8, 8
    window_size, num_heads, depth = 4, 4, 2

    params = init_params(kp, dim=C, depth=depth, num_heads=num_heads,
                         window_size=window_size)
    x = jax.random.normal(kx, (B, H * W, C), jnp.float32)

    out = basic_layer_forward(params, x, H=H, W=W,
                              window_size=window_size, num_heads=num_heads)
    jax.block_until_ready(out)
    assert out.shape == (B, H * W, C)
    assert bool(jnp.all(jnp.isfinite(out)))
    print("KERNEL_OK")
</pallas_src>

<mosaic_0001>
module attributes {stable_mosaic.version = 11 : i64} {
  func.func @kernel(%arg0: i32, %arg1: memref<128x32xf32, #tpu.memory_space<vmem>>, %arg2: memref<1x32xf32, #tpu.memory_space<vmem>>, %arg3: memref<1x32xf32, #tpu.memory_space<vmem>>, %arg4: memref<128x32xf32, #tpu.memory_space<vmem>>) attributes {dimension_semantics = [#tpu.dimension_semantics<parallel>], iteration_bounds = array<i64: 1>, scalar_prefetch = 0 : i64, scratch_operands = 0 : i64, tpu.core_type = #tpu.core_type<tc>, window_params = [{transform_indices = @transform_0, window_bounds = array<i64: 128, 32>}, {pipeline_mode = #tpu.pipeline_mode<synchronous>, transform_indices = @transform_1, window_bounds = array<i64: 1, 32>}, {pipeline_mode = #tpu.pipeline_mode<synchronous>, transform_indices = @transform_2, window_bounds = array<i64: 1, 32>}, {transform_indices = @transform_3, window_bounds = array<i64: 128, 32>}]} {
    %c0 = arith.constant 0 : index
    %c0_0 = arith.constant 0 : index
    %0 = vector.load %arg1[%c0, %c0_0] : memref<128x32xf32, #tpu.memory_space<vmem>>, vector<128x32xf32>
    %cst = arith.constant dense<0.000000e+00> : vector<128xf32>
    %1 = vector.multi_reduction <add>, %0, %cst [1] : vector<128x32xf32> to vector<128xf32>
    %2 = vector.shape_cast %1 : vector<128xf32> to vector<128x1xf32>
    %cst_1 = arith.constant 3.200000e+01 : f32
    %3 = vector.broadcast %cst_1 : f32 to vector<128x1xf32>
    %4 = arith.divf %2, %3 : vector<128x1xf32>
    %5 = vector.broadcast %4 : vector<128x1xf32> to vector<128x32xf32>
    %6 = arith.subf %0, %5 : vector<128x32xf32>
    %7 = arith.mulf %6, %6 : vector<128x32xf32>
    %cst_2 = arith.constant dense<0.000000e+00> : vector<128xf32>
    %8 = vector.multi_reduction <add>, %7, %cst_2 [1] : vector<128x32xf32> to vector<128xf32>
    %9 = vector.shape_cast %8 : vector<128xf32> to vector<128x1xf32>
    %cst_3 = arith.constant 3.200000e+01 : f32
    %10 = vector.broadcast %cst_3 : f32 to vector<128x1xf32>
    %11 = arith.divf %9, %10 : vector<128x1xf32>
    %cst_4 = arith.constant 9.99999974E-6 : f32
    %12 = vector.broadcast %cst_4 : f32 to vector<128x1xf32>
    %13 = arith.addf %11, %12 : vector<128x1xf32>
    %14 = math.rsqrt %13 : vector<128x1xf32>
    %15 = vector.broadcast %14 : vector<128x1xf32> to vector<128x32xf32>
    %16 = arith.mulf %6, %15 : vector<128x32xf32>
    %c0_5 = arith.constant 0 : index
    %c0_6 = arith.constant 0 : index
    %17 = vector.load %arg2[%c0_5, %c0_6] : memref<1x32xf32, #tpu.memory_space<vmem>>, vector<1x32xf32>
    %18 = vector.broadcast %17 : vector<1x32xf32> to vector<128x32xf32>
    %19 = arith.mulf %16, %18 : vector<128x32xf32>
    %c0_7 = arith.constant 0 : index
    %c0_8 = arith.constant 0 : index
    %20 = vector.load %arg3[%c0_7, %c0_8] : memref<1x32xf32, #tpu.memory_space<vmem>>, vector<1x32xf32>
    %21 = vector.broadcast %20 : vector<1x32xf32> to vector<128x32xf32>
    %22 = arith.addf %19, %21 : vector<128x32xf32>
    %c0_9 = arith.constant 0 : index
    %c0_10 = arith.constant 0 : index
    %23 = vector.load %arg4[%c0_9, %c0_10] : memref<128x32xf32, #tpu.memory_space<vmem>>, vector<128x32xf32>
    tpu.vector_store %arg4[%c0_9, %c0_10], %22 {strides = array<i32>} : memref<128x32xf32, #tpu.memory_space<vmem>>, vector<128x32xf32>,
    return
  }
  func.func @transform_0(%arg0: i32) -> (i32, i32) {
    %c0_i32 = arith.constant 0 : i32
    %c0_i32_0 = arith.constant 0 : i32
    return %arg0, %c0_i32 : i32, i32
  }
  func.func @transform_1(%arg0: i32) -> (i32, i32) {
    %c0_i32 = arith.constant 0 : i32
    %c0_i32_0 = arith.constant 0 : i32
    %c0_i32_1 = arith.constant 0 : i32
    return %c0_i32, %c0_i32_0 : i32, i32
  }
  func.func @transform_2(%arg0: i32) -> (i32, i32) {
    %c0_i32 = arith.constant 0 : i32
    %c0_i32_0 = arith.constant 0 : i32
    %c0_i32_1 = arith.constant 0 : i32
    return %c0_i32, %c0_i32_0 : i32, i32
  }
  func.func @transform_3(%arg0: i32) -> (i32, i32) {
    %c0_i32 = arith.constant 0 : i32
    %c0_i32_0 = arith.constant 0 : i32
    return %arg0, %c0_i32 : i32, i32
  }
}

module attributes {stable_mosaic.version = 11 : i64} {
  func.func @kernel(%arg0: i32, %arg1: i32, %arg2: memref<1x4x16x32xf32, #tpu.memory_space<vmem>>, %arg3: memref<32x96xf32, #tpu.memory_space<vmem>>, %arg4: memref<1x96xf32, #tpu.memory_space<vmem>>, %arg5: memref<32x32xf32, #tpu.memory_space<vmem>>, %arg6: memref<1x32xf32, #tpu.memory_space<vmem>>, %arg7: memref<4x16x16xf32, #tpu.memory_space<vmem>>, %arg8: memref<4x16x16xf32, #tpu.memory_space<vmem>>, %arg9: memref<1x4x16x32xf32, #tpu.memory_space<vmem>>) attributes {dimension_semantics = [#tpu.dimension_semantics<parallel>, #tpu.dimension_semantics<parallel>], iteration_bounds = array<i64: 2, 1>, scalar_prefetch = 0 : i64, scratch_operands = 0 : i64, tpu.core_type = #tpu.core_type<tc>, window_params = [{transform_indices = @transform_0, window_bounds = array<i64: 1, 4, 16, 32>}, {pipeline_mode = #tpu.pipeline_mode<synchronous>, transform_indices = @transform_1, window_bounds = array<i64: 32, 96>}, {pipeline_mode = #tpu.pipeline_mode<synchronous>, transform_indices = @transform_2, window_bounds = array<i64: 1, 96>}, {pipeline_mode = #tpu.pipeline_mode<synchronous>, transform_indices = @transform_3, window_bounds = array<i64: 32, 32>}, {pipeline_mode = #tpu.pipeline_mode<synchronous>, transform_indices = @transform_4, window_bounds = array<i64: 1, 32>}, {pipeline_mode = #tpu.pipeline_mode<synchronous>, transform_indices = @transform_5, window_bounds = array<i64: 4, 16, 16>}, {transform_indices = @transform_6, window_bounds = array<i64: 4, 16, 16>}, {transform_indices = @transform_7, window_bounds = array<i64: 1, 4, 16, 32>}]} {
    %c0 = arith.constant 0 : index
    %c0_0 = arith.constant 0 : index
    %c0_1 = arith.constant 0 : index
    %c0_2 = arith.constant 0 : index
    %0 = vector.load %arg2[%c0, %c0_0, %c0_1, %c0_2] : memref<1x4x16x32xf32, #tpu.memory_space<vmem>>, vector<1x4x16x32xf32>
    %1 = vector.shape_cast %0 : vector<1x4x16x32xf32> to vector<4x16x32xf32>
    %2 = vector.shape_cast %1 : vector<4x16x32xf32> to vector<64x32xf32>
    %c0_3 = arith.constant 0 : index
    %c0_4 = arith.constant 0 : index
    %3 = vector.load %arg3[%c0_3, %c0_4] : memref<32x96xf32, #tpu.memory_space<vmem>>, vector<32x96xf32>
    %cst = arith.constant dense<0.000000e+00> : vector<64x96xf32>
    %4 = tpu.matmul %2, %3, %cst {dimension_numbers = #tpu.dot_dimension_numbers<[1], [0], [0], [1], [0, 0, 1, 1], [], []>} : vector<64x32xf32>, vector<32x96xf32>, vector<64x96xf32> -> vector<64x96xf32>
    %c0_5 = arith.constant 0 : index
    %c0_6 = arith.constant 0 : index
    %5 = vector.load %arg4[%c0_5, %c0_6] : memref<1x96xf32, #tpu.memory_space<vmem>>, vector<1x96xf32>
    %6 = vector.broadcast %5 : vector<1x96xf32> to vector<64x96xf32>
    %7 = arith.addf %4, %6 : vector<64x96xf32>
    %c0_7 = arith.constant 0 : index
    %c0_8 = arith.constant 0 : index
    %c0_9 = arith.constant 0 : index
    %8 = vector.load %arg8[%c0_7, %c0_8, %c0_9] : memref<4x16x16xf32, #tpu.memory_space<vmem>>, vector<4x16x16xf32>
    %9 = vector.extract_strided_slice %7 {offsets = [0, 0], sizes = [64, 8], strides = [1, 1]} : vector<64x96xf32> to vector<64x8xf32>
    %10 = vector.shape_cast %9 : vector<64x8xf32> to vector<4x16x8xf32>
    %cst_10 = arith.constant 0.353553385 : f32
    %11 = vector.broadcast %cst_10 : f32 to vector<4x16x8xf32>
    %12 = arith.mulf %10, %11 : vector<4x16x8xf32>
    %13 = vector.extract_strided_slice %7 {offsets = [0, 32], sizes = [64, 8], strides = [1, 1]} : vector<64x96xf32> to vector<64x8xf32>
    %14 = vector.shape_cast %13 : vector<64x8xf32> to vector<4x16x8xf32>
    %15 = vector.extract_strided_slice %7 {offsets = [0, 64], sizes = [64, 8], strides = [1, 1]} : vector<64x96xf32> to vector<64x8xf32>
    %16 = vector.shape_cast %15 : vector<64x8xf32> to vector<4x16x8xf32>
    "tpu.trace_start"() <{level = 10 : i32, message = "bnd,bmd->bnm"}> : () -> ()
    %cst_11 = arith.constant dense<0.000000e+00> : vector<4x16x16xf32>
    %17 = tpu.matmul %12, %14, %cst_11 {dimension_numbers = #tpu.dot_dimension_numbers<[2], [2], [1], [1], [0, 0, 0, 1, 1, 1], [0], [0]>} : vector<4x16x8xf32>, vector<4x16x8xf32>, vector<4x16x16xf32> -> vector<4x16x16xf32>
    "tpu.trace_stop"() : () -> ()
    %c0_12 = arith.constant 0 : index
    %c0_13 = arith.constant 0 : index
    %c0_14 = arith.constant 0 : index
    %18 = vector.load %arg7[%c0_12, %c0_13, %c0_14] : memref<4x16x16xf32, #tpu.memory_space<vmem>>, vector<1x16x16xf32>
    %19 = vector.shape_cast %18 : vector<1x16x16xf32> to vector<16x16xf32>
    %20 = vector.shape_cast %19 : vector<16x16xf32> to vector<1x16x16xf32>
    %21 = vector.broadcast %20 : vector<1x16x16xf32> to vector<4x16x16xf32>
    %22 = arith.addf %17, %21 : vector<4x16x16xf32>
    %23 = arith.addf %22, %8 : vector<4x16x16xf32>
    %cst_15 = arith.constant dense<0xFF800000> : vector<4x16xf32>
    %24 = vector.multi_reduction <maximumf>, %23, %cst_15 [2] : vector<4x16x16xf32> to vector<4x16xf32>
    %25 = vector.shape_cast %24 : vector<4x16xf32> to vector<4x16x1xf32>
    %26 = vector.broadcast %25 : vector<4x16x1xf32> to vector<4x16x16xf32>
    %27 = arith.subf %23, %26 : vector<4x16x16xf32>
    %28 = math.exp %27 : vector<4x16x16xf32>
    %cst_16 = arith.constant dense<0.000000e+00> : vector<4x16xf32>
    %29 = vector.multi_reduction <add>, %28, %cst_16 [2] : vector<4x16x16xf32> to vector<4x16xf32>
    %30 = vector.shape_cast %29 : vector<4x16xf32> to vector<4x16x1xf32>
    %31 = vector.broadcast %30 : vector<4x16x1xf32> to vector<4x16x16xf32>
    %32 = arith.divf %28, %31 : vector<4x16x16xf32>
    "tpu.trace_start"() <{level = 10 : i32, message = "bnm,bmd->bnd"}> : () -> ()
    %cst_17 = arith.constant dense<0.000000e+00> : vector<4x16x8xf32>
    %33 = tpu.matmul %32, %16, %cst_17 {dimension_numbers = #tpu.dot_dimension_numbers<[2], [1], [1], [2], [0, 0, 0, 1, 1, 2], [0], [0]>} : vector<4x16x16xf32>, vector<4x16x8xf32>, vector<4x16x8xf32> -> vector<4x16x8xf32>
    "tpu.trace_stop"() : () -> ()
    %34 = vector.extract_strided_slice %7 {offsets = [0, 8], sizes = [64, 8], strides = [1, 1]} : vector<64x96xf32> to vector<64x8xf32>
    %35 = vector.shape_cast %34 : vector<64x8xf32> to vector<4x16x8xf32>
    %cst_18 = arith.constant 0.353553385 : f32
    %36 = vector.broadcast %cst_18 : f32 to vector<4x16x8xf32>
    %37 = arith.mulf %35, %36 : vector<4x16x8xf32>
    %38 = vector.extract_strided_slice %7 {offsets = [0, 40], sizes = [64, 8], strides = [1, 1]} : vector<64x96xf32> to vector<64x8xf32>
    %39 = vector.shape_cast %38 : vector<64x8xf32> to vector<4x16x8xf32>
    %40 = vector.extract_strided_slice %7 {offsets = [0, 72], sizes = [64, 8], strides = [1, 1]} : vector<64x96xf32> to vector<64x8xf32>
    %41 = vector.shape_cast %40 : vector<64x8xf32> to vector<4x16x8xf32>
    "tpu.trace_start"() <{level = 10 : i32, message = "bnd,bmd->bnm"}> : () -> ()
    %cst_19 = arith.constant dense<0.000000e+00> : vector<4x16x16xf32>
    %42 = tpu.matmul %37, %39, %cst_19 {dimension_numbers = #tpu.dot_dimension_numbers<[2], [2], [1], [1], [0, 0, 0, 1, 1, 1], [0], [0]>} : vector<4x16x8xf32>, vector<4x16x8xf32>, vector<4x16x16xf32> -> vector<4x16x16xf32>
    "tpu.trace_stop"() : () -> ()
    %c1 = arith.constant 1 : index
    %c0_20 = arith.constant 0 : index
    %c0_21 = arith.constant 0 : index
    %43 = vector.load %arg7[%c1, %c0_20, %c0_21] : memref<4x16x16xf32, #tpu.memory_space<vmem>>, vector<1x16x16xf32>
    %44 = vector.shape_cast %43 : vector<1x16x16xf32> to vector<16x16xf32>
    %45 = vector.shape_cast %44 : vector<16x16xf32> to vector<1x16x16xf32>
    %46 = vector.broadcast %45 : vector<1x16x16xf32> to vector<4x16x16xf32>
    %47 = arith.addf %42, %46 : vector<4x16x16xf32>
    %48 = arith.addf %47, %8 : vector<4x16x16xf32>
    %cst_22 = arith.constant dense<0xFF800000> : vector<4x16xf32>
    %49 = vector.multi_reduction <maximumf>, %48, %cst_22 [2] : vector<4x16x16xf32> to vector<4x16xf32>
    %50 = vector.shape_cast %49 : vector<4x16xf32> to vector<4x16x1xf32>
    %51 = vector.broadcast %50 : vector<4x16x1xf32> to vector<4x16x16xf32>
    %52 = arith.subf %48, %51 : vector<4x16x16xf32>
    %53 = math.exp %52 : vector<4x16x16xf32>
    %cst_23 = arith.constant dense<0.000000e+00> : vector<4x16xf32>
    %54 = vector.multi_reduction <add>, %53, %cst_23 [2] : vector<4x16x16xf32> to vector<4x16xf32>
    %55 = vector.shape_cast %54 : vector<4x16xf32> to vector<4x16x1xf32>
    %56 = vector.broadcast %55 : vector<4x16x1xf32> to vector<4x16x16xf32>
    %57 = arith.divf %53, %56 : vector<4x16x16xf32>
    "tpu.trace_start"() <{level = 10 : i32, message = "bnm,bmd->bnd"}> : () -> ()
    %cst_24 = arith.constant dense<0.000000e+00> : vector<4x16x8xf32>
    %58 = tpu.matmul %57, %41, %cst_24 {dimension_numbers = #tpu.dot_dimension_numbers<[2], [1], [1], [2], [0, 0, 0, 1, 1, 2], [0], [0]>} : vector<4x16x16xf32>, vector<4x16x8xf32>, vector<4x16x8xf32> -> vector<4x16x8xf32>
    "tpu.trace_stop"() : () -> ()
    %59 = vector.extract_strided_slice %7 {offsets = [0, 16], sizes = [64, 8], strides = [1, 1]} : vector<64x96xf32> to vector<64x8xf32>
    %60 = vector.shape_cast %59 : vector<64x8xf32> to vector<4x16x8xf32>
    %cst_25 = arith.constant 0.353553385 : f32
    %61 = vector.broadcast %cst_25 : f32 to vector<4x16x8xf32>
    %62 = arith.mulf %60, %61 : vector<4x16x8xf32>
    %63 = vector.extract_strided_slice %7 {offsets = [0, 48], sizes = [64, 8], strides = [1, 1]} : vector<64x96xf32> to vector<64x8xf32>
    %64 = vector.shape_cast %63 : vector<64x8xf32> to vector<4x16x8xf32>
    %65 = vector.extract_strided_slice %7 {offsets = [0, 80], sizes = [64, 8], strides = [1, 1]} : vector<64x96xf32> to vector<64x8xf32>
    %66 = vector.shape_cast %65 : vector<64x8xf32> to vector<4x16x8xf32>
    "tpu.trace_start"() <{level = 10 : i32, message = "bnd,bmd->bnm"}> : () -> ()
    %cst_26 = arith.constant dense<0.000000e+00> : vector<4x16x16xf32>
    %67 = tpu.matmul %62, %64, %cst_26 {dimension_numbers = #tpu.dot_dimension_numbers<[2], [2], [1], [1], [0, 0, 0, 1, 1, 1], [0], [0]>} : vector<4x16x8xf32>, vector<4x16x8xf32>, vector<4x16x16xf32> -> vector<4x16x16xf32>
    "tpu.trace_stop"() : () -> ()
    %c2 = arith.constant 2 : index
    %c0_27 = arith.constant 0 : index
    %c0_28 = arith.constant 0 : index
    %68 = vector.load %arg7[%c2, %c0_27, %c0_28] : memref<4x16x16xf32, #tpu.memory_space<vmem>>, vector<1x16x16xf32>
    %69 = vector.shape_cast %68 : vector<1x16x16xf32> to vector<16x16xf32>
    %70 = vector.shape_cast %69 : vector<16x16xf32> to vector<1x16x16xf32>
    %71 = vector.broadcast %70 : vector<1x16x16xf32> to vector<4x16x16xf32>
    %72 = arith.addf %67, %71 : vector<4x16x16xf32>
    %73 = arith.addf %72, %8 : vector<4x16x16xf32>
    %cst_29 = arith.constant dense<0xFF800000> : vector<4x16xf32>
    %74 = vector.multi_reduction <maximumf>, %73, %cst_29 [2] : vector<4x16x16xf32> to vector<4x16xf32>
    %75 = vector.shape_cast %74 : vector<4x16xf32> to vector<4x16x1xf32>
    %76 = vector.broadcast %75 : vector<4x16x1xf32> to vector<4x16x16xf32>
    %77 = arith.subf %73, %76 : vector<4x16x16xf32>
    %78 = math.exp %77 : vector<4x16x16xf32>
    %cst_30 = arith.constant dense<0.000000e+00> : vector<4x16xf32>
    %79 = vector.multi_reduction <add>, %78, %cst_30 [2] : vector<4x16x16xf32> to vector<4x16xf32>
    %80 = vector.shape_cast %79 : vector<4x16xf32> to vector<4x16x1xf32>
    %81 = vector.broadcast %80 : vector<4x16x1xf32> to vector<4x16x16xf32>
    %82 = arith.divf %78, %81 : vector<4x16x16xf32>
    "tpu.trace_start"() <{level = 10 : i32, message = "bnm,bmd->bnd"}> : () -> ()
    %cst_31 = arith.constant dense<0.000000e+00> : vector<4x16x8xf32>
    %83 = tpu.matmul %82, %66, %cst_31 {dimension_numbers = #tpu.dot_dimension_numbers<[2], [1], [1], [2], [0, 0, 0, 1, 1, 2], [0], [0]>} : vector<4x16x16xf32>, vector<4x16x8xf32>, vector<4x16x8xf32> -> vector<4x16x8xf32>
    "tpu.trace_stop"() : () -> ()
    %84 = vector.extract_strided_slice %7 {offsets = [0, 24], sizes = [64, 8], strides = [1, 1]} : vector<64x96xf32> to vector<64x8xf32>
    %85 = vector.shape_cast %84 : vector<64x8xf32> to vector<4x16x8xf32>
    %cst_32 = arith.constant 0.353553385 : f32
    %86 = vector.broadcast %cst_32 : f32 to vector<4x16x8xf32>
    %87 = arith.mulf %85, %86 : vector<4x16x8xf32>
    %88 = vector.extract_strided_slice %7 {offsets = [0, 56], sizes = [64, 8], strides = [1, 1]} : vector<64x96xf32> to vector<64x8xf32>
    %89 = vector.shape_cast %88 : vector<64x8xf32> to vector<4x16x8xf32>
    %90 = vector.extract_strided_slice %7 {offsets = [0, 88], sizes = [64, 8], strides = [1, 1]} : vector<64x96xf32> to vector<64x8xf32>
    %91 = vector.shape_cast %90 : vector<64x8xf32> to vector<4x16x8xf32>
    "tpu.trace_start"() <{level = 10 : i32, message = "bnd,bmd->bnm"}> : () -> ()
    %cst_33 = arith.constant dense<0.000000e+00> : vector<4x16x16xf32>
    %92 = tpu.matmul %87, %89, %cst_33 {dimension_numbers = #tpu.dot_dimension_numbers<[2], [2], [1], [1], [0, 0, 0, 1, 1, 1], [0], [0]>} : vector<4x16x8xf32>, vector<4x16x8xf32>, vector<4x16x16xf32> -> vector<4x16x16xf32>
    "tpu.trace_stop"() : () -> ()
    %c3 = arith.constant 3 : index
    %c0_34 = arith.constant 0 : index
    %c0_35 = arith.constant 0 : index
    %93 = vector.load %arg7[%c3, %c0_34, %c0_35] : memref<4x16x16xf32, #tpu.memory_space<vmem>>, vector<1x16x16xf32>
    %94 = vector.shape_cast %93 : vector<1x16x16xf32> to vector<16x16xf32>
    %95 = vector.shape_cast %94 : vector<16x16xf32> to vector<1x16x16xf32>
    %96 = vector.broadcast %95 : vector<1x16x16xf32> to vector<4x16x16xf32>
    %97 = arith.addf %92, %96 : vector<4x16x16xf32>
    %98 = arith.addf %97, %8 : vector<4x16x16xf32>
    %cst_36 = arith.constant dense<0xFF800000> : vector<4x16xf32>
    %99 = vector.multi_reduction <maximumf>, %98, %cst_36 [2] : vector<4x16x16xf32> to vector<4x16xf32>
    %100 = vector.shape_cast %99 : vector<4x16xf32> to vector<4x16x1xf32>
    %101 = vector.broadcast %100 : vector<4x16x1xf32> to vector<4x16x16xf32>
    %102 = arith.subf %98, %101 : vector<4x16x16xf32>
    %103 = math.exp %102 : vector<4x16x16xf32>
    %cst_37 = arith.constant dense<0.000000e+00> : vector<4x16xf32>
    %104 = vector.multi_reduction <add>, %103, %cst_37 [2] : vector<4x16x16xf32> to vector<4x16xf32>
    %105 = vector.shape_cast %104 : vector<4x16xf32> to vector<4x16x1xf32>
    %106 = vector.broadcast %105 : vector<4x16x1xf32> to vector<4x16x16xf32>
    %107 = arith.divf %103, %106 : vector<4x16x16xf32>
    "tpu.trace_start"() <{level = 10 : i32, message = "bnm,bmd->bnd"}> : () -> ()
    %cst_38 = arith.constant dense<0.000000e+00> : vector<4x16x8xf32>
    %108 = tpu.matmul %107, %91, %cst_38 {dimension_numbers = #tpu.dot_dimension_numbers<[2], [1], [1], [2], [0, 0, 0, 1, 1, 2], [0], [0]>} : vector<4x16x16xf32>, vector<4x16x8xf32>, vector<4x16x8xf32> -> vector<4x16x8xf32>
    "tpu.trace_stop"() : () -> ()
    %109 = tpu.concatenate %33, %58, %83, %108 in 2 : vector<4x16x8xf32>, vector<4x16x8xf32>, vector<4x16x8xf32>, vector<4x16x8xf32> -> vector<4x16x32xf32>
    %110 = vector.shape_cast %109 : vector<4x16x32xf32> to vector<64x32xf32>
    %c0_39 = arith.constant 0 : index
    %c0_40 = arith.constant 0 : index
    %111 = vector.load %arg5[%c0_39, %c0_40] : memref<32x32xf32, #tpu.memory_space<vmem>>, vector<32x32xf32>
    %cst_41 = arith.constant dense<0.000000e+00> : vector<64x32xf32>
    %112 = tpu.matmul %110, %111, %cst_41 {dimension_numbers = #tpu.dot_dimension_numbers<[1], [0], [0], [1], [0, 0, 1, 1], [], []>} : vector<64x32xf32>, vector<32x32xf32>, vector<64x32xf32> -> vector<64x32xf32>
    %c0_42 = arith.constant 0 : index
    %c0_43 = arith.constant 0 : index
    %113 = vector.load %arg6[%c0_42, %c0_43] : memref<1x32xf32, #tpu.memory_space<vmem>>, vector<1x32xf32>
    %114 = vector.broadcast %113 : vector<1x32xf32> to vector<64x32xf32>
    %115 = arith.addf %112, %114 : vector<64x32xf32>
    %116 = vector.shape_cast %115 : vector<64x32xf32> to vector<4x16x32xf32>
    %c0_44 = arith.constant 0 : index
    %c0_45 = arith.constant 0 : index
    %c0_46 = arith.constant 0 : index
    %c0_47 = arith.constant 0 : index
    %117 = vector.load %arg9[%c0_44, %c0_45, %c0_46, %c0_47] : memref<1x4x16x32xf32, #tpu.memory_space<vmem>>, vector<1x4x16x32xf32>
    %118 = vector.shape_cast %117 : vector<1x4x16x32xf32> to vector<4x16x32xf32>
    %119 = vector.shape_cast %116 : vector<4x16x32xf32> to vector<1x4x16x32xf32>
    tpu.vector_store %arg9[%c0_44, %c0_45, %c0_46, %c0_47], %119 {strides = array<i32>} : memref<1x4x16x32xf32, #tpu.memory_space<vmem>>, vector<1x4x16x32xf32>,
    return
  }
  func.func @transform_0(%arg0: i32, %arg1: i32) -> (i32, i32, i32, i32) {
    %c0_i32 = arith.constant 0 : i32
    %c0_i32_0 = arith.constant 0 : i32
    %c0_i32_1 = arith.constant 0 : i32
    return %arg0, %arg1, %c0_i32, %c0_i32_0 : i32, i32, i32, i32
  }
  func.func @transform_1(%arg0: i32, %arg1: i32) -> (i32, i32) {
    %c0_i32 = arith.constant 0 : i32
    %c0_i32_0 = arith.constant 0 : i32
    %c0_i32_1 = arith.constant 0 : i32
    return %c0_i32, %c0_i32_0 : i32, i32
  }
  func.func @transform_2(%arg0: i32, %arg1: i32) -> (i32, i32) {
    %c0_i32 = arith.constant 0 : i32
    %c0_i32_0 = arith.constant 0 : i32
    %c0_i32_1 = arith.constant 0 : i32
    return %c0_i32, %c0_i32_0 : i32, i32
  }
  func.func @transform_3(%arg0: i32, %arg1: i32) -> (i32, i32) {
    %c0_i32 = arith.constant 0 : i32
    %c0_i32_0 = arith.constant 0 : i32
    %c0_i32_1 = arith.constant 0 : i32
    return %c0_i32, %c0_i32_0 : i32, i32
  }
  func.func @transform_4(%arg0: i32, %arg1: i32) -> (i32, i32) {
    %c0_i32 = arith.constant 0 : i32
    %c0_i32_0 = arith.constant 0 : i32
    %c0_i32_1 = arith.constant 0 : i32
    return %c0_i32, %c0_i32_0 : i32, i32
  }
  func.func @transform_5(%arg0: i32, %arg1: i32) -> (i32, i32, i32) {
    %c0_i32 = arith.constant 0 : i32
    %c0_i32_0 = arith.constant 0 : i32
    %c0_i32_1 = arith.constant 0 : i32
    %c0_i32_2 = arith.constant 0 : i32
    return %c0_i32, %c0_i32_0, %c0_i32_1 : i32, i32, i32
  }
  func.func @transform_6(%arg0: i32, %arg1: i32) -> (i32, i32, i32) {
    %c0_i32 = arith.constant 0 : i32
    %c0_i32_0 = arith.constant 0 : i32
    %c0_i32_1 = arith.constant 0 : i32
    return %arg1, %c0_i32, %c0_i32_0 : i32, i32, i32
  }
  func.func @transform_7(%arg0: i32, %arg1: i32) -> (i32, i32, i32, i32) {
    %c0_i32 = arith.constant 0 : i32
    %c0_i32_0 = arith.constant 0 : i32
    %c0_i32_1 = arith.constant 0 : i32
    return %arg0, %arg1, %c0_i32, %c0_i32_0 : i32, i32, i32, i32
  }
}

module attributes {stable_mosaic.version = 11 : i64} {
  func.func @kernel(%arg0: i32, %arg1: memref<128x32xf32, #tpu.memory_space<vmem>>, %arg2: memref<128x32xf32, #tpu.memory_space<vmem>>, %arg3: memref<1x32xf32, #tpu.memory_space<vmem>>, %arg4: memref<1x32xf32, #tpu.memory_space<vmem>>, %arg5: memref<32x128xf32, #tpu.memory_space<vmem>>, %arg6: memref<1x128xf32, #tpu.memory_space<vmem>>, %arg7: memref<128x32xf32, #tpu.memory_space<vmem>>, %arg8: memref<1x32xf32, #tpu.memory_space<vmem>>, %arg9: memref<128x32xf32, #tpu.memory_space<vmem>>) attributes {dimension_semantics = [#tpu.dimension_semantics<parallel>], iteration_bounds = array<i64: 1>, scalar_prefetch = 0 : i64, scratch_operands = 0 : i64, tpu.core_type = #tpu.core_type<tc>, window_params = [{transform_indices = @transform_0, window_bounds = array<i64: 128, 32>}, {transform_indices = @transform_1, window_bounds = array<i64: 128, 32>}, {pipeline_mode = #tpu.pipeline_mode<synchronous>, transform_indices = @transform_2, window_bounds = array<i64: 1, 32>}, {pipeline_mode = #tpu.pipeline_mode<synchronous>, transform_indices = @transform_3, window_bounds = array<i64: 1, 32>}, {pipeline_mode = #tpu.pipeline_mode<synchronous>, transform_indices = @transform_4, window_bounds = array<i64: 32, 128>}, {pipeline_mode = #tpu.pipeline_mode<synchronous>, transform_indices = @transform_5, window_bounds = array<i64: 1, 128>}, {pipeline_mode = #tpu.pipeline_mode<synchronous>, transform_indices = @transform_6, window_bounds = array<i64: 128, 32>}, {pipeline_mode = #tpu.pipeline_mode<synchronous>, transform_indices = @transform_7, window_bounds = array<i64: 1, 32>}, {transform_indices = @transform_8, window_bounds = array<i64: 128, 32>}]} {
    %c0 = arith.constant 0 : index
    %c0_0 = arith.constant 0 : index
    %0 = vector.load %arg1[%c0, %c0_0] : memref<128x32xf32, #tpu.memory_space<vmem>>, vector<128x32xf32>
    %c0_1 = arith.constant 0 : index
    %c0_2 = arith.constant 0 : index
    %1 = vector.load %arg2[%c0_1, %c0_2] : memref<128x32xf32, #tpu.memory_space<vmem>>, vector<128x32xf32>
    %2 = arith.addf %0, %1 : vector<128x32xf32>
    %cst = arith.constant dense<0.000000e+00> : vector<128xf32>
    %3 = vector.multi_reduction <add>, %2, %cst [1] : vector<128x32xf32> to vector<128xf32>
    %4 = vector.shape_cast %3 : vector<128xf32> to vector<128x1xf32>
    %cst_3 = arith.constant 3.200000e+01 : f32
    %5 = vector.broadcast %cst_3 : f32 to vector<128x1xf32>
    %6 = arith.divf %4, %5 : vector<128x1xf32>
    %7 = vector.broadcast %6 : vector<128x1xf32> to vector<128x32xf32>
    %8 = arith.subf %2, %7 : vector<128x32xf32>
    %9 = arith.mulf %8, %8 : vector<128x32xf32>
    %cst_4 = arith.constant dense<0.000000e+00> : vector<128xf32>
    %10 = vector.multi_reduction <add>, %9, %cst_4 [1] : vector<128x32xf32> to vector<128xf32>
    %11 = vector.shape_cast %10 : vector<128xf32> to vector<128x1xf32>
    %cst_5 = arith.constant 3.200000e+01 : f32
    %12 = vector.broadcast %cst_5 : f32 to vector<128x1xf32>
    %13 = arith.divf %11, %12 : vector<128x1xf32>
    %cst_6 = arith.constant 9.99999974E-6 : f32
    %14 = vector.broadcast %cst_6 : f32 to vector<128x1xf32>
    %15 = arith.addf %13, %14 : vector<128x1xf32>
    %16 = math.rsqrt %15 : vector<128x1xf32>
    %17 = vector.broadcast %16 : vector<128x1xf32> to vector<128x32xf32>
    %18 = arith.mulf %8, %17 : vector<128x32xf32>
    %c0_7 = arith.constant 0 : index
    %c0_8 = arith.constant 0 : index
    %19 = vector.load %arg3[%c0_7, %c0_8] : memref<1x32xf32, #tpu.memory_space<vmem>>, vector<1x32xf32>
    %20 = vector.broadcast %19 : vector<1x32xf32> to vector<128x32xf32>
    %21 = arith.mulf %18, %20 : vector<128x32xf32>
    %c0_9 = arith.constant 0 : index
    %c0_10 = arith.constant 0 : index
    %22 = vector.load %arg4[%c0_9, %c0_10] : memref<1x32xf32, #tpu.memory_space<vmem>>, vector<1x32xf32>
    %23 = vector.broadcast %22 : vector<1x32xf32> to vector<128x32xf32>
    %24 = arith.addf %21, %23 : vector<128x32xf32>
    %c0_11 = arith.constant 0 : index
    %c0_12 = arith.constant 0 : index
    %25 = vector.load %arg5[%c0_11, %c0_12] : memref<32x128xf32, #tpu.memory_space<vmem>>, vector<32x128xf32>
    %cst_13 = arith.constant dense<0.000000e+00> : vector<128x128xf32>
    %26 = tpu.matmul %24, %25, %cst_13 {dimension_numbers = #tpu.dot_dimension_numbers<[1], [0], [0], [1], [0, 0, 1, 1], [], []>} : vector<128x32xf32>, vector<32x128xf32>, vector<128x128xf32> -> vector<128x128xf32>
    %c0_14 = arith.constant 0 : index
    %c0_15 = arith.constant 0 : index
    %27 = vector.load %arg6[%c0_14, %c0_15] : memref<1x128xf32, #tpu.memory_space<vmem>>, vector<1x128xf32>
    %28 = vector.broadcast %27 : vector<1x128xf32> to vector<128x128xf32>
    %29 = arith.addf %26, %28 : vector<128x128xf32>
    %cst_16 = arith.constant 5.000000e-01 : f32
    %30 = vector.broadcast %cst_16 : f32 to vector<128x128xf32>
    %31 = arith.mulf %30, %29 : vector<128x128xf32>
    %cst_17 = arith.constant 4.471500e-02 : f32
    %32 = vector.broadcast %cst_17 : f32 to vector<128x128xf32>
    %33 = arith.mulf %32, %29 : vector<128x128xf32>
    %34 = arith.mulf %33, %29 : vector<128x128xf32>
    %35 = arith.mulf %34, %29 : vector<128x128xf32>
    %36 = arith.addf %29, %35 : vector<128x128xf32>
    %cst_18 = arith.constant 0.797884583 : f32
    %37 = vector.broadcast %cst_18 : f32 to vector<128x128xf32>
    %38 = arith.mulf %37, %36 : vector<128x128xf32>
    %39 = math.tanh %38 : vector<128x128xf32>
    %cst_19 = arith.constant 1.000000e+00 : f32
    %40 = vector.broadcast %cst_19 : f32 to vector<128x128xf32>
    %41 = arith.addf %40, %39 : vector<128x128xf32>
    %42 = arith.mulf %31, %41 : vector<128x128xf32>
    %c0_20 = arith.constant 0 : index
    %c0_21 = arith.constant 0 : index
    %43 = vector.load %arg7[%c0_20, %c0_21] : memref<128x32xf32, #tpu.memory_space<vmem>>, vector<128x32xf32>
    %cst_22 = arith.constant dense<0.000000e+00> : vector<128x32xf32>
    %44 = tpu.matmul %42, %43, %cst_22 {dimension_numbers = #tpu.dot_dimension_numbers<[1], [0], [0], [1], [0, 0, 1, 1], [], []>} : vector<128x128xf32>, vector<128x32xf32>, vector<128x32xf32> -> vector<128x32xf32>
    %c0_23 = arith.constant 0 : index
    %c0_24 = arith.constant 0 : index
    %45 = vector.load %arg8[%c0_23, %c0_24] : memref<1x32xf32, #tpu.memory_space<vmem>>, vector<1x32xf32>
    %46 = vector.broadcast %45 : vector<1x32xf32> to vector<128x32xf32>
    %47 = arith.addf %44, %46 : vector<128x32xf32>
    %48 = arith.addf %2, %47 : vector<128x32xf32>
    %c0_25 = arith.constant 0 : index
    %c0_26 = arith.constant 0 : index
    %49 = vector.load %arg9[%c0_25, %c0_26] : memref<128x32xf32, #tpu.memory_space<vmem>>, vector<128x32xf32>
    tpu.vector_store %arg9[%c0_25, %c0_26], %48 {strides = array<i32>} : memref<128x32xf32, #tpu.memory_space<vmem>>, vector<128x32xf32>,
    return
  }
  func.func @transform_0(%arg0: i32) -> (i32, i32) {
    %c0_i32 = arith.constant 0 : i32
    %c0_i32_0 = arith.constant 0 : i32
    return %arg0, %c0_i32 : i32, i32
  }
  func.func @transform_1(%arg0: i32) -> (i32, i32) {
    %c0_i32 = arith.constant 0 : i32
    %c0_i32_0 = arith.constant 0 : i32
    return %arg0, %c0_i32 : i32, i32
  }
  func.func @transform_2(%arg0: i32) -> (i32, i32) {
    %c0_i32 = arith.constant 0 : i32
    %c0_i32_0 = arith.constant 0 : i32
    %c0_i32_1 = arith.constant 0 : i32
    return %c0_i32, %c0_i32_0 : i32, i32
  }
  func.func @transform_3(%arg0: i32) -> (i32, i32) {
    %c0_i32 = arith.constant 0 : i32
    %c0_i32_0 = arith.constant 0 : i32
    %c0_i32_1 = arith.constant 0 : i32
    return %c0_i32, %c0_i32_0 : i32, i32
  }
  func.func @transform_4(%arg0: i32) -> (i32, i32) {
    %c0_i32 = arith.constant 0 : i32
    %c0_i32_0 = arith.constant 0 : i32
    %c0_i32_1 = arith.constant 0 : i32
    return %c0_i32, %c0_i32_0 : i32, i32
  }
  func.func @transform_5(%arg0: i32) -> (i32, i32) {
    %c0_i32 = arith.constant 0 : i32
    %c0_i32_0 = arith.constant 0 : i32
    %c0_i32_1 = arith.constant 0 : i32
    return %c0_i32, %c0_i32_0 : i32, i32
  }
  func.func @transform_6(%arg0: i32) -> (i32, i32) {
    %c0_i32 = arith.constant 0 : i32
    %c0_i32_0 = arith.constant 0 : i32
    %c0_i32_1 = arith.constant 0 : i32
    return %c0_i32, %c0_i32_0 : i32, i32
  }
  func.func @transform_7(%arg0: i32) -> (i32, i32) {
    %c0_i32 = arith.constant 0 : i32
    %c0_i32_0 = arith.constant 0 : i32
    %c0_i32_1 = arith.constant 0 : i32
    return %c0_i32, %c0_i32_0 : i32, i32
  }
  func.func @transform_8(%arg0: i32) -> (i32, i32) {
    %c0_i32 = arith.constant 0 : i32
    %c0_i32_0 = arith.constant 0 : i32
    return %arg0, %c0_i32 : i32, i32
  }
}

</mosaic_0001>

<llo_original>
// kernel: basic_layer_forward.6
$region0: #{basic_layer_forward.6}
  #allocation0 [shape = 'u32[]', space=smem, size = 0x4, offset = 0x4, fixed_abs, tag = 'smem constant byte address 0x4 - core index']
  #allocation1 [shape = 'u32[72,128]{1,0:T(1,128)}', space=vmem, size = 0x9000, scoped, tag = 'internal scratch']
  %s0 = inlined_call_operand.vmem [shape: f32[128,32], index: 0, kind: input, shape index: {}]
  %s1 = inlined_call_operand.vmem [shape: f32[1,32], index: 1, kind: input, shape index: {}]
  %s2 = inlined_call_operand.vmem [shape: f32[1,32], index: 2, kind: input, shape index: {}]
  %s3 = inlined_call_operand.vmem [shape: f32[128,32], index: 3, kind: output, shape index: {}]
  %s4 = sld [smem:[#allocation0]]
  $region22: #{basic_layer_forward.6} parent=0
    _
  %s6 = ssub.s32 1, %s4
  %s7 = scalar_select 0, %s6, %s4
  // Predicated region
  $region2: #{basic_layer_forward.6} parent=0 // pred_check
    _
  $region3: #{basic_layer_forward.6} parent=0 // pred_check_branch
    %9 = sbr.rel (0) target = $region5
  $region4: #{basic_layer_forward.6} parent=0 // pred_region
    _
  $region5: #{basic_layer_forward.6} parent=0 // pred_fallthru
    _
  // Predicated region
  $region6: #{basic_layer_forward.6} parent=0 // pred_check
    _
  $region7: #{basic_layer_forward.6} parent=0 // pred_check_branch
    %11 = sbr.rel (0) target = $region9
  $region8: #{basic_layer_forward.6} parent=0 // pred_region
    _
  $region9: #{basic_layer_forward.6} parent=0 // pred_fallthru
    _
  // Predicated region
  $region10: #{basic_layer_forward.6} parent=0 // pred_check
    _
  $region11: #{basic_layer_forward.6} parent=0 // pred_check_branch
    %13 = sbr.rel (0) target = $region13
  $region12: #{basic_layer_forward.6} parent=0 // pred_region
    _
  $region13: #{basic_layer_forward.6} parent=0 // pred_fallthru
    _
  %v14 = vld [vmem:[%s0] sm:$0xff]
  %v15 = vld [vmem:[%s0 + $0x8] sm:$0xff]
  %v16 = vld [vmem:[%s0 + $0x10] sm:$0xff]
  %v17 = vld [vmem:[%s0 + $0x18] sm:$0xff]
  %v18 = vld [vmem:[%s0 + $0x20] sm:$0xff]
  %v19 = vld [vmem:[%s0 + $0x28] sm:$0xff]
  %v20 = vld [vmem:[%s0 + $0x30] sm:$0xff]
  %v21 = vld [vmem:[%s0 + $0x38] sm:$0xff]
  %v22 = vld [vmem:[%s0 + $0x40] sm:$0xff]
  %v23 = vld [vmem:[%s0 + $0x48] sm:$0xff]
  %v24 = vld [vmem:[%s0 + $0x50] sm:$0xff]
  %v25 = vld [vmem:[%s0 + $0x58] sm:$0xff]
  %v26 = vld [vmem:[%s0 + $0x60] sm:$0xff]
  %v27 = vld [vmem:[%s0 + $0x68] sm:$0xff]
  %v28 = vld [vmem:[%s0 + $0x70] sm:$0xff]
  %v29 = vld [vmem:[%s0 + $0x78] sm:$0xff]
  %vm30 = vcmask 261120
  %v31 = vsel %vm30, %v14, 0.0
  %32 = vadd.xlane.f32.xlu0 %v31
  %v33 = vpop.xlane.xlu0 %32
  %v34 = vsel %vm30, %v15, 0.0
  %35 = vadd.xlane.f32.xlu0 %v34
  %v36 = vpop.xlane.xlu0 %35
  %v37 = vsel %vm30, %v16, 0.0
  %38 = vadd.xlane.f32.xlu0 %v37
  %v39 = vpop.xlane.xlu0 %38
  %v40 = vsel %vm30, %v17, 0.0
  %41 = vadd.xlane.f32.xlu0 %v40
  %v42 = vpop.xlane.xlu0 %41
  %v43 = vsel %vm30, %v18, 0.0
  %44 = vadd.xlane.f32.xlu0 %v43
  %v45 = vpop.xlane.xlu0 %44
  %v46 = vsel %vm30, %v19, 0.0
  %47 = vadd.xlane.f32.xlu0 %v46
  %v48 = vpop.xlane.xlu0 %47
  %v49 = vsel %vm30, %v20, 0.0
  %50 = vadd.xlane.f32.xlu0 %v49
  %v51 = vpop.xlane.xlu0 %50
  %v52 = vsel %vm30, %v21, 0.0
  %53 = vadd.xlane.f32.xlu0 %v52
  %v54 = vpop.xlane.xlu0 %53
  %v55 = vsel %vm30, %v22, 0.0
  %56 = vadd.xlane.f32.xlu0 %v55
  %v57 = vpop.xlane.xlu0 %56
  %v58 = vsel %vm30, %v23, 0.0
  %59 = vadd.xlane.f32.xlu0 %v58
  %v60 = vpop.xlane.xlu0 %59
  %v61 = vsel %vm30, %v24, 0.0
  %62 = vadd.xlane.f32.xlu0 %v61
  %v63 = vpop.xlane.xlu0 %62
  %v64 = vsel %vm30, %v25, 0.0
  %65 = vadd.xlane.f32.xlu0 %v64
  %v66 = vpop.xlane.xlu0 %65
  %v67 = vsel %vm30, %v26, 0.0
  %68 = vadd.xlane.f32.xlu0 %v67
  %v69 = vpop.xlane.xlu0 %68
  %v70 = vsel %vm30, %v27, 0.0
  %71 = vadd.xlane.f32.xlu0 %v70
  %v72 = vpop.xlane.xlu0 %71
  %v73 = vsel %vm30, %v28, 0.0
  %74 = vadd.xlane.f32.xlu0 %v73
  %v75 = vpop.xlane.xlu0 %74
  %v76 = vsel %vm30, %v29, 0.0
  %77 = vadd.xlane.f32.xlu0 %v76
  %v78 = vpop.xlane.xlu0 %77
  %v79 = vrcp.pop 32.0
  %v80 = vmul.f32 32.0, %v79
  %v81 = vsub.f32 1.0, %v80
  %v82 = vmul.f32 %v79, %v81
  %v83 = vadd.f32 %v79, %v82
  %vm84 = vweird.f32 %v79
  %v85 = vsel %vm84, %v79, %v83
  %v86 = vmul.f32 %v33, %v85
  %v87 = vmul.f32 %v36, %v85
  %v88 = vmul.f32 %v39, %v85
  %v89 = vmul.f32 %v42, %v85
  %v90 = vmul.f32 %v45, %v85
  %v91 = vmul.f32 %v48, %v85
  %v92 = vmul.f32 %v51, %v85
  %v93 = vmul.f32 %v54, %v85
  %v94 = vmul.f32 %v57, %v85
  %v95 = vmul.f32 %v60, %v85
  %v96 = vmul.f32 %v63, %v85
  %v97 = vmul.f32 %v66, %v85
  %v98 = vmul.f32 %v69, %v85
  %v99 = vmul.f32 %v72, %v85
  %v100 = vmul.f32 %v75, %v85
  %v101 = vmul.f32 %v78, %v85
  %v102 = vsub.f32 %v14, %v86
  %v103 = vsub.f32 %v15, %v87
  %v104 = vsub.f32 %v16, %v88
  %v105 = vsub.f32 %v17, %v89
  %v106 = vsub.f32 %v18, %v90
  %v107 = vsub.f32 %v19, %v91
  %v108 = vsub.f32 %v20, %v92
  %v109 = vsub.f32 %v21, %v93
  %v110 = vsub.f32 %v22, %v94
  %v111 = vsub.f32 %v23, %v95
  %v112 = vsub.f32 %v24, %v96
  %v113 = vsub.f32 %v25, %v97
  %v114 = vsub.f32 %v26, %v98
  %v115 = vsub.f32 %v27, %v99
  %v116 = vsub.f32 %v28, %v100
  %v117 = vsub.f32 %v29, %v101
  %v118 = vmul.f32 %v102, %v102
  %v119 = vmul.f32 %v103, %v103
  %v120 = vmul.f32 %v104, %v104
  %v121 = vmul.f32 %v105, %v105
  %v122 = vmul.f32 %v106, %v106
  %v123 = vmul.f32 %v107, %v107
  %v124 = vmul.f32 %v108, %v108
  %v125 = vmul.f32 %v109, %v109
  %v126 = vmul.f32 %v110, %v110
  %v127 = vmul.f32 %v111, %v111
  %v128 = vmul.f32 %v112, %v112
  %v129 = vmul.f32 %v113, %v113
  %v130 = vmul.f32 %v114, %v114
  %v131 = vmul.f32 %v115, %v115
  %v132 = vmul.f32 %v116, %v116
  %v133 = vmul.f32 %v117, %v117
  %v134 = vsel %vm30, %v118, 0.0
  %135 = vadd.xlane.f32.xlu0 %v134
  %v136 = vpop.xlane.xlu0 %135
  %v137 = vsel %vm30, %v119, 0.0
  %138 = vadd.xlane.f32.xlu0 %v137
  %v139 = vpop.xlane.xlu0 %138
  %v140 = vsel %vm30, %v120, 0.0
  %141 = vadd.xlane.f32.xlu0 %v140
  %v142 = vpop.xlane.xlu0 %141
  %v143 = vsel %vm30, %v121, 0.0
  %144 = vadd.xlane.f32.xlu0 %v143
  %v145 = vpop.xlane.xlu0 %144
  %v146 = vsel %vm30, %v122, 0.0
  %147 = vadd.xlane.f32.xlu0 %v146
  %v148 = vpop.xlane.xlu0 %147
  %v149 = vsel %vm30, %v123, 0.0
  %150 = vadd.xlane.f32.xlu0 %v149
  %v151 = vpop.xlane.xlu0 %150
  %v152 = vsel %vm30, %v124, 0.0
  %153 = vadd.xlane.f32.xlu0 %v152
  %v154 = vpop.xlane.xlu0 %153
  %v155 = vsel %vm30, %v125, 0.0
  %156 = vadd.xlane.f32.xlu0 %v155
  %v157 = vpop.xlane.xlu0 %156
  %v158 = vsel %vm30, %v126, 0.0
  %159 = vadd.xlane.f32.xlu0 %v158
  %v160 = vpop.xlane.xlu0 %159
  %v161 = vsel %vm30, %v127, 0.0
  %162 = vadd.xlane.f32.xlu0 %v161
  %v163 = vpop.xlane.xlu0 %162
  %v164 = vsel %vm30, %v128, 0.0
  %165 = vadd.xlane.f32.xlu0 %v164
  %v166 = vpop.xlane.xlu0 %165
  %v167 = vsel %vm30, %v129, 0.0
  %168 = vadd.xlane.f32.xlu0 %v167
  %v169 = vpop.xlane.xlu0 %168
  %v170 = vsel %vm30, %v130, 0.0
  %171 = vadd.xlane.f32.xlu0 %v170
  %v172 = vpop.xlane.xlu0 %171
  %v173 = vsel %vm30, %v131, 0.0
  %174 = vadd.xlane.f32.xlu0 %v173
  %v175 = vpop.xlane.xlu0 %174
  %v176 = vsel %vm30, %v132, 0.0
  %177 = vadd.xlane.f32.xlu0 %v176
  %v178 = vpop.xlane.xlu0 %177
  %v179 = vsel %vm30, %v133, 0.0
  %180 = vadd.xlane.f32.xlu0 %v179
  %v181 = vpop.xlane.xlu0 %180
  %v182 = vmul.f32 %v136, %v85
  %v183 = vmul.f32 %v139, %v85
  %v184 = vmul.f32 %v142, %v85
  %v185 = vmul.f32 %v145, %v85
  %v186 = vmul.f32 %v148, %v85
  %v187 = vmul.f32 %v151, %v85
  %v188 = vmul.f32 %v154, %v85
  %v189 = vmul.f32 %v157, %v85
  %v190 = vmul.f32 %v160, %v85
  %v191 = vmul.f32 %v163, %v85
  %v192 = vmul.f32 %v166, %v85
  %v193 = vmul.f32 %v169, %v85
  %v194 = vmul.f32 %v172, %v85
  %v195 = vmul.f32 %v175, %v85
  %v196 = vmul.f32 %v178, %v85
  %v197 = vmul.f32 %v181, %v85
  %v198 = vadd.f32 %v182, 1e-05
  %v199 = vadd.f32 %v183, 1e-05
  %v200 = vadd.f32 %v184, 1e-05
  %v201 = vadd.f32 %v185, 1e-05
  %v202 = vadd.f32 %v186, 1e-05
  %v203 = vadd.f32 %v187, 1e-05
  %v204 = vadd.f32 %v188, 1e-05
  %v205 = vadd.f32 %v189, 1e-05
  %v206 = vadd.f32 %v190, 1e-05
  %v207 = vadd.f32 %v191, 1e-05
  %v208 = vadd.f32 %v192, 1e-05
  %v209 = vadd.f32 %v193, 1e-05
  %v210 = vadd.f32 %v194, 1e-05
  %v211 = vadd.f32 %v195, 1e-05
  %v212 = vadd.f32 %v196, 1e-05
  %v213 = vadd.f32 %v197, 1e-05
  %v214 = vrsqrt.pop %v198
  %v215 = vmul.f32 %v214, %v198
  %v216 = vmul.f32 %v215, %v214
  %v217 = vmul.f32 0.5, %v216
  %v218 = vsub.f32 1.5, %v217
  %v219 = vmul.f32 %v214, %v218
  %vm220 = vweird.f32 %v198
  %vm221 = vweird.f32 %v214
  %vm222 = vmor %vm220, %vm221
  %v223 = vsel %vm222, %v214, %v219
  %v224 = vrsqrt.pop %v199
  %v225 = vmul.f32 %v224, %v199
  %v226 = vmul.f32 %v225, %v224
  %v227 = vmul.f32 0.5, %v226
  %v228 = vsub.f32 1.5, %v227
  %v229 = vmul.f32 %v224, %v228
  %vm230 = vweird.f32 %v199
  %vm231 = vweird.f32 %v224
  %vm232 = vmor %vm230, %vm231
  %v233 = vsel %vm232, %v224, %v229
  %v234 = vrsqrt.pop %v200
  %v235 = vmul.f32 %v234, %v200
  %v236 = vmul.f32 %v235, %v234
  %v237 = vmul.f32 0.5, %v236
  %v238 = vsub.f32 1.5, %v237
  %v239 = vmul.f32 %v234, %v238
  %vm240 = vweird.f32 %v200
  %vm241 = vweird.f32 %v234
  %vm242 = vmor %vm240, %vm241
  %v243 = vsel %vm242, %v234, %v239
  %v244 = vrsqrt.pop %v201
  %v245 = vmul.f32 %v244, %v201
  %v246 = vmul.f32 %v245, %v244
  %v247 = vmul.f32 0.5, %v246
  %v248 = vsub.f32 1.5, %v247
  %v249 = vmul.f32 %v244, %v248
  %vm250 = vweird.f32 %v201
  %vm251 = vweird.f32 %v244
  %vm252 = vmor %vm250, %vm251
  %v253 = vsel %vm252, %v244, %v249
  %v254 = vrsqrt.pop %v202
  %v255 = vmul.f32 %v254, %v202
  %v256 = vmul.f32 %v255, %v254
  %v257 = vmul.f32 0.5, %v256
  %v258 = vsub.f32 1.5, %v257
  %v259 = vmul.f32 %v254, %v258
  %vm260 = vweird.f32 %v202
  %vm261 = vweird.f32 %v254
  %vm262 = vmor %vm260, %vm261
  %v263 = vsel %vm262, %v254, %v259
  %v264 = vrsqrt.pop %v203
  %v265 = vmul.f32 %v264, %v203
  %v266 = vmul.f32 %v265, %v264
  %v267 = vmul.f32 0.5, %v266
  %v268 = vsub.f32 1.5, %v267
  %v269 = vmul.f32 %v264, %v268
  %vm270 = vweird.f32 %v203
  %vm271 = vweird.f32 %v264
  %vm272 = vmor %vm270, %vm271
  %v273 = vsel %vm272, %v264, %v269
  %v274 = vrsqrt.pop %v204
  %v275 = vmul.f32 %v274, %v204
  %v276 = vmul.f32 %v275, %v274
  %v277 = vmul.f32 0.5, %v276
  %v278 = vsub.f32 1.5, %v277
  %v279 = vmul.f32 %v274, %v278
  %vm280 = vweird.f32 %v204
  %vm281 = vweird.f32 %v274
  %vm282 = vmor %vm280, %vm281
  %v283 = vsel %vm282, %v274, %v279
  %v284 = vrsqrt.pop %v205
  %v285 = vmul.f32 %v284, %v205
  %v286 = vmul.f32 %v285, %v284
  %v287 = vmul.f32 0.5, %v286
  %v288 = vsub.f32 1.5, %v287
  %v289 = vmul.f32 %v284, %v288
  %vm290 = vweird.f32 %v205
  %vm291 = vweird.f32 %v284
  %vm292 = vmor %vm290, %vm291
  %v293 = vsel %vm292, %v284, %v289
  %v294 = vrsqrt.pop %v206
  %v295 = vmul.f32 %v294, %v206
  %v296 = vmul.f32 %v295, %v294
  %v297 = vmul.f32 0.5, %v296
  %v298 = vsub.f32 1.5, %v297
  %v299 = vmul.f32 %v294, %v298
  %vm300 = vweird.f32 %v206
  %vm301 = vweird.f32 %v294
  %vm302 = vmor %vm300, %vm301
  %v303 = vsel %vm302, %v294, %v299
  %v304 = vrsqrt.pop %v207
  %v305 = vmul.f32 %v304, %v207
  %v306 = vmul.f32 %v305, %v304
  %v307 = vmul.f32 0.5, %v306
  %v308 = vsub.f32 1.5, %v307
  %v309 = vmul.f32 %v304, %v308
  %vm310 = vweird.f32 %v207
  %vm311 = vweird.f32 %v304
  %vm312 = vmor %vm310, %vm311
  %v313 = vsel %vm312, %v304, %v309
  %v314 = vrsqrt.pop %v208
  %v315 = vmul.f32 %v314, %v208
  %v316 = vmul.f32 %v315, %v314
  %v317 = vmul.f32 0.5, %v316
  %v318 = vsub.f32 1.5, %v317
  %v319 = vmul.f32 %v314, %v318
  %vm320 = vweird.f32 %v208
  %vm321 = vweird.f32 %v314
  %vm322 = vmor %vm320, %vm321
  %v323 = vsel %vm322, %v314, %v319
  %v324 = vrsqrt.pop %v209
  %v325 = vmul.f32 %v324, %v209
  %v326 = vmul.f32 %v325, %v324
  %v327 = vmul.f32 0.5, %v326
  %v328 = vsub.f32 1.5, %v327
  %v329 = vmul.f32 %v324, %v328
  %vm330 = vweird.f32 %v209
  %vm331 = vweird.f32 %v324
  %vm332 = vmor %vm330, %vm331
  %v333 = vsel %vm332, %v324, %v329
  %v334 = vrsqrt.pop %v210
  %v335 = vmul.f32 %v334, %v210
  %v336 = vmul.f32 %v335, %v334
  %v337 = vmul.f32 0.5, %v336
  %v338 = vsub.f32 1.5, %v337
  %v339 = vmul.f32 %v334, %v338
  %vm340 = vweird.f32 %v210
  %vm341 = vweird.f32 %v334
  %vm342 = vmor %vm340, %vm341
  %v343 = vsel %vm342, %v334, %v339
  %v344 = vrsqrt.pop %v211
  %v345 = vmul.f32 %v344, %v211
  %v346 = vmul.f32 %v345, %v344
  %v347 = vmul.f32 0.5, %v346
  %v348 = vsub.f32 1.5, %v347
  %v349 = vmul.f32 %v344, %v348
  %vm350 = vweird.f32 %v211
  %vm351 = vweird.f32 %v344
  %vm352 = vmor %vm350, %vm351
  %v353 = vsel %vm352, %v344, %v349
  %v354 = vrsqrt.pop %v212
  %v355 = vmul.f32 %v354, %v212
  %v356 = vmul.f32 %v355, %v354
  %v357 = vmul.f32 0.5, %v356
  %v358 = vsub.f32 1.5, %v357
  %v359 = vmul.f32 %v354, %v358
  %vm360 = vweird.f32 %v212
  %vm361 = vweird.f32 %v354
  %vm362 = vmor %vm360, %vm361
  %v363 = vsel %vm362, %v354, %v359
  %v364 = vrsqrt.pop %v213
  %v365 = vmul.f32 %v364, %v213
  %v366 = vmul.f32 %v365, %v364
  %v367 = vmul.f32 0.5, %v366
  %v368 = vsub.f32 1.5, %v367
  %v369 = vmul.f32 %v364, %v368
  %vm370 = vweird.f32 %v213
  %vm371 = vweird.f32 %v364
  %vm372 = vmor %vm370, %vm371
  %v373 = vsel %vm372, %v364, %v369
  %v374 = vmul.f32 %v102, %v223
  %v375 = vmul.f32 %v103, %v233
  %v376 = vmul.f32 %v104, %v243
  %v377 = vmul.f32 %v105, %v253
  %v378 = vmul.f32 %v106, %v263
  %v379 = vmul.f32 %v107, %v273
  %v380 = vmul.f32 %v108, %v283
  %v381 = vmul.f32 %v109, %v293
  %v382 = vmul.f32 %v110, %v303
  %v383 = vmul.f32 %v111, %v313
  %v384 = vmul.f32 %v112, %v323
  %v385 = vmul.f32 %v113, %v333
  %v386 = vmul.f32 %v114, %v343
  %v387 = vmul.f32 %v115, %v353
  %v388 = vmul.f32 %v116, %v363
  %v389 = vmul.f32 %v117, %v373
  %v390 = vld [vmem:[%s1] sm:$0x1]
  %v392 = vperm.slane %v390, 0
  %v394 = vmul.f32 %v374, %v392
  %v395 = vmul.f32 %v375, %v392
  %v396 = vmul.f32 %v376, %v392
  %v397 = vmul.f32 %v377, %v392
  %v398 = vmul.f32 %v378, %v392
  %v399 = vmul.f32 %v379, %v392
  %v400 = vmul.f32 %v380, %v392
  %v401 = vmul.f32 %v381, %v392
  %v402 = vmul.f32 %v382, %v392
  %v403 = vmul.f32 %v383, %v392
  %v404 = vmul.f32 %v384, %v392
  %v405 = vmul.f32 %v385, %v392
  %v406 = vmul.f32 %v386, %v392
  %v407 = vmul.f32 %v387, %v392
  %v408 = vmul.f32 %v388, %v392
  %v409 = vmul.f32 %v389, %v392
  %v410 = vld [vmem:[%s2] sm:$0x1]
  %v412 = vperm.slane %v410, 0
  %v414 = vadd.f32 %v394, %v412
  %v415 = vadd.f32 %v395, %v412
  %v416 = vadd.f32 %v396, %v412
  %v417 = vadd.f32 %v397, %v412
  %v418 = vadd.f32 %v398, %v412
  %v419 = vadd.f32 %v399, %v412
  %v420 = vadd.f32 %v400, %v412
  %v421 = vadd.f32 %v401, %v412
  %v422 = vadd.f32 %v402, %v412
  %v423 = vadd.f32 %v403, %v412
  %v424 = vadd.f32 %v404, %v412
  %v425 = vadd.f32 %v405, %v412
  %v426 = vadd.f32 %v406, %v412
  %v427 = vadd.f32 %v407, %v412
  %v428 = vadd.f32 %v408, %v412
  %v429 = vadd.f32 %v409, %v412
  %430 = vst.msk [vmem:[%s3] sm:$0xff] %vm30, %v414
  %431 = vst.msk [vmem:[%s3 + $0x8] sm:$0xff] %vm30, %v415
  %432 = vst.msk [vmem:[%s3 + $0x10] sm:$0xff] %vm30, %v416
  %433 = vst.msk [vmem:[%s3 + $0x18] sm:$0xff] %vm30, %v417
  %434 = vst.msk [vmem:[%s3 + $0x20] sm:$0xff] %vm30, %v418
  %435 = vst.msk [vmem:[%s3 + $0x28] sm:$0xff] %vm30, %v419
  %436 = vst.msk [vmem:[%s3 + $0x30] sm:$0xff] %vm30, %v420
  %437 = vst.msk [vmem:[%s3 + $0x38] sm:$0xff] %vm30, %v421
  %438 = vst.msk [vmem:[%s3 + $0x40] sm:$0xff] %vm30, %v422
  %439 = vst.msk [vmem:[%s3 + $0x48] sm:$0xff] %vm30, %v423
  %440 = vst.msk [vmem:[%s3 + $0x50] sm:$0xff] %vm30, %v424
  %441 = vst.msk [vmem:[%s3 + $0x58] sm:$0xff] %vm30, %v425
  %442 = vst.msk [vmem:[%s3 + $0x60] sm:$0xff] %vm30, %v426
  %443 = vst.msk [vmem:[%s3 + $0x68] sm:$0xff] %vm30, %v427
  %444 = vst.msk [vmem:[%s3 + $0x70] sm:$0xff] %vm30, %v428
  %445 = vst.msk [vmem:[%s3 + $0x78] sm:$0xff] %vm30, %v429
  // Predicated region
  $region14: #{basic_layer_forward.6} parent=0 // pred_check
    _
  $region15: #{basic_layer_forward.6} parent=0 // pred_check_branch
    %447 = sbr.rel (0) target = $region17
  $region16: #{basic_layer_forward.6} parent=0 // pred_region
    _
  $region17: #{basic_layer_forward.6} parent=0 // pred_fallthru
    _
  // Predicated region
  $region18: #{basic_layer_forward.6} parent=0 // pred_check
    _
  $region19: #{basic_layer_forward.6} parent=0 // pred_check_branch
    %449 = sbr.rel (0) target = $region21
  $region20: #{basic_layer_forward.6} parent=0 // pred_region
    _
  $region21: #{basic_layer_forward.6} parent=0 // pred_fallthru
    _

// kernel: basic_layer_forward.8
$region0: #{basic_layer_forward.8}
  #allocation0 [shape = 'u32[]', space=smem, size = 0x4, offset = 0x4, fixed_abs, tag = 'smem constant byte address 0x4 - core index']
  #allocation1 [shape = 'u32[72,128]{1,0:T(1,128)}', space=vmem, size = 0x9000, scoped, tag = 'internal scratch']
  %s0 = inlined_call_operand.vmem [shape: f32[128,32], index: 0, kind: input, shape index: {}]
  %s1 = inlined_call_operand.vmem [shape: f32[128,32], index: 1, kind: input, shape index: {}]
  %s2 = inlined_call_operand.vmem [shape: f32[1,32], index: 2, kind: input, shape index: {}]
  %s3 = inlined_call_operand.vmem [shape: f32[1,32], index: 3, kind: input, shape index: {}]
  %s4 = inlined_call_operand.vmem [shape: f32[32,128], index: 4, kind: input, shape index: {}]
  %s5 = inlined_call_operand.vmem [shape: f32[1,128], index: 5, kind: input, shape index: {}]
  %s6 = inlined_call_operand.vmem [shape: f32[128,32], index: 6, kind: input, shape index: {}]
  %s7 = inlined_call_operand.vmem [shape: f32[1,32], index: 7, kind: input, shape index: {}]
  %s8 = inlined_call_operand.vmem [shape: f32[128,32], index: 8, kind: output, shape index: {}]
  %s9 = sld [smem:[#allocation0]]
  $region42: #{basic_layer_forward.8} parent=0
    _
  %s11 = ssub.s32 1, %s9
  %s12 = scalar_select 0, %s11, %s9
  // Predicated region
  $region2: #{basic_layer_forward.8} parent=0 // pred_check
    _
  $region3: #{basic_layer_forward.8} parent=0 // pred_check_branch
    %14 = sbr.rel (0) target = $region5
  $region4: #{basic_layer_forward.8} parent=0 // pred_region
    _
  $region5: #{basic_layer_forward.8} parent=0 // pred_fallthru
    _
  // Predicated region
  $region6: #{basic_layer_forward.8} parent=0 // pred_check
    _
  $region7: #{basic_layer_forward.8} parent=0 // pred_check_branch
    %16 = sbr.rel (0) target = $region9
  $region8: #{basic_layer_forward.8} parent=0 // pred_region
    _
  $region9: #{basic_layer_forward.8} parent=0 // pred_fallthru
    _
  // Predicated region
  $region10: #{basic_layer_forward.8} parent=0 // pred_check
    _
  $region11: #{basic_layer_forward.8} parent=0 // pred_check_branch
    %18 = sbr.rel (0) target = $region13
  $region12: #{basic_layer_forward.8} parent=0 // pred_region
    _
  $region13: #{basic_layer_forward.8} parent=0 // pred_fallthru
    _
  // Predicated region
  $region14: #{basic_layer_forward.8} parent=0 // pred_check
    _
  $region15: #{basic_layer_forward.8} parent=0 // pred_check_branch
    %20 = sbr.rel (0) target = $region17
  $region16: #{basic_layer_forward.8} parent=0 // pred_region
    _
  $region17: #{basic_layer_forward.8} parent=0 // pred_fallthru
    _
  // Predicated region
  $region18: #{basic_layer_forward.8} parent=0 // pred_check
    _
  $region19: #{basic_layer_forward.8} parent=0 // pred_check_branch
    %22 = sbr.rel (0) target = $region21
  $region20: #{basic_layer_forward.8} parent=0 // pred_region
    _
  $region21: #{basic_layer_forward.8} parent=0 // pred_fallthru
    _
  // Predicated region
  $region22: #{basic_layer_forward.8} parent=0 // pred_check
    _
  $region23: #{basic_layer_forward.8} parent=0 // pred_check_branch
    %24 = sbr.rel (0) target = $region25
  $region24: #{basic_layer_forward.8} parent=0 // pred_region
    _
  $region25: #{basic_layer_forward.8} parent=0 // pred_fallthru
    _
  // Predicated region
  $region26: #{basic_layer_forward.8} parent=0 // pred_check
    _
  $region27: #{basic_layer_forward.8} parent=0 // pred_check_branch
    %26 = sbr.rel (0) target = $region29
  $region28: #{basic_layer_forward.8} parent=0 // pred_region
    _
  $region29: #{basic_layer_forward.8} parent=0 // pred_fallthru
    _
  // Predicated region
  $region30: #{basic_layer_forward.8} parent=0 // pred_check
    _
  $region31: #{basic_layer_forward.8} parent=0 // pred_check_branch
    %28 = sbr.rel (0) target = $region33
  $region32: #{basic_layer_forward.8} parent=0 // pred_region
    _
  $region33: #{basic_layer_forward.8} parent=0 // pred_fallthru
    _
  %v29 = vld [vmem:[%s0] sm:$0xff]
  %v30 = vld [vmem:[%s0 + $0x8] sm:$0xff]
  %v31 = vld [vmem:[%s0 + $0x10] sm:$0xff]
  %v32 = vld [vmem:[%s0 + $0x18] sm:$0xff]
  %v33 = vld [vmem:[%s0 + $0x20] sm:$0xff]
  %v34 = vld [vmem:[%s0 + $0x28] sm:$0xff]
  %v35 = vld [vmem:[%s0 + $0x30] sm:$0xff]
  %v36 = vld [vmem:[%s0 + $0x38] sm:$0xff]
  %v37 = vld [vmem:[%s0 + $0x40] sm:$0xff]
  %v38 = vld [vmem:[%s0 + $0x48] sm:$0xff]
  %v39 = vld [vmem:[%s0 + $0x50] sm:$0xff]
  %v40 = vld [vmem:[%s0 + $0x58] sm:$0xff]
  %v41 = vld [vmem:[%s0 + $0x60] sm:$0xff]
  %v42 = vld [vmem:[%s0 + $0x68] sm:$0xff]
  %v43 = vld [vmem:[%s0 + $0x70] sm:$0xff]
  %v44 = vld [vmem:[%s0 + $0x78] sm:$0xff]
  %v45 = vld [vmem:[%s1] sm:$0xff]
  %v46 = vld [vmem:[%s1 + $0x8] sm:$0xff]
  %v47 = vld [vmem:[%s1 + $0x10] sm:$0xff]
  %v48 = vld [vmem:[%s1 + $0x18] sm:$0xff]
  %v49 = vld [vmem:[%s1 + $0x20] sm:$0xff]
  %v50 = vld [vmem:[%s1 + $0x28] sm:$0xff]
  %v51 = vld [vmem:[%s1 + $0x30] sm:$0xff]
  %v52 = vld [vmem:[%s1 + $0x38] sm:$0xff]
  %v53 = vld [vmem:[%s1 + $0x40] sm:$0xff]
  %v54 = vld [vmem:[%s1 + $0x48] sm:$0xff]
  %v55 = vld [vmem:[%s1 + $0x50] sm:$0xff]
  %v56 = vld [vmem:[%s1 + $0x58] sm:$0xff]
  %v57 = vld [vmem:[%s1 + $0x60] sm:$0xff]
  %v58 = vld [vmem:[%s1 + $0x68] sm:$0xff]
  %v59 = vld [vmem:[%s1 + $0x70] sm:$0xff]
  %v60 = vld [vmem:[%s1 + $0x78] sm:$0xff]
  %v61 = vadd.f32 %v29, %v45
  %v62 = vadd.f32 %v30, %v46
  %v63 = vadd.f32 %v31, %v47
  %v64 = vadd.f32 %v32, %v48
  %v65 = vadd.f32 %v33, %v49
  %v66 = vadd.f32 %v34, %v50
  %v67 = vadd.f32 %v35, %v51
  %v68 = vadd.f32 %v36, %v52
  %v69 = vadd.f32 %v37, %v53
  %v70 = vadd.f32 %v38, %v54
  %v71 = vadd.f32 %v39, %v55
  %v72 = vadd.f32 %v40, %v56
  %v73 = vadd.f32 %v41, %v57
  %v74 = vadd.f32 %v42, %v58
  %v75 = vadd.f32 %v43, %v59
  %v76 = vadd.f32 %v44, %v60
  %vm77 = vcmask 261120
  %v78 = vsel %vm77, %v61, 0.0
  %79 = vadd.xlane.f32.xlu0 %v78
  %v80 = vpop.xlane.xlu0 %79
  %v81 = vsel %vm77, %v62, 0.0
  %82 = vadd.xlane.f32.xlu0 %v81
  %v83 = vpop.xlane.xlu0 %82
  %v84 = vsel %vm77, %v63, 0.0
  %85 = vadd.xlane.f32.xlu0 %v84
  %v86 = vpop.xlane.xlu0 %85
  %v87 = vsel %vm77, %v64, 0.0
  %88 = vadd.xlane.f32.xlu0 %v87
  %v89 = vpop.xlane.xlu0 %88
  %v90 = vsel %vm77, %v65, 0.0
  %91 = vadd.xlane.f32.xlu0 %v90
  %v92 = vpop.xlane.xlu0 %91
  %v93 = vsel %vm77, %v66, 0.0
  %94 = vadd.xlane.f32.xlu0 %v93
  %v95 = vpop.xlane.xlu0 %94
  %v96 = vsel %vm77, %v67, 0.0
  %97 = vadd.xlane.f32.xlu0 %v96
  %v98 = vpop.xlane.xlu0 %97
  %v99 = vsel %vm77, %v68, 0.0
  %100 = vadd.xlane.f32.xlu0 %v99
  %v101 = vpop.xlane.xlu0 %100
  %v102 = vsel %vm77, %v69, 0.0
  %103 = vadd.xlane.f32.xlu0 %v102
  %v104 = vpop.xlane.xlu0 %103
  %v105 = vsel %vm77, %v70, 0.0
  %106 = vadd.xlane.f32.xlu0 %v105
  %v107 = vpop.xlane.xlu0 %106
  %v108 = vsel %vm77, %v71, 0.0
  %109 = vadd.xlane.f32.xlu0 %v108
  %v110 = vpop.xlane.xlu0 %109
  %v111 = vsel %vm77, %v72, 0.0
  %112 = vadd.xlane.f32.xlu0 %v111
  %v113 = vpop.xlane.xlu0 %112
  %v114 = vsel %vm77, %v73, 0.0
  %115 = vadd.xlane.f32.xlu0 %v114
  %v116 = vpop.xlane.xlu0 %115
  %v117 = vsel %vm77, %v74, 0.0
  %118 = vadd.xlane.f32.xlu0 %v117
  %v119 = vpop.xlane.xlu0 %118
  %v120 = vsel %vm77, %v75, 0.0
  %121 = vadd.xlane.f32.xlu0 %v120
  %v122 = vpop.xlane.xlu0 %121
  %v123 = vsel %vm77, %v76, 0.0
  %124 = vadd.xlane.f32.xlu0 %v123
  %v125 = vpop.xlane.xlu0 %124
  %v126 = vrcp.pop 32.0
  %v127 = vmul.f32 32.0, %v126
  %v128 = vsub.f32 1.0, %v127
  %v129 = vmul.f32 %v126, %v128
  %v130 = vadd.f32 %v126, %v129
  %vm131 = vweird.f32 %v126
  %v132 = vsel %vm131, %v126, %v130
  %v133 = vmul.f32 %v80, %v132
  %v134 = vmul.f32 %v83, %v132
  %v135 = vmul.f32 %v86, %v132
  %v136 = vmul.f32 %v89, %v132
  %v137 = vmul.f32 %v92, %v132
  %v138 = vmul.f32 %v95, %v132
  %v139 = vmul.f32 %v98, %v132
  %v140 = vmul.f32 %v101, %v132
  %v141 = vmul.f32 %v104, %v132
  %v142 = vmul.f32 %v107, %v132
  %v143 = vmul.f32 %v110, %v132
  %v144 = vmul.f32 %v113, %v132
  %v145 = vmul.f32 %v116, %v132
  %v146 = vmul.f32 %v119, %v132
  %v147 = vmul.f32 %v122, %v132
  %v148 = vmul.f32 %v125, %v132
  %v149 = vsub.f32 %v61, %v133
  %v150 = vsub.f32 %v62, %v134
  %v151 = vsub.f32 %v63, %v135
  %v152 = vsub.f32 %v64, %v136
  %v153 = vsub.f32 %v65, %v137
  %v154 = vsub.f32 %v66, %v138
  %v155 = vsub.f32 %v67, %v139
  %v156 = vsub.f32 %v68, %v140
  %v157 = vsub.f32 %v69, %v141
  %v158 = vsub.f32 %v70, %v142
  %v159 = vsub.f32 %v71, %v143
  %v160 = vsub.f32 %v72, %v144
  %v161 = vsub.f32 %v73, %v145
  %v162 = vsub.f32 %v74, %v146
  %v163 = vsub.f32 %v75, %v147
  %v164 = vsub.f32 %v76, %v148
  %v165 = vmul.f32 %v149, %v149
  %v166 = vmul.f32 %v150, %v150
  %v167 = vmul.f32 %v151, %v151
  %v168 = vmul.f32 %v152, %v152
  %v169 = vmul.f32 %v153, %v153
  %v170 = vmul.f32 %v154, %v154
  %v171 = vmul.f32 %v155, %v155
  %v172 = vmul.f32 %v156, %v156
  %v173 = vmul.f32 %v157, %v157
  %v174 = vmul.f32 %v158, %v158
  %v175 = vmul.f32 %v159, %v159
  %v176 = vmul.f32 %v160, %v160
  %v177 = vmul.f32 %v161, %v161
  %v178 = vmul.f32 %v162, %v162
  %v179 = vmul.f32 %v163, %v163
  %v180 = vmul.f32 %v164, %v164
  %v181 = vsel %vm77, %v165, 0.0
  %182 = vadd.xlane.f32.xlu0 %v181
  %v183 = vpop.xlane.xlu0 %182
  %v184 = vsel %vm77, %v166, 0.0
  %185 = vadd.xlane.f32.xlu0 %v184
  %v186 = vpop.xlane.xlu0 %185
  %v187 = vsel %vm77, %v167, 0.0
  %188 = vadd.xlane.f32.xlu0 %v187
  %v189 = vpop.xlane.xlu0 %188
  %v190 = vsel %vm77, %v168, 0.0
  %191 = vadd.xlane.f32.xlu0 %v190
  %v192 = vpop.xlane.xlu0 %191
  %v193 = vsel %vm77, %v169, 0.0
  %194 = vadd.xlane.f32.xlu0 %v193
  %v195 = vpop.xlane.xlu0 %194
  %v196 = vsel %vm77, %v170, 0.0
  %197 = vadd.xlane.f32.xlu0 %v196
  %v198 = vpop.xlane.xlu0 %197
  %v199 = vsel %vm77, %v171, 0.0
  %200 = vadd.xlane.f32.xlu0 %v199
  %v201 = vpop.xlane.xlu0 %200
  %v202 = vsel %vm77, %v172, 0.0
  %203 = vadd.xlane.f32.xlu0 %v202
  %v204 = vpop.xlane.xlu0 %203
  %v205 = vsel %vm77, %v173, 0.0
  %206 = vadd.xlane.f32.xlu0 %v205
  %v207 = vpop.xlane.xlu0 %206
  %v208 = vsel %vm77, %v174, 0.0
  %209 = vadd.xlane.f32.xlu0 %v208
  %v210 = vpop.xlane.xlu0 %209
  %v211 = vsel %vm77, %v175, 0.0
  %212 = vadd.xlane.f32.xlu0 %v211
  %v213 = vpop.xlane.xlu0 %212
  %v214 = vsel %vm77, %v176, 0.0
  %215 = vadd.xlane.f32.xlu0 %v214
  %v216 = vpop.xlane.xlu0 %215
  %v217 = vsel %vm77, %v177, 0.0
  %218 = vadd.xlane.f32.xlu0 %v217
  %v219 = vpop.xlane.xlu0 %218
  %v220 = vsel %vm77, %v178, 0.0
  %221 = vadd.xlane.f32.xlu0 %v220
  %v222 = vpop.xlane.xlu0 %221
  %v223 = vsel %vm77, %v179, 0.0
  %224 = vadd.xlane.f32.xlu0 %v223
  %v225 = vpop.xlane.xlu0 %224
  %v226 = vsel %vm77, %v180, 0.0
  %227 = vadd.xlane.f32.xlu0 %v226
  %v228 = vpop.xlane.xlu0 %227
  %v229 = vmul.f32 %v183, %v132
  %v230 = vmul.f32 %v186, %v132
  %v231 = vmul.f32 %v189, %v132
  %v232 = vmul.f32 %v192, %v132
  %v233 = vmul.f32 %v195, %v132
  %v234 = vmul.f32 %v198, %v132
  %v235 = vmul.f32 %v201, %v132
  %v236 = vmul.f32 %v204, %v132
  %v237 = vmul.f32 %v207, %v132
  %v238 = vmul.f32 %v210, %v132
  %v239 = vmul.f32 %v213, %v132
  %v240 = vmul.f32 %v216, %v132
  %v241 = vmul.f32 %v219, %v132
  %v242 = vmul.f32 %v222, %v132
  %v243 = vmul.f32 %v225, %v132
  %v244 = vmul.f32 %v228, %v132
  %v245 = vadd.f32 %v229, 1e-05
  %v246 = vadd.f32 %v230, 1e-05
  %v247 = vadd.f32 %v231, 1e-05
  %v248 = vadd.f32 %v232, 1e-05
  %v249 = vadd.f32 %v233, 1e-05
  %v250 = vadd.f32 %v234, 1e-05
  %v251 = vadd.f32 %v235, 1e-05
  %v252 = vadd.f32 %v236, 1e-05
  %v253 = vadd.f32 %v237, 1e-05
  %v254 = vadd.f32 %v238, 1e-05
  %v255 = vadd.f32 %v239, 1e-05
  %v256 = vadd.f32 %v240, 1e-05
  %v257 = vadd.f32 %v241, 1e-05
  %v258 = vadd.f32 %v242, 1e-05
  %v259 = vadd.f32 %v243, 1e-05
  %v260 = vadd.f32 %v244, 1e-05
  %v261 = vrsqrt.pop %v245
  %v262 = vmul.f32 %v261, %v245
  %v263 = vmul.f32 %v262, %v261
  %v264 = vmul.f32 0.5, %v263
  %v265 = vsub.f32 1.5, %v264
  %v266 = vmul.f32 %v261, %v265
  %vm267 = vweird.f32 %v245
  %vm268 = vweird.f32 %v261
  %vm269 = vmor %vm267, %vm268
  %v270 = vsel %vm269, %v261, %v266
  %v271 = vrsqrt.pop %v246
  %v272 = vmul.f32 %v271, %v246
  %v273 = vmul.f32 %v272, %v271
  %v274 = vmul.f32 0.5, %v273
  %v275 = vsub.f32 1.5, %v274
  %v276 = vmul.f32 %v271, %v275
  %vm277 = vweird.f32 %v246
  %vm278 = vweird.f32 %v271
  %vm279 = vmor %vm277, %vm278
  %v280 = vsel %vm279, %v271, %v276
  %v281 = vrsqrt.pop %v247
  %v282 = vmul.f32 %v281, %v247
  %v283 = vmul.f32 %v282, %v281
  %v284 = vmul.f32 0.5, %v283
  %v285 = vsub.f32 1.5, %v284
  %v286 = vmul.f32 %v281, %v285
  %vm287 = vweird.f32 %v247
  %vm288 = vweird.f32 %v281
  %vm289 = vmor %vm287, %vm288
  %v290 = vsel %vm289, %v281, %v286
  %v291 = vrsqrt.pop %v248
  %v292 = vmul.f32 %v291, %v248
  %v293 = vmul.f32 %v292, %v291
  %v294 = vmul.f32 0.5, %v293
  %v295 = vsub.f32 1.5, %v294
  %v296 = vmul.f32 %v291, %v295
  %vm297 = vweird.f32 %v248
  %vm298 = vweird.f32 %v291
  %vm299 = vmor %vm297, %vm298
  %v300 = vsel %vm299, %v291, %v296
  %v301 = vrsqrt.pop %v249
  %v302 = vmul.f32 %v301, %v249
  %v303 = vmul.f32 %v302, %v301
  %v304 = vmul.f32 0.5, %v303
  %v305 = vsub.f32 1.5, %v304
  %v306 = vmul.f32 %v301, %v305
  %vm307 = vweird.f32 %v249
  %vm308 = vweird.f32 %v301
  %vm309 = vmor %vm307, %vm308
  %v310 = vsel %vm309, %v301, %v306
  %v311 = vrsqrt.pop %v250
  %v312 = vmul.f32 %v311, %v250
  %v313 = vmul.f32 %v312, %v311
  %v314 = vmul.f32 0.5, %v313
  %v315 = vsub.f32 1.5, %v314
  %v316 = vmul.f32 %v311, %v315
  %vm317 = vweird.f32 %v250
  %vm318 = vweird.f32 %v311
  %vm319 = vmor %vm317, %vm318
  %v320 = vsel %vm319, %v311, %v316
  %v321 = vrsqrt.pop %v251
  %v322 = vmul.f32 %v321, %v251
  %v323 = vmul.f32 %v322, %v321
  %v324 = vmul.f32 0.5, %v323
  %v325 = vsub.f32 1.5, %v324
  %v326 = vmul.f32 %v321, %v325
  %vm327 = vweird.f32 %v251
  %vm328 = vweird.f32 %v321
  %vm329 = vmor %vm327, %vm328
  %v330 = vsel %vm329, %v321, %v326
  %v331 = vrsqrt.pop %v252
  %v332 = vmul.f32 %v331, %v252
  %v333 = vmul.f32 %v332, %v331
  %v334 = vmul.f32 0.5, %v333
  %v335 = vsub.f32 1.5, %v334
  %v336 = vmul.f32 %v331, %v335
  %vm337 = vweird.f32 %v252
  %vm338 = vweird.f32 %v331
  %vm339 = vmor %vm337, %vm338
  %v340 = vsel %vm339, %v331, %v336
  %v341 = vrsqrt.pop %v253
  %v342 = vmul.f32 %v341, %v253
  %v343 = vmul.f32 %v342, %v341
  %v344 = vmul.f32 0.5, %v343
  %v345 = vsub.f32 1.5, %v344
  %v346 = vmul.f32 %v341, %v345
  %vm347 = vweird.f32 %v253
  %vm348 = vweird.f32 %v341
  %vm349 = vmor %vm347, %vm348
  %v350 = vsel %vm349, %v341, %v346
  %v351 = vrsqrt.pop %v254
  %v352 = vmul.f32 %v351, %v254
  %v353 = vmul.f32 %v352, %v351
  %v354 = vmul.f32 0.5, %v353
  %v355 = vsub.f32 1.5, %v354
  %v356 = vmul.f32 %v351, %v355
  %vm357 = vweird.f32 %v254
  %vm358 = vweird.f32 %v351
  %vm359 = vmor %vm357, %vm358
  %v360 = vsel %vm359, %v351, %v356
  %v361 = vrsqrt.pop %v255
  %v362 = vmul.f32 %v361, %v255
  %v363 = vmul.f32 %v362, %v361
  %v364 = vmul.f32 0.5, %v363
  %v365 = vsub.f32 1.5, %v364
  %v366 = vmul.f32 %v361, %v365
  %vm367 = vweird.f32 %v255
  %vm368 = vweird.f32 %v361
  %vm369 = vmor %vm367, %vm368
  %v370 = vsel %vm369, %v361, %v366
  %v371 = vrsqrt.pop %v256
  %v372 = vmul.f32 %v371, %v256
  %v373 = vmul.f32 %v372, %v371
  %v374 = vmul.f32 0.5, %v373
  %v375 = vsub.f32 1.5, %v374
  %v376 = vmul.f32 %v371, %v375
  %vm377 = vweird.f32 %v256
  %vm378 = vweird.f32 %v371
  %vm379 = vmor %vm377, %vm378
  %v380 = vsel %vm379, %v371, %v376
  %v381 = vrsqrt.pop %v257
  %v382 = vmul.f32 %v381, %v257
  %v383 = vmul.f32 %v382, %v381
  %v384 = vmul.f32 0.5, %v383
  %v385 = vsub.f32 1.5, %v384
  %v386 = vmul.f32 %v381, %v385
  %vm387 = vweird.f32 %v257
  %vm388 = vweird.f32 %v381
  %vm389 = vmor %vm387, %vm388
  %v390 = vsel %vm389, %v381, %v386
  %v391 = vrsqrt.pop %v258
  %v392 = vmul.f32 %v391, %v258
  %v393 = vmul.f32 %v392, %v391
  %v394 = vmul.f32 0.5, %v393
  %v395 = vsub.f32 1.5, %v394
  %v396 = vmul.f32 %v391, %v395
  %vm397 = vweird.f32 %v258
  %vm398 = vweird.f32 %v391
  %vm399 = vmor %vm397, %vm398
  %v400 = vsel %vm399, %v391, %v396
  %v401 = vrsqrt.pop %v259
  %v402 = vmul.f32 %v401, %v259
  %v403 = vmul.f32 %v402, %v401
  %v404 = vmul.f32 0.5, %v403
  %v405 = vsub.f32 1.5, %v404
  %v406 = vmul.f32 %v401, %v405
  %vm407 = vweird.f32 %v259
  %vm408 = vweird.f32 %v401
  %vm409 = vmor %vm407, %vm408
  %v410 = vsel %vm409, %v401, %v406
  %v411 = vrsqrt.pop %v260
  %v412 = vmul.f32 %v411, %v260
  %v413 = vmul.f32 %v412, %v411
  %v414 = vmul.f32 0.5, %v413
  %v415 = vsub.f32 1.5, %v414
  %v416 = vmul.f32 %v411, %v415
  %vm417 = vweird.f32 %v260
  %vm418 = vweird.f32 %v411
  %vm419 = vmor %vm417, %vm418
  %v420 = vsel %vm419, %v411, %v416
  %v421 = vmul.f32 %v149, %v270
  %v422 = vmul.f32 %v150, %v280
  %v423 = vmul.f32 %v151, %v290
  %v424 = vmul.f32 %v152, %v300
  %v425 = vmul.f32 %v153, %v310
  %v426 = vmul.f32 %v154, %v320
  %v427 = vmul.f32 %v155, %v330
  %v428 = vmul.f32 %v156, %v340
  %v429 = vmul.f32 %v157, %v350
  %v430 = vmul.f32 %v158, %v360
  %v431 = vmul.f32 %v159, %v370
  %v432 = vmul.f32 %v160, %v380
  %v433 = vmul.f32 %v161, %v390
  %v434 = vmul.f32 %v162, %v400
  %v435 = vmul.f32 %v163, %v410
  %v436 = vmul.f32 %v164, %v420
  %v437 = vld [vmem:[%s2] sm:$0x1]
  %v439 = vperm.slane %v437, 0
  %v441 = vmul.f32 %v421, %v439
  %v442 = vmul.f32 %v422, %v439
  %v443 = vmul.f32 %v423, %v439
  %v444 = vmul.f32 %v424, %v439
  %v445 = vmul.f32 %v425, %v439
  %v446 = vmul.f32 %v426, %v439
  %v447 = vmul.f32 %v427, %v439
  %v448 = vmul.f32 %v428, %v439
  %v449 = vmul.f32 %v429, %v439
  %v450 = vmul.f32 %v430, %v439
  %v451 = vmul.f32 %v431, %v439
  %v452 = vmul.f32 %v432, %v439
  %v453 = vmul.f32 %v433, %v439
  %v454 = vmul.f32 %v434, %v439
  %v455 = vmul.f32 %v435, %v439
  %v456 = vmul.f32 %v436, %v439
  %v457 = vld [vmem:[%s3] sm:$0x1]
  %v459 = vperm.slane %v457, 0
  %v461 = vadd.f32 %v441, %v459
  %v462 = vadd.f32 %v442, %v459
  %v463 = vadd.f32 %v443, %v459
  %v464 = vadd.f32 %v444, %v459
  %v465 = vadd.f32 %v445, %v459
  %v466 = vadd.f32 %v446, %v459
  %v467 = vadd.f32 %v447, %v459
  %v468 = vadd.f32 %v448, %v459
  %v469 = vadd.f32 %v449, %v459
  %v470 = vadd.f32 %v450, %v459
  %v471 = vadd.f32 %v451, %v459
  %v472 = vadd.f32 %v452, %v459
  %v473 = vadd.f32 %v453, %v459
  %v474 = vadd.f32 %v454, %v459
  %v475 = vadd.f32 %v455, %v459
  %v476 = vadd.f32 %v456, %v459
  %v477 = vld [vmem:[%s4] sm:$0xff]
  %v478 = vld [vmem:[%s4 + $0x8] sm:$0xff]
  %v479 = vld [vmem:[%s4 + $0x10] sm:$0xff]
  %v480 = vld [vmem:[%s4 + $0x18] sm:$0xff]
  %v481 = vld [vmem:[%s5] sm:$0x1]
  %v483 = vperm.slane %v481, 0
  %v486 = vsel %vm77, %v461, 0
  %v489 = vsel %vm77, %v462, 0
  %v492 = vsel %vm77, %v463, 0
  %v495 = vsel %vm77, %v464, 0
  %v498 = vsel %vm77, %v465, 0
  %v501 = vsel %vm77, %v466, 0
  %v504 = vsel %vm77, %v467, 0
  %v507 = vsel %vm77, %v468, 0
  %v510 = vsel %vm77, %v469, 0
  %v513 = vsel %vm77, %v470, 0
  %v516 = vsel %vm77, %v471, 0
  %v519 = vsel %vm77, %v472, 0
  %v522 = vsel %vm77, %v473, 0
  %v525 = vsel %vm77, %v474, 0
  %v528 = vsel %vm77, %v475, 0
  %v531 = vsel %vm77, %v476, 0
  %533 = vmatpush.msra.mxu0 0.0
  %534 = vmatpush.msra.mxu0 0.0
  %535 = vmatpush.msra.mxu0 0.0
  %536 = vmatpush.msra.mxu0 0.0
  %537 = vmatpush.msra.mxu0 0.0
  %538 = vmatpush.msra.mxu0 0.0
  %539 = vmatpush.msra.mxu0 0.0
  %540 = vmatpush.msra.mxu0 0.0
  %541 = vmatpush.msra.mxu0 0.0
  %542 = vmatpush.msra.mxu0 0.0
  %543 = vmatpush.msra.mxu0 0.0
  %544 = vmatpush.msra.mxu0 0.0
  %545 = vmatpush.msra.mxu0 %v480
  %546 = vmatpush.msra.mxu0 %v479
  %547 = vmatpush.msra.mxu0 %v478
  %548 = vmatpush.msra.mxu0 %v477
  %549 = vmatmul.f32.gmra.mxu0 %v486
  %v550 = vpop.f32.mrf.mxu0
  %v551 = vadd.f32 %v483, %v550
  %552 = vmatmul.f32.gmra.mxu0 %v489
  %v553 = vpop.f32.mrf.mxu0
  %v554 = vadd.f32 %v483, %v553
  %555 = vmatmul.f32.gmra.mxu0 %v492
  %v556 = vpop.f32.mrf.mxu0
  %v557 = vadd.f32 %v483, %v556
  %558 = vmatmul.f32.gmra.mxu0 %v495
  %v559 = vpop.f32.mrf.mxu0
  %v560 = vadd.f32 %v483, %v559
  %561 = vmatmul.f32.gmra.mxu0 %v498
  %v562 = vpop.f32.mrf.mxu0
  %v563 = vadd.f32 %v483, %v562
  %564 = vmatmul.f32.gmra.mxu0 %v501
  %v565 = vpop.f32.mrf.mxu0
  %v566 = vadd.f32 %v483, %v565
  %567 = vmatmul.f32.gmra.mxu0 %v504
  %v568 = vpop.f32.mrf.mxu0
  %v569 = vadd.f32 %v483, %v568
  %570 = vmatmul.f32.gmra.mxu0 %v507
  %v571 = vpop.f32.mrf.mxu0
  %v572 = vadd.f32 %v483, %v571
  %573 = vmatmul.f32.gmra.mxu0 %v510
  %v574 = vpop.f32.mrf.mxu0
  %v575 = vadd.f32 %v483, %v574
  %576 = vmatmul.f32.gmra.mxu0 %v513
  %v577 = vpop.f32.mrf.mxu0
  %v578 = vadd.f32 %v483, %v577
  %579 = vmatmul.f32.gmra.mxu0 %v516
  %v580 = vpop.f32.mrf.mxu0
  %v581 = vadd.f32 %v483, %v580
  %582 = vmatmul.f32.gmra.mxu0 %v519
  %v583 = vpop.f32.mrf.mxu0
  %v584 = vadd.f32 %v483, %v583
  %585 = vmatmul.f32.gmra.mxu0 %v522
  %v586 = vpop.f32.mrf.mxu0
  %v587 = vadd.f32 %v483, %v586
  %588 = vmatmul.f32.gmra.mxu0 %v525
  %v589 = vpop.f32.mrf.mxu0
  %v590 = vadd.f32 %v483, %v589
  %591 = vmatmul.f32.gmra.mxu0 %v528
  %v592 = vpop.f32.mrf.mxu0
  %v593 = vadd.f32 %v483, %v592
  %594 = vmatmul.f32.gmra.mxu0 %v531
  %v595 = vpop.f32.mrf.mxu0
  %v596 = vadd.f32 %v483, %v595
  %597 = vdwg.mxu0
  %v598 = vmul.f32 %v551, 0.5
  %v599 = vmul.f32 %v554, 0.5
  %v600 = vmul.f32 %v557, 0.5
  %v601 = vmul.f32 %v560, 0.5
  %v602 = vmul.f32 %v563, 0.5
  %v603 = vmul.f32 %v566, 0.5
  %v604 = vmul.f32 %v569, 0.5
  %v605 = vmul.f32 %v572, 0.5
  %v606 = vmul.f32 %v575, 0.5
  %v607 = vmul.f32 %v578, 0.5
  %v608 = vmul.f32 %v581, 0.5
  %v609 = vmul.f32 %v584, 0.5
  %v610 = vmul.f32 %v587, 0.5
  %v611 = vmul.f32 %v590, 0.5
  %v612 = vmul.f32 %v593, 0.5
  %v613 = vmul.f32 %v596, 0.5
  %v614 = vmul.f32 %v551, 0.044715
  %v615 = vmul.f32 %v554, 0.044715
  %v616 = vmul.f32 %v557, 0.044715
  %v617 = vmul.f32 %v560, 0.044715
  %v618 = vmul.f32 %v563, 0.044715
  %v619 = vmul.f32 %v566, 0.044715
  %v620 = vmul.f32 %v569, 0.044715
  %v621 = vmul.f32 %v572, 0.044715
  %v622 = vmul.f32 %v575, 0.044715
  %v623 = vmul.f32 %v578, 0.044715
  %v624 = vmul.f32 %v581, 0.044715
  %v625 = vmul.f32 %v584, 0.044715
  %v626 = vmul.f32 %v587, 0.044715
  %v627 = vmul.f32 %v590, 0.044715
  %v628 = vmul.f32 %v593, 0.044715
  %v629 = vmul.f32 %v596, 0.044715
  %v630 = vmul.f32 %v614, %v551
  %v631 = vmul.f32 %v615, %v554
  %v632 = vmul.f32 %v616, %v557
  %v633 = vmul.f32 %v617, %v560
  %v634 = vmul.f32 %v618, %v563
  %v635 = vmul.f32 %v619, %v566
  %v636 = vmul.f32 %v620, %v569
  %v637 = vmul.f32 %v621, %v572
  %v638 = vmul.f32 %v622, %v575
  %v639 = vmul.f32 %v623, %v578
  %v640 = vmul.f32 %v624, %v581
  %v641 = vmul.f32 %v625, %v584
  %v642 = vmul.f32 %v626, %v587
  %v643 = vmul.f32 %v627, %v590
  %v644 = vmul.f32 %v628, %v593
  %v645 = vmul.f32 %v629, %v596
  %v646 = vmul.f32 %v630, %v551
  %v647 = vmul.f32 %v631, %v554
  %v648 = vmul.f32 %v632, %v557
  %v649 = vmul.f32 %v633, %v560
  %v650 = vmul.f32 %v634, %v563
  %v651 = vmul.f32 %v635, %v566
  %v652 = vmul.f32 %v636, %v569
  %v653 = vmul.f32 %v637, %v572
  %v654 = vmul.f32 %v638, %v575
  %v655 = vmul.f32 %v639, %v578
  %v656 = vmul.f32 %v640, %v581
  %v657 = vmul.f32 %v641, %v584
  %v658 = vmul.f32 %v642, %v587
  %v659 = vmul.f32 %v643, %v590
  %v660 = vmul.f32 %v644, %v593
  %v661 = vmul.f32 %v645, %v596
  %v662 = vadd.f32 %v551, %v646
  %v663 = vadd.f32 %v554, %v647
  %v664 = vadd.f32 %v557, %v648
  %v665 = vadd.f32 %v560, %v649
  %v666 = vadd.f32 %v563, %v650
  %v667 = vadd.f32 %v566, %v651
  %v668 = vadd.f32 %v569, %v652
  %v669 = vadd.f32 %v572, %v653
  %v670 = vadd.f32 %v575, %v654
  %v671 = vadd.f32 %v578, %v655
  %v672 = vadd.f32 %v581, %v656
  %v673 = vadd.f32 %v584, %v657
  %v674 = vadd.f32 %v587, %v658
  %v675 = vadd.f32 %v590, %v659
  %v676 = vadd.f32 %v593, %v660
  %v677 = vadd.f32 %v596, %v661
  %v678 = vmul.f32 %v662, 0.7978846
  %v679 = vmul.f32 %v663, 0.7978846
  %v680 = vmul.f32 %v664, 0.7978846
  %v681 = vmul.f32 %v665, 0.7978846
  %v682 = vmul.f32 %v666, 0.7978846
  %v683 = vmul.f32 %v667, 0.7978846
  %v684 = vmul.f32 %v668, 0.7978846
  %v685 = vmul.f32 %v669, 0.7978846
  %v686 = vmul.f32 %v670, 0.7978846
  %v687 = vmul.f32 %v671, 0.7978846
  %v688 = vmul.f32 %v672, 0.7978846
  %v689 = vmul.f32 %v673, 0.7978846
  %v690 = vmul.f32 %v674, 0.7978846
  %v691 = vmul.f32 %v675, 0.7978846
  %v692 = vmul.f32 %v676, 0.7978846
  %v693 = vmul.f32 %v677, 0.7978846
  %v694 = vtanh.pop %v678
  %v695 = vtanh.pop %v679
  %v696 = vtanh.pop %v680
  %v697 = vtanh.pop %v681
  %v698 = vtanh.pop %v682
  %v699 = vtanh.pop %v683
  %v700 = vtanh.pop %v684
  %v701 = vtanh.pop %v685
  %v702 = vtanh.pop %v686
  %v703 = vtanh.pop %v687
  %v704 = vtanh.pop %v688
  %v705 = vtanh.pop %v689
  %v706 = vtanh.pop %v690
  %v707 = vtanh.pop %v691
  %v708 = vtanh.pop %v692
  %v709 = vtanh.pop %v693
  %v710 = vadd.f32 %v694, 1.0
  %v711 = vadd.f32 %v695, 1.0
  %v712 = vadd.f32 %v696, 1.0
  %v713 = vadd.f32 %v697, 1.0
  %v714 = vadd.f32 %v698, 1.0
  %v715 = vadd.f32 %v699, 1.0
  %v716 = vadd.f32 %v700, 1.0
  %v717 = vadd.f32 %v701, 1.0
  %v718 = vadd.f32 %v702, 1.0
  %v719 = vadd.f32 %v703, 1.0
  %v720 = vadd.f32 %v704, 1.0
  %v721 = vadd.f32 %v705, 1.0
  %v722 = vadd.f32 %v706, 1.0
  %v723 = vadd.f32 %v707, 1.0
  %v724 = vadd.f32 %v708, 1.0
  %v725 = vadd.f32 %v709, 1.0
  %v726 = vmul.f32 %v598, %v710
  %v727 = vmul.f32 %v599, %v711
  %v728 = vmul.f32 %v600, %v712
  %v729 = vmul.f32 %v601, %v713
  %v730 = vmul.f32 %v602, %v714
  %v731 = vmul.f32 %v603, %v715
  %v732 = vmul.f32 %v604, %v716
  %v733 = vmul.f32 %v605, %v717
  %v734 = vmul.f32 %v606, %v718
  %v735 = vmul.f32 %v607, %v719
  %v736 = vmul.f32 %v608, %v720
  %v737 = vmul.f32 %v609, %v721
  %v738 = vmul.f32 %v610, %v722
  %v739 = vmul.f32 %v611, %v723
  %v740 = vmul.f32 %v612, %v724
  %v741 = vmul.f32 %v613, %v725
  %v742 = vld [vmem:[%s6] sm:$0xff]
  %v743 = vld [vmem:[%s6 + $0x8] sm:$0xff]
  %v744 = vld [vmem:[%s6 + $0x10] sm:$0xff]
  %v745 = vld [vmem:[%s6 + $0x18] sm:$0xff]
  %v746 = vld [vmem:[%s6 + $0x20] sm:$0xff]
  %v747 = vld [vmem:[%s6 + $0x28] sm:$0xff]
  %v748 = vld [vmem:[%s6 + $0x30] sm:$0xff]
  %v749 = vld [vmem:[%s6 + $0x38] sm:$0xff]
  %v750 = vld [vmem:[%s6 + $0x40] sm:$0xff]
  %v751 = vld [vmem:[%s6 + $0x48] sm:$0xff]
  %v752 = vld [vmem:[%s6 + $0x50] sm:$0xff]
  %v753 = vld [vmem:[%s6 + $0x58] sm:$0xff]
  %v754 = vld [vmem:[%s6 + $0x60] sm:$0xff]
  %v755 = vld [vmem:[%s6 + $0x68] sm:$0xff]
  %v756 = vld [vmem:[%s6 + $0x70] sm:$0xff]
  %v757 = vld [vmem:[%s6 + $0x78] sm:$0xff]
  %v758 = vld [vmem:[%s7] sm:$0x1]
  %v760 = vperm.slane %v758, 0
  %762 = vmatpush.msra.mxu0 %v757
  %763 = vmatpush.msra.mxu0 %v756
  %764 = vmatpush.msra.mxu0 %v755
  %765 = vmatpush.msra.mxu0 %v754
  %766 = vmatpush.msra.mxu0 %v753
  %767 = vmatpush.msra.mxu0 %v752
  %768 = vmatpush.msra.mxu0 %v751
  %769 = vmatpush.msra.mxu0 %v750
  %770 = vmatpush.msra.mxu0 %v749
  %771 = vmatpush.msra.mxu0 %v748
  %772 = vmatpush.msra.mxu0 %v747
  %773 = vmatpush.msra.mxu0 %v746
  %774 = vmatpush.msra.mxu0 %v745
  %775 = vmatpush.msra.mxu0 %v744
  %776 = vmatpush.msra.mxu0 %v743
  %777 = vmatpush.msra.mxu0 %v742
  %778 = vmatmul.f32.gmra.mxu0 %v726
  %v779 = vpop.f32.mrf.mxu0
  %v780 = vadd.f32 %v760, %v779
  %781 = vmatmul.f32.gmra.mxu0 %v727
  %v782 = vpop.f32.mrf.mxu0
  %v783 = vadd.f32 %v760, %v782
  %784 = vmatmul.f32.gmra.mxu0 %v728
  %v785 = vpop.f32.mrf.mxu0
  %v786 = vadd.f32 %v760, %v785
  %787 = vmatmul.f32.gmra.mxu0 %v729
  %v788 = vpop.f32.mrf.mxu0
  %v789 = vadd.f32 %v760, %v788
  %790 = vmatmul.f32.gmra.mxu0 %v730
  %v791 = vpop.f32.mrf.mxu0
  %v792 = vadd.f32 %v760, %v791
  %793 = vmatmul.f32.gmra.mxu0 %v731
  %v794 = vpop.f32.mrf.mxu0
  %v795 = vadd.f32 %v760, %v794
  %796 = vmatmul.f32.gmra.mxu0 %v732
  %v797 = vpop.f32.mrf.mxu0
  %v798 = vadd.f32 %v760, %v797
  %799 = vmatmul.f32.gmra.mxu0 %v733
  %v800 = vpop.f32.mrf.mxu0
  %v801 = vadd.f32 %v760, %v800
  %802 = vmatmul.f32.gmra.mxu0 %v734
  %v803 = vpop.f32.mrf.mxu0
  %v804 = vadd.f32 %v760, %v803
  %805 = vmatmul.f32.gmra.mxu0 %v735
  %v806 = vpop.f32.mrf.mxu0
  %v807 = vadd.f32 %v760, %v806
  %808 = vmatmul.f32.gmra.mxu0 %v736
  %v809 = vpop.f32.mrf.mxu0
  %v810 = vadd.f32 %v760, %v809
  %811 = vmatmul.f32.gmra.mxu0 %v737
  %v812 = vpop.f32.mrf.mxu0
  %v813 = vadd.f32 %v760, %v812
  %814 = vmatmul.f32.gmra.mxu0 %v738
  %v815 = vpop.f32.mrf.mxu0
  %v816 = vadd.f32 %v760, %v815
  %817 = vmatmul.f32.gmra.mxu0 %v739
  %v818 = vpop.f32.mrf.mxu0
  %v819 = vadd.f32 %v760, %v818
  %820 = vmatmul.f32.gmra.mxu0 %v740
  %v821 = vpop.f32.mrf.mxu0
  %v822 = vadd.f32 %v760, %v821
  %823 = vmatmul.f32.gmra.mxu0 %v741
  %v824 = vpop.f32.mrf.mxu0
  %v825 = vadd.f32 %v760, %v824
  %826 = vdwg.mxu0
  %v827 = vadd.f32 %v61, %v780
  %v828 = vadd.f32 %v62, %v783
  %v829 = vadd.f32 %v63, %v786
  %v830 = vadd.f32 %v64, %v789
  %v831 = vadd.f32 %v65, %v792
  %v832 = vadd.f32 %v66, %v795
  %v833 = vadd.f32 %v67, %v798
  %v834 = vadd.f32 %v68, %v801
  %v835 = vadd.f32 %v69, %v804
  %v836 = vadd.f32 %v70, %v807
  %v837 = vadd.f32 %v71, %v810
  %v838 = vadd.f32 %v72, %v813
  %v839 = vadd.f32 %v73, %v816
  %v840 = vadd.f32 %v74, %v819
  %v841 = vadd.f32 %v75, %v822
  %v842 = vadd.f32 %v76, %v825
  %843 = vst.msk [vmem:[%s8] sm:$0xff] %vm77, %v827
  %844 = vst.msk [vmem:[%s8 + $0x8] sm:$0xff] %vm77, %v828
  %845 = vst.msk [vmem:[%s8 + $0x10] sm:$0xff] %vm77, %v829
  %846 = vst.msk [vmem:[%s8 + $0x18] sm:$0xff] %vm77, %v830
  %847 = vst.msk [vmem:[%s8 + $0x20] sm:$0xff] %vm77, %v831
  %848 = vst.msk [vmem:[%s8 + $0x28] sm:$0xff] %vm77, %v832
  %849 = vst.msk [vmem:[%s8 + $0x30] sm:$0xff] %vm77, %v833
  %850 = vst.msk [vmem:[%s8 + $0x38] sm:$0xff] %vm77, %v834
  %851 = vst.msk [vmem:[%s8 + $0x40] sm:$0xff] %vm77, %v835
  %852 = vst.msk [vmem:[%s8 + $0x48] sm:$0xff] %vm77, %v836
  %853 = vst.msk [vmem:[%s8 + $0x50] sm:$0xff] %vm77, %v837
  %854 = vst.msk [vmem:[%s8 + $0x58] sm:$0xff] %vm77, %v838
  %855 = vst.msk [vmem:[%s8 + $0x60] sm:$0xff] %vm77, %v839
  %856 = vst.msk [vmem:[%s8 + $0x68] sm:$0xff] %vm77, %v840
  %857 = vst.msk [vmem:[%s8 + $0x70] sm:$0xff] %vm77, %v841
  %858 = vst.msk [vmem:[%s8 + $0x78] sm:$0xff] %vm77, %v842
  // Predicated region
  $region34: #{basic_layer_forward.8} parent=0 // pred_check
    _
  $region35: #{basic_layer_forward.8} parent=0 // pred_check_branch
    %860 = sbr.rel (0) target = $region37
  $region36: #{basic_layer_forward.8} parent=0 // pred_region
    _
  $region37: #{basic_layer_forward.8} parent=0 // pred_fallthru
    _
  // Predicated region
  $region38: #{basic_layer_forward.8} parent=0 // pred_check
    _
  $region39: #{basic_layer_forward.8} parent=0 // pred_check_branch
    %862 = sbr.rel (0) target = $region41
  $region40: #{basic_layer_forward.8} parent=0 // pred_region
    _
  $region41: #{basic_layer_forward.8} parent=0 // pred_fallthru
    _

// kernel: basic_layer_forward.7
$region0: #{basic_layer_forward.7}
  #allocation0 [shape = 'u32[]', space=smem, size = 0x4, offset = 0x4, fixed_abs, tag = 'smem constant byte address 0x4 - core index']
  #allocation1 [shape = 'u32[72,128]{1,0:T(1,128)}', space=vmem, size = 0x9000, scoped, tag = 'internal scratch']
  %s0 = inlined_call_operand.vmem [shape: f32[2,4,16,32], index: 0, kind: input, shape index: {}]
  %s1 = inlined_call_operand.vmem [shape: f32[32,96], index: 1, kind: input, shape index: {}]
  %s2 = inlined_call_operand.vmem [shape: f32[1,96], index: 2, kind: input, shape index: {}]
  %s3 = inlined_call_operand.vmem [shape: f32[32,32], index: 3, kind: input, shape index: {}]
  %s4 = inlined_call_operand.vmem [shape: f32[1,32], index: 4, kind: input, shape index: {}]
  %s5 = inlined_call_operand.vmem [shape: f32[4,16,16], index: 5, kind: input, shape index: {}]
  %s6 = inlined_call_operand.vmem [shape: f32[4,16,16], index: 6, kind: input, shape index: {}]
  %s7 = inlined_call_operand.vmem [shape: f32[2,4,16,32], index: 7, kind: output, shape index: {}]
  %s8 = sld [smem:[#allocation0]]
  $region61: #{basic_layer_forward.7} parent=0
    _
  %s10 = ssub.s32 1, %s8
  %s11 = scalar_select 0, %s10, %s8
  loop: start=0, step=1, limit=4
  $region2: #{basic_layer_forward.7} parent=0 // loop_pre_header
    _
  $region3: #{basic_layer_forward.7} parent=0 // loop_header
    %s13 = sphi 0, %s17
    %p14 = scmp.ge.s32.totalorder %s13, 4
    %s20 = sphi 0, %s32
    %s21 = sphi 0, %s28
    %s22 = sphi 0, %s20
    %s23 = sphi 0, %s21
    %s24 = sphi 0, %s22
    %s25 = sphi 0, %s23
    %s37 = sphi 0, %s39
    %s40 = sphi 0, %s37
    %s41 = sphi 0, %s40
    %s57 = sphi 0, %s41
    %s61 = sphi 0, %s61
    %s63 = sphi 0, %s61
    %s64 = sphi 0, %s63
    %s78 = sphi 0, %s64
    %s82 = sphi 0, %s82
    %s84 = sphi 0, %s82
    %s85 = sphi 0, %s84
    %s99 = sphi 0, %s85
    %s103 = sphi 0, %s103
    %s105 = sphi 0, %s103
    %s106 = sphi 0, %s105
    %s120 = sphi 0, %s106
    %s124 = sphi 0, %s124
    %s126 = sphi 0, %s124
    %s127 = sphi 0, %s126
    %s141 = sphi 0, %s127
    %s145 = sphi 0, %s145
    %s147 = sphi 0, %s145
    %s148 = sphi 0, %s147
    %s162 = sphi 0, %s148
    %s168 = sphi 0, %s170
    %s171 = sphi 0, %s168
    %s172 = sphi 0, %s171
    %s188 = sphi 0, %s172
    %s196 = sphi 0, %s198
    %s199 = sphi 0, %s196
    %s200 = sphi 0, %s199
    %s216 = sphi 0, %s200
  $region4: #{basic_layer_forward.7} parent=0 // loop_header_branch
    %16 = sbr.rel (%p14) target = $region8
  $region5: #{basic_layer_forward.7} parent=0 // loop_body
    %s18 = ssub.s32 %s13, 1
    %s19 = ssub.s32 %s13, 2
    %s26 = sadd.s32 1, %s21
    %p27 = scmp.ge.s32.totalorder %s26, 1
    %s28 = scalar_select %p27, 0, %s26
    %s29 = sadd.s32 1, %s20
    %s30 = scalar_select %p27, %s29, %s20
    %p31 = scmp.ge.s32.totalorder %s30, 2
    %s32 = scalar_select %p31, 0, %s30
    %s33 = ssub.s32 %s20, %s32
    %s34 = ssub.s32 %s21, %s28
    %s35 = sor.u32 %s33, %s34
    %p36 = scmp.eq.s32.totalorder %s35, 0
    %s38 = sadd.s32 %s37, 1
    %s39 = scalar_select %p36, %s37, %s38
    %p42 = pneg %p36
    %p43 = scmp.eq.s32.totalorder %s13, 1
    %p44 = por %p42, %p43
    %p45 = scmp.ne.s32.totalorder %s37, %s40
    %p46 = scmp.eq.s32.totalorder %s13, 0
    %p47 = por %p45, %p46
    %p48 = scmp.ne.s32.totalorder %s37, %s40
    %p49 = scmp.eq.s32.totalorder %s18, 1
    %p50 = por %p48, %p49
    %p51 = scmp.ne.s32.totalorder %s40, %s41
    %p52 = scmp.eq.s32.totalorder %s18, 0
    %p53 = por %p51, %p52
    %p54 = scmp.ne.s32.totalorder %s40, %s41
    %p55 = scmp.eq.s32.totalorder %s19, 1
    %p56 = por %p54, %p55
    %p58 = scmp.ne.s32.totalorder %s41, %s57
    %p59 = scmp.eq.s32.totalorder %s19, 0
    %p60 = por %p58, %p59
    %s62 = sadd.s32 %s61, 1
    %p65 = scmp.eq.s32.totalorder %s13, 1
    %p66 = scmp.ne.s32.totalorder %s61, %s63
    %p67 = scmp.eq.s32.totalorder %s13, 0
    %p68 = por %p66, %p67
    %p69 = scmp.ne.s32.totalorder %s61, %s63
    %p70 = scmp.eq.s32.totalorder %s18, 1
    %p71 = por %p69, %p70
    %p72 = scmp.ne.s32.totalorder %s63, %s64
    %p73 = scmp.eq.s32.totalorder %s18, 0
    %p74 = por %p72, %p73
    %p75 = scmp.ne.s32.totalorder %s63, %s64
    %p76 = scmp.eq.s32.totalorder %s19, 1
    %p77 = por %p75, %p76
    %p79 = scmp.ne.s32.totalorder %s64, %s78
    %p80 = scmp.eq.s32.totalorder %s19, 0
    %p81 = por %p79, %p80
    %s83 = sadd.s32 %s82, 1
    %p86 = scmp.eq.s32.totalorder %s13, 1
    %p87 = scmp.ne.s32.totalorder %s82, %s84
    %p88 = scmp.eq.s32.totalorder %s13, 0
    %p89 = por %p87, %p88
    %p90 = scmp.ne.s32.totalorder %s82, %s84
    %p91 = scmp.eq.s32.totalorder %s18, 1
    %p92 = por %p90, %p91
    %p93 = scmp.ne.s32.totalorder %s84, %s85
    %p94 = scmp.eq.s32.totalorder %s18, 0
    %p95 = por %p93, %p94
    %p96 = scmp.ne.s32.totalorder %s84, %s85
    %p97 = scmp.eq.s32.totalorder %s19, 1
    %p98 = por %p96, %p97
    %p100 = scmp.ne.s32.totalorder %s85, %s99
    %p101 = scmp.eq.s32.totalorder %s19, 0
    %p102 = por %p100, %p101
    %s104 = sadd.s32 %s103, 1
    %p107 = scmp.eq.s32.totalorder %s13, 1
    %p108 = scmp.ne.s32.totalorder %s103, %s105
    %p109 = scmp.eq.s32.totalorder %s13, 0
    %p110 = por %p108, %p109
    %p111 = scmp.ne.s32.totalorder %s103, %s105
    %p112 = scmp.eq.s32.totalorder %s18, 1
    %p113 = por %p111, %p112
    %p114 = scmp.ne.s32.totalorder %s105, %s106
    %p115 = scmp.eq.s32.totalorder %s18, 0
    %p116 = por %p114, %p115
    %p117 = scmp.ne.s32.totalorder %s105, %s106
    %p118 = scmp.eq.s32.totalorder %s19, 1
    %p119 = por %p117, %p118
    %p121 = scmp.ne.s32.totalorder %s106, %s120
    %p122 = scmp.eq.s32.totalorder %s19, 0
    %p123 = por %p121, %p122
    %s125 = sadd.s32 %s124, 1
    %p128 = scmp.eq.s32.totalorder %s13, 1
    %p129 = scmp.ne.s32.totalorder %s124, %s126
    %p130 = scmp.eq.s32.totalorder %s13, 0
    %p131 = por %p129, %p130
    %p132 = scmp.ne.s32.totalorder %s124, %s126
    %p133 = scmp.eq.s32.totalorder %s18, 1
    %p134 = por %p132, %p133
    %p135 = scmp.ne.s32.totalorder %s126, %s127
    %p136 = scmp.eq.s32.totalorder %s18, 0
    %p137 = por %p135, %p136
    %p138 = scmp.ne.s32.totalorder %s126, %s127
    %p139 = scmp.eq.s32.totalorder %s19, 1
    %p140 = por %p138, %p139
    %p142 = scmp.ne.s32.totalorder %s127, %s141
    %p143 = scmp.eq.s32.totalorder %s19, 0
    %p144 = por %p142, %p143
    %s146 = sadd.s32 %s145, 1
    %p149 = scmp.eq.s32.totalorder %s13, 1
    %p150 = scmp.ne.s32.totalorder %s145, %s147
    %p151 = scmp.eq.s32.totalorder %s13, 0
    %p152 = por %p150, %p151
    %p153 = scmp.ne.s32.totalorder %s145, %s147
    %p154 = scmp.eq.s32.totalorder %s18, 1
    %p155 = por %p153, %p154
    %p156 = scmp.ne.s32.totalorder %s147, %s148
    %p157 = scmp.eq.s32.totalorder %s18, 0
    %p158 = por %p156, %p157
    %p159 = scmp.ne.s32.totalorder %s147, %s148
    %p160 = scmp.eq.s32.totalorder %s19, 1
    %p161 = por %p159, %p160
    %p163 = scmp.ne.s32.totalorder %s148, %s162
    %p164 = scmp.eq.s32.totalorder %s19, 0
    %p165 = por %p163, %p164
    %s166 = ssub.s32 %s21, %s28
    %p167 = scmp.eq.s32.totalorder %s166, 0
    %s169 = sadd.s32 %s168, 1
    %s170 = scalar_select %p167, %s168, %s169
    %p173 = pneg %p167
    %p174 = scmp.eq.s32.totalorder %s13, 1
    %p175 = por %p173, %p174
    %p176 = scmp.ne.s32.totalorder %s168, %s171
    %p177 = scmp.eq.s32.totalorder %s13, 0
    %p178 = por %p176, %p177
    %p179 = scmp.ne.s32.totalorder %s168, %s171
    %p180 = scmp.eq.s32.totalorder %s18, 1
    %p181 = por %p179, %p180
    %p182 = scmp.ne.s32.totalorder %s171, %s172
    %p183 = scmp.eq.s32.totalorder %s18, 0
    %p184 = por %p182, %p183
    %p185 = scmp.ne.s32.totalorder %s171, %s172
    %p186 = scmp.eq.s32.totalorder %s19, 1
    %p187 = por %p185, %p186
    %p189 = scmp.ne.s32.totalorder %s172, %s188
    %p190 = scmp.eq.s32.totalorder %s19, 0
    %p191 = por %p189, %p190
    %s192 = ssub.s32 %s20, %s32
    %s193 = ssub.s32 %s21, %s28
    %s194 = sor.u32 %s192, %s193
    %p195 = scmp.eq.s32.totalorder %s194, 0
    %s197 = sadd.s32 %s196, 1
    %s198 = scalar_select %p195, %s196, %s197
    %p201 = pneg %p195
    %p202 = scmp.eq.s32.totalorder %s13, 1
    %p203 = por %p201, %p202
    %p204 = scmp.ne.s32.totalorder %s196, %s199
    %p205 = scmp.eq.s32.totalorder %s13, 0
    %p206 = por %p204, %p205
    %p207 = scmp.ne.s32.totalorder %s196, %s199
    %p208 = scmp.eq.s32.totalorder %s18, 1
    %p209 = por %p207, %p208
    %p210 = scmp.ne.s32.totalorder %s199, %s200
    %p211 = scmp.eq.s32.totalorder %s18, 0
    %p212 = por %p210, %p211
    %p213 = scmp.ne.s32.totalorder %s199, %s200
    %p214 = scmp.eq.s32.totalorder %s19, 1
    %p215 = por %p213, %p214
    %p217 = scmp.ne.s32.totalorder %s200, %s216
    %p218 = scmp.eq.s32.totalorder %s19, 0
    %p219 = por %p217, %p218
    %p220 = scmp.le.s32.totalorder 1, %s13
    %p221 = scmp.lt.s32.totalorder %s13, 3
    %p222 = pnand %p220, %p221
    %p223 = pneg %p222
    // Predicated region
    $region9: #{basic_layer_forward.7} parent=5 // pred_check
      _
    $region10: #{basic_layer_forward.7} parent=5 // pred_check_branch
      %225 = sbr.rel (%p222) target = $region12
    $region11: #{basic_layer_forward.7} parent=5 // pred_region
      %s226 = ssub.s32 %s13, 1
      // Predicated region
      $region13: #{basic_layer_forward.7} parent=11 // pred_check
        %p227 = pneg %p74
      $region14: #{basic_layer_forward.7} parent=11 // pred_check_branch
        %229 = sbr.rel (%p227) target = $region16
      $region15: #{basic_layer_forward.7} parent=11 // pred_region
        _
      $region16: #{basic_layer_forward.7} parent=11 // pred_fallthru
        _
      // Predicated region
      $region17: #{basic_layer_forward.7} parent=11 // pred_check
        %p230 = pneg %p95
      $region18: #{basic_layer_forward.7} parent=11 // pred_check_branch
        %232 = sbr.rel (%p230) target = $region20
      $region19: #{basic_layer_forward.7} parent=11 // pred_region
        _
      $region20: #{basic_layer_forward.7} parent=11 // pred_fallthru
        _
      // Predicated region
      $region21: #{basic_layer_forward.7} parent=11 // pred_check
        %p233 = pneg %p116
      $region22: #{basic_layer_forward.7} parent=11 // pred_check_branch
        %235 = sbr.rel (%p233) target = $region24
      $region23: #{basic_layer_forward.7} parent=11 // pred_region
        _
      $region24: #{basic_layer_forward.7} parent=11 // pred_fallthru
        _
      // Predicated region
      $region25: #{basic_layer_forward.7} parent=11 // pred_check
        %p236 = pneg %p137
      $region26: #{basic_layer_forward.7} parent=11 // pred_check_branch
        %238 = sbr.rel (%p236) target = $region28
      $region27: #{basic_layer_forward.7} parent=11 // pred_region
        _
      $region28: #{basic_layer_forward.7} parent=11 // pred_fallthru
        _
      // Predicated region
      $region29: #{basic_layer_forward.7} parent=11 // pred_check
        %p239 = pneg %p158
      $region30: #{basic_layer_forward.7} parent=11 // pred_check_branch
        %241 = sbr.rel (%p239) target = $region32
      $region31: #{basic_layer_forward.7} parent=11 // pred_region
        _
      $region32: #{basic_layer_forward.7} parent=11 // pred_fallthru
        _
      // Predicated region
      $region33: #{basic_layer_forward.7} parent=11 // pred_check
        %p242 = pneg %p184
      $region34: #{basic_layer_forward.7} parent=11 // pred_check_branch
        %244 = sbr.rel (%p242) target = $region36
      $region35: #{basic_layer_forward.7} parent=11 // pred_region
        %s245 = smul.u32 4, %s23
        %p246 = scmp.lt.s32.totalorder %s245, 3
        %s247 = scalar_select %p246, %s245, 3
        %s248 = smul.addr %s247, 2
        %s249 = smul.addr %s248, 8
        %s250 = scalar_lea.vmem %s6, %s249
        %s251 = smul.u32 4, %s23
      $region36: #{basic_layer_forward.7} parent=11 // pred_fallthru
        _
    $region12: #{basic_layer_forward.7} parent=5 // pred_fallthru
      _
    %p252 = scmp.lt.s32.totalorder %s13, 2
    // Predicated region
    $region37: #{basic_layer_forward.7} parent=5 // pred_check
      %p253 = pneg %p252
    $region38: #{basic_layer_forward.7} parent=5 // pred_check_branch
      %255 = sbr.rel (%p253) target = $region40
    $region39: #{basic_layer_forward.7} parent=5 // pred_region
      // Predicated region
      $region41: #{basic_layer_forward.7} parent=39 // pred_check
        %p256 = pneg %p47
      $region42: #{basic_layer_forward.7} parent=39 // pred_check_branch
        %258 = sbr.rel (%p256) target = $region44
      $region43: #{basic_layer_forward.7} parent=39 // pred_region
        %s259 = smul.u32 4, %s21
        %p260 = scmp.lt.s32.totalorder %s20, 1
        %s261 = scalar_select %p260, %s20, 1
        %p262 = scmp.lt.s32.totalorder %s259, 3
        %s263 = scalar_select %p262, %s259, 3
        %s264 = smul.addr %s263, 2
        %s265 = smul.addr %s261, 8
        %s266 = sadd.s32 %s264, %s265
        %s267 = smul.addr %s266, 8
        %s268 = scalar_lea.vmem %s0, %s267
        %s269 = smul.u32 4, %s21
      $region44: #{basic_layer_forward.7} parent=39 // pred_fallthru
        _
    $region40: #{basic_layer_forward.7} parent=5 // pred_fallthru
      _
    %p270 = scmp.le.s32.totalorder 1, %s13
    %p271 = scmp.lt.s32.totalorder %s13, 3
    %p272 = pnand %p270, %p271
    %p273 = pneg %p272
    // Predicated region
    $region45: #{basic_layer_forward.7} parent=5 // pred_check
      _
    $region46: #{basic_layer_forward.7} parent=5 // pred_check_branch
      %275 = sbr.rel (%p272) target = $region48
    $region47: #{basic_layer_forward.7} parent=5 // pred_region
      %s276 = ssub.s32 %s13, 1
      %s277 = smul.u32 4, %s23
      %p278 = scmp.lt.s32.totalorder %s22, 1
      %s279 = scalar_select %p278, %s22, 1
      %p280 = scmp.lt.s32.totalorder %s277, 3
      %s281 = scalar_select %p280, %s277, 3
      %s282 = smul.addr %s281, 2
      %s283 = smul.addr %s279, 8
      %s284 = sadd.s32 %s282, %s283
      %s285 = smul.addr %s284, 8
      %s286 = scalar_lea.vmem %s0, %s285
      %p287 = pneg %p53
      %p288 = pneg %p50
      %p289 = pneg %p74
      %p290 = pneg %p71
      %p291 = pneg %p95
      %p292 = pneg %p92
      %p293 = pneg %p116
      %p294 = pneg %p113
      %p295 = pneg %p137
      %p296 = pneg %p134
      %p297 = pneg %p158
      %p298 = pneg %p155
      %s299 = smul.u32 4, %s23
      %p300 = scmp.lt.s32.totalorder %s299, 3
      %s301 = scalar_select %p300, %s299, 3
      %s302 = smul.addr %s301, 2
      %s303 = smul.addr %s302, 8
      %s304 = scalar_lea.vmem %s6, %s303
      %p305 = pneg %p184
      %p306 = pneg %p181
      %p307 = pneg %p212
      %p308 = pneg %p209
      %s309 = smul.u32 4, %s23
      %p310 = scmp.lt.s32.totalorder %s22, 1
      %s311 = scalar_select %p310, %s22, 1
      %p312 = scmp.lt.s32.totalorder %s309, 3
      %s313 = scalar_select %p312, %s309, 3
      %s314 = smul.addr %s313, 2
      %s315 = smul.addr %s311, 8
      %s316 = sadd.s32 %s314, %s315
      %s317 = smul.addr %s316, 8
      %s318 = scalar_lea.vmem %s7, %s317
      %s319 = smul.u32 4, %s23
      %p320 = scmp.lt.s32.totalorder %s22, 1
      %s321 = scalar_select %p320, %s22, 1
      %p322 = scmp.lt.s32.totalorder %s319, 3
      %s323 = scalar_select %p322, %s319, 3
      %s324 = smul.addr %s323, 2
      %s325 = smul.addr %s321, 8
      %s326 = sadd.s32 %s324, %s325
      %s327 = smul.addr %s326, 8
      %s328 = scalar_lea.vmem %s0, %s327
      %s329 = smul.u32 4, %s23
      %s330 = smul.u32 4, %s23
      %p331 = scmp.lt.s32.totalorder %s330, 3
      %s332 = scalar_select %p331, %s330, 3
      %s333 = smul.addr %s332, 2
      %s334 = smul.addr %s333, 8
      %s335 = scalar_lea.vmem %s6, %s334
      %s336 = smul.u32 4, %s23
      %s337 = smul.u32 4, %s23
      %p338 = scmp.lt.s32.totalorder %s22, 1
      %s339 = scalar_select %p338, %s22, 1
      %p340 = scmp.lt.s32.totalorder %s337, 3
      %s341 = scalar_select %p340, %s337, 3
      %s342 = smul.addr %s341, 2
      %s343 = smul.addr %s339, 8
      %s344 = sadd.s32 %s342, %s343
      %s345 = smul.addr %s344, 8
      %s346 = scalar_lea.vmem %s7, %s345
      %s347 = smul.u32 4, %s23
      %v348 = vld [vmem:[%s328] sm:$0xff]
      %v349 = vld [vmem:[%s328 + $0x8] sm:$0xff]
      %v350 = vld [vmem:[%s328 + $0x10] sm:$0xff]
      %v351 = vld [vmem:[%s328 + $0x18] sm:$0xff]
      %v352 = vld [vmem:[%s328 + $0x20] sm:$0xff]
      %v353 = vld [vmem:[%s328 + $0x28] sm:$0xff]
      %v354 = vld [vmem:[%s328 + $0x30] sm:$0xff]
      %v355 = vld [vmem:[%s328 + $0x38] sm:$0xff]
      %v356 = vld [vmem:[%s1] sm:$0xff]
      %v357 = vld [vmem:[%s1 + $0x8] sm:$0xff]
      %v358 = vld [vmem:[%s1 + $0x10] sm:$0xff]
      %v359 = vld [vmem:[%s1 + $0x18] sm:$0xff]
      %v360 = vld [vmem:[%s2] sm:$0x1]
      %v362 = vperm.slane %v360, 0
      %vm364 = vcmask 261120
      %v366 = vsel %vm364, %v348, 0
      %v369 = vsel %vm364, %v349, 0
      %v372 = vsel %vm364, %v350, 0
      %v375 = vsel %vm364, %v351, 0
      %v378 = vsel %vm364, %v352, 0
      %v381 = vsel %vm364, %v353, 0
      %v384 = vsel %vm364, %v354, 0
      %v387 = vsel %vm364, %v355, 0
      %389 = vmatpush.msra.mxu0 0.0
      %390 = vmatpush.msra.mxu0 0.0
      %391 = vmatpush.msra.mxu0 0.0
      %392 = vmatpush.msra.mxu0 0.0
      %393 = vmatpush.msra.mxu0 0.0
      %394 = vmatpush.msra.mxu0 0.0
      %395 = vmatpush.msra.mxu0 0.0
      %396 = vmatpush.msra.mxu0 0.0
      %397 = vmatpush.msra.mxu0 0.0
      %398 = vmatpush.msra.mxu0 0.0
      %399 = vmatpush.msra.mxu0 0.0
      %400 = vmatpush.msra.mxu0 0.0
      %401 = vmatpush.msra.mxu0 %v359
      %402 = vmatpush.msra.mxu0 %v358
      %403 = vmatpush.msra.mxu0 %v357
      %404 = vmatpush.msra.mxu0 %v356
      %405 = vmatmul.f32.gmra.mxu0 %v366
      %v406 = vpop.f32.mrf.mxu0
      %v407 = vadd.f32 %v362, %v406
      %408 = vmatmul.f32.gmra.mxu0 %v369
      %v409 = vpop.f32.mrf.mxu0
      %v410 = vadd.f32 %v362, %v409
      %411 = vmatmul.f32.gmra.mxu0 %v372
      %v412 = vpop.f32.mrf.mxu0
      %v413 = vadd.f32 %v362, %v412
      %414 = vmatmul.f32.gmra.mxu0 %v375
      %v415 = vpop.f32.mrf.mxu0
      %v416 = vadd.f32 %v362, %v415
      %417 = vmatmul.f32.gmra.mxu0 %v378
      %v418 = vpop.f32.mrf.mxu0
      %v419 = vadd.f32 %v362, %v418
      %420 = vmatmul.f32.gmra.mxu0 %v381
      %v421 = vpop.f32.mrf.mxu0
      %v422 = vadd.f32 %v362, %v421
      %423 = vmatmul.f32.gmra.mxu0 %v384
      %v424 = vpop.f32.mrf.mxu0
      %v425 = vadd.f32 %v362, %v424
      %426 = vmatmul.f32.gmra.mxu0 %v387
      %v427 = vpop.f32.mrf.mxu0
      %v428 = vadd.f32 %v362, %v427
      %429 = vdwg.mxu0
      %v430 = vld [vmem:[%s335] sm:$0xff]
      %v431 = vld [vmem:[%s335 + $0x8] sm:$0xff]
      %v432 = vld [vmem:[%s335 + $0x10] sm:$0xff]
      %v433 = vld [vmem:[%s335 + $0x18] sm:$0xff]
      %v434 = vld [vmem:[%s335 + $0x20] sm:$0xff]
      %v435 = vld [vmem:[%s335 + $0x28] sm:$0xff]
      %v436 = vld [vmem:[%s335 + $0x30] sm:$0xff]
      %v437 = vld [vmem:[%s335 + $0x38] sm:$0xff]
      %v438 = vmul.f32 %v407, 0.35355338
      %v439 = vmul.f32 %v410, 0.35355338
      %v440 = vmul.f32 %v413, 0.35355338
      %v441 = vmul.f32 %v416, 0.35355338
      %v442 = vmul.f32 %v419, 0.35355338
      %v443 = vmul.f32 %v422, 0.35355338
      %v444 = vmul.f32 %v425, 0.35355338
      %v445 = vmul.f32 %v428, 0.35355338
      %v446 = vld [vmem:[%s5] sm:$0xff]
      %v447 = vld [vmem:[%s5 + $0x8] sm:$0xff]
      %450 = vrot.lane.b32.xlu0 %v407, 96
      %v451 = vpop.permute.xlu0 %450
      %452 = vrot.lane.b32.xlu0 %v410, 96
      %v453 = vpop.permute.xlu0 %452
      %vm454 = vcmask 64512
      %v456 = vsel %vm454, %v438, 0
      %v459 = vsel %vm454, %v439, 0
      %v461 = vsel %vm454, %v451, 0
      %v463 = vsel %vm454, %v453, 0
      %465 = vmatpush.xpose.msra.mxu0 0.0
      %466 = vmatpush.xpose.msra.mxu0 0.0
      %467 = vmatpush.xpose.msra.mxu0 0.0
      %468 = vmatpush.xpose.msra.mxu0 0.0
      %469 = vmatpush.xpose.msra.mxu0 0.0
      %470 = vmatpush.xpose.msra.mxu0 0.0
      %471 = vmatpush.xpose.msra.mxu0 0.0
      %472 = vmatpush.xpose.msra.mxu0 0.0
      %473 = vmatpush.xpose.msra.mxu0 0.0
      %474 = vmatpush.xpose.msra.mxu0 0.0
      %475 = vmatpush.xpose.msra.mxu0 0.0
      %476 = vmatpush.xpose.msra.mxu0 0.0
      %477 = vmatpush.xpose.msra.mxu0 0.0
      %478 = vmatpush.xpose.msra.mxu0 0.0
      %479 = vmatpush.xpose.msra.mxu0 %v463
      %480 = vmatpush.xpose.msra.mxu0 %v461
      %481 = vmatmul.f32.gmra.mxu0 %v456
      %v482 = vpop.f32.mrf.mxu0
      %v483 = vadd.f32 %v446, %v482
      %484 = vmatmul.f32.gmra.mxu0 %v459
      %v485 = vpop.f32.mrf.mxu0
      %v486 = vadd.f32 %v447, %v485
      %487 = vdwg.mxu0
      %490 = vrot.lane.b32.xlu0 %v413, 96
      %v491 = vpop.permute.xlu0 %490
      %492 = vrot.lane.b32.xlu0 %v416, 96
      %v493 = vpop.permute.xlu0 %492
      %v495 = vsel %vm454, %v440, 0
      %v498 = vsel %vm454, %v441, 0
      %v500 = vsel %vm454, %v491, 0
      %v502 = vsel %vm454, %v493, 0
      %504 = vmatpush.xpose.msra.mxu0 0.0
      %505 = vmatpush.xpose.msra.mxu0 0.0
      %506 = vmatpush.xpose.msra.mxu0 0.0
      %507 = vmatpush.xpose.msra.mxu0 0.0
      %508 = vmatpush.xpose.msra.mxu0 0.0
      %509 = vmatpush.xpose.msra.mxu0 0.0
      %510 = vmatpush.xpose.msra.mxu0 0.0
      %511 = vmatpush.xpose.msra.mxu0 0.0
      %512 = vmatpush.xpose.msra.mxu0 0.0
      %513 = vmatpush.xpose.msra.mxu0 0.0
      %514 = vmatpush.xpose.msra.mxu0 0.0
      %515 = vmatpush.xpose.msra.mxu0 0.0
      %516 = vmatpush.xpose.msra.mxu0 0.0
      %517 = vmatpush.xpose.msra.mxu0 0.0
      %518 = vmatpush.xpose.msra.mxu0 %v502
      %519 = vmatpush.xpose.msra.mxu0 %v500
      %520 = vmatmul.f32.gmra.mxu0 %v495
      %v521 = vpop.f32.mrf.mxu0
      %v522 = vadd.f32 %v446, %v521
      %523 = vmatmul.f32.gmra.mxu0 %v498
      %v524 = vpop.f32.mrf.mxu0
      %v525 = vadd.f32 %v447, %v524
      %526 = vdwg.mxu0
      %529 = vrot.lane.b32.xlu0 %v419, 96
      %v530 = vpop.permute.xlu0 %529
      %531 = vrot.lane.b32.xlu0 %v422, 96
      %v532 = vpop.permute.xlu0 %531
      %v534 = vsel %vm454, %v442, 0
      %v537 = vsel %vm454, %v443, 0
      %v539 = vsel %vm454, %v530, 0
      %v541 = vsel %vm454, %v532, 0
      %543 = vmatpush.xpose.msra.mxu0 0.0
      %544 = vmatpush.xpose.msra.mxu0 0.0
      %545 = vmatpush.xpose.msra.mxu0 0.0
      %546 = vmatpush.xpose.msra.mxu0 0.0
      %547 = vmatpush.xpose.msra.mxu0 0.0
      %548 = vmatpush.xpose.msra.mxu0 0.0
      %549 = vmatpush.xpose.msra.mxu0 0.0
      %550 = vmatpush.xpose.msra.mxu0 0.0
      %551 = vmatpush.xpose.msra.mxu0 0.0
      %552 = vmatpush.xpose.msra.mxu0 0.0
      %553 = vmatpush.xpose.msra.mxu0 0.0
      %554 = vmatpush.xpose.msra.mxu0 0.0
      %555 = vmatpush.xpose.msra.mxu0 0.0
      %556 = vmatpush.xpose.msra.mxu0 0.0
      %557 = vmatpush.xpose.msra.mxu0 %v541
      %558 = vmatpush.xpose.msra.mxu0 %v539
      %559 = vmatmul.f32.gmra.mxu0 %v534
      %v560 = vpop.f32.mrf.mxu0
      %v561 = vadd.f32 %v446, %v560
      %562 = vmatmul.f32.gmra.mxu0 %v537
      %v563 = vpop.f32.mrf.mxu0
      %v564 = vadd.f32 %v447, %v563
      %565 = vdwg.mxu0
      %568 = vrot.lane.b32.xlu0 %v425, 96
      %v569 = vpop.permute.xlu0 %568
      %570 = vrot.lane.b32.xlu0 %v428, 96
      %v571 = vpop.permute.xlu0 %570
      %v573 = vsel %vm454, %v444, 0
      %v576 = vsel %vm454, %v445, 0
      %v578 = vsel %vm454, %v569, 0
      %v580 = vsel %vm454, %v571, 0
      %582 = vmatpush.xpose.msra.mxu0 0.0
      %583 = vmatpush.xpose.msra.mxu0 0.0
      %584 = vmatpush.xpose.msra.mxu0 0.0
      %585 = vmatpush.xpose.msra.mxu0 0.0
      %586 = vmatpush.xpose.msra.mxu0 0.0
      %587 = vmatpush.xpose.msra.mxu0 0.0
      %588 = vmatpush.xpose.msra.mxu0 0.0
      %589 = vmatpush.xpose.msra.mxu0 0.0
      %590 = vmatpush.xpose.msra.mxu0 0.0
      %591 = vmatpush.xpose.msra.mxu0 0.0
      %592 = vmatpush.xpose.msra.mxu0 0.0
      %593 = vmatpush.xpose.msra.mxu0 0.0
      %594 = vmatpush.xpose.msra.mxu0 0.0
      %595 = vmatpush.xpose.msra.mxu0 0.0
      %596 = vmatpush.xpose.msra.mxu0 %v580
      %597 = vmatpush.xpose.msra.mxu0 %v578
      %598 = vmatmul.f32.gmra.mxu0 %v573
      %v599 = vpop.f32.mrf.mxu0
      %v600 = vadd.f32 %v446, %v599
      %601 = vmatmul.f32.gmra.mxu0 %v576
      %v602 = vpop.f32.mrf.mxu0
      %v603 = vadd.f32 %v447, %v602
      %604 = vdwg.mxu0
      %v605 = vadd.f32 %v483, %v430
      %v606 = vadd.f32 %v486, %v431
      %v607 = vadd.f32 %v522, %v432
      %v608 = vadd.f32 %v525, %v433
      %v609 = vadd.f32 %v561, %v434
      %v610 = vadd.f32 %v564, %v435
      %v611 = vadd.f32 %v600, %v436
      %v612 = vadd.f32 %v603, %v437
      %vm613 = vcmask 130048
      %v614 = vsel %vm613, %v605, -inf
      %615 = vmax.xlane.f32.xlu0 %v614
      %v616 = vpop.xlane.xlu0 %615
      %v617 = vsel %vm613, %v606, -inf
      %618 = vmax.xlane.f32.xlu0 %v617
      %v619 = vpop.xlane.xlu0 %618
      %v620 = vsel %vm613, %v607, -inf
      %621 = vmax.xlane.f32.xlu0 %v620
      %v622 = vpop.xlane.xlu0 %621
      %v623 = vsel %vm613, %v608, -inf
      %624 = vmax.xlane.f32.xlu0 %v623
      %v625 = vpop.xlane.xlu0 %624
      %v626 = vsel %vm613, %v609, -inf
      %627 = vmax.xlane.f32.xlu0 %v626
      %v628 = vpop.xlane.xlu0 %627
      %v629 = vsel %vm613, %v610, -inf
      %630 = vmax.xlane.f32.xlu0 %v629
      %v631 = vpop.xlane.xlu0 %630
      %v632 = vsel %vm613, %v611, -inf
      %633 = vmax.xlane.f32.xlu0 %v632
      %v634 = vpop.xlane.xlu0 %633
      %v635 = vsel %vm613, %v612, -inf
      %636 = vmax.xlane.f32.xlu0 %v635
      %v637 = vpop.xlane.xlu0 %636
      %v638 = vsub.f32 %v605, %v616
      %v639 = vsub.f32 %v606, %v619
      %v640 = vsub.f32 %v607, %v622
      %v641 = vsub.f32 %v608, %v625
      %v642 = vsub.f32 %v609, %v628
      %v643 = vsub.f32 %v610, %v631
      %v644 = vsub.f32 %v611, %v634
      %v645 = vsub.f32 %v612, %v637
      %v646 = vmul.f32 %v638, 1.442695
      %v647 = vpow.pop %v646
      %v648 = vmul.f32 %v639, 1.442695
      %v649 = vpow.pop %v648
      %v650 = vmul.f32 %v640, 1.442695
      %v651 = vpow.pop %v650
      %v652 = vmul.f32 %v641, 1.442695
      %v653 = vpow.pop %v652
      %v654 = vmul.f32 %v642, 1.442695
      %v655 = vpow.pop %v654
      %v656 = vmul.f32 %v643, 1.442695
      %v657 = vpow.pop %v656
      %v658 = vmul.f32 %v644, 1.442695
      %v659 = vpow.pop %v658
      %v660 = vmul.f32 %v645, 1.442695
      %v661 = vpow.pop %v660
      %v662 = vsel %vm613, %v647, 0.0
      %663 = vadd.xlane.f32.xlu0 %v662
      %v664 = vpop.xlane.xlu0 %663
      %v665 = vsel %vm613, %v649, 0.0
      %666 = vadd.xlane.f32.xlu0 %v665
      %v667 = vpop.xlane.xlu0 %666
      %v668 = vsel %vm613, %v651, 0.0
      %669 = vadd.xlane.f32.xlu0 %v668
      %v670 = vpop.xlane.xlu0 %669
      %v671 = vsel %vm613, %v653, 0.0
      %672 = vadd.xlane.f32.xlu0 %v671
      %v673 = vpop.xlane.xlu0 %672
      %v674 = vsel %vm613, %v655, 0.0
      %675 = vadd.xlane.f32.xlu0 %v674
      %v676 = vpop.xlane.xlu0 %675
      %v677 = vsel %vm613, %v657, 0.0
      %678 = vadd.xlane.f32.xlu0 %v677
      %v679 = vpop.xlane.xlu0 %678
      %v680 = vsel %vm613, %v659, 0.0
      %681 = vadd.xlane.f32.xlu0 %v680
      %v682 = vpop.xlane.xlu0 %681
      %v683 = vsel %vm613, %v661, 0.0
      %684 = vadd.xlane.f32.xlu0 %v683
      %v685 = vpop.xlane.xlu0 %684
      %v686 = vrcp.pop %v664
      %v687 = vmul.f32 %v664, %v686
      %v688 = vsub.f32 1.0, %v687
      %v689 = vmul.f32 %v686, %v688
      %v690 = vadd.f32 %v686, %v689
      %vm691 = vweird.f32 %v664
      %vm692 = vweird.f32 %v686
      %vm693 = vmor %vm691, %vm692
      %v694 = vsel %vm693, %v686, %v690
      %v695 = vand.u32 2147483647, %v664
      %vm696 = vcmp.eq.f32.partialorder %v695, 8.507059e+37
      %v697 = vand.u32 %v664, 2147483648
      %v698 = vor.u32 1.1754944e-38, %v697
      %v699 = vsel %vm696, %v698, %v694
      %v700 = vmul.f32 %v647, %v699
      %v701 = vrcp.pop %v667
      %v702 = vmul.f32 %v667, %v701
      %v703 = vsub.f32 1.0, %v702
      %v704 = vmul.f32 %v701, %v703
      %v705 = vadd.f32 %v701, %v704
      %vm706 = vweird.f32 %v667
      %vm707 = vweird.f32 %v701
      %vm708 = vmor %vm706, %vm707
      %v709 = vsel %vm708, %v701, %v705
      %v710 = vand.u32 2147483647, %v667
      %vm711 = vcmp.eq.f32.partialorder %v710, 8.507059e+37
      %v712 = vand.u32 %v667, 2147483648
      %v713 = vor.u32 1.1754944e-38, %v712
      %v714 = vsel %vm711, %v713, %v709
      %v715 = vmul.f32 %v649, %v714
      %v716 = vrcp.pop %v670
      %v717 = vmul.f32 %v670, %v716
      %v718 = vsub.f32 1.0, %v717
      %v719 = vmul.f32 %v716, %v718
      %v720 = vadd.f32 %v716, %v719
      %vm721 = vweird.f32 %v670
      %vm722 = vweird.f32 %v716
      %vm723 = vmor %vm721, %vm722
      %v724 = vsel %vm723, %v716, %v720
      %v725 = vand.u32 2147483647, %v670
      %vm726 = vcmp.eq.f32.partialorder %v725, 8.507059e+37
      %v727 = vand.u32 %v670, 2147483648
      %v728 = vor.u32 1.1754944e-38, %v727
      %v729 = vsel %vm726, %v728, %v724
      %v730 = vmul.f32 %v651, %v729
      %v731 = vrcp.pop %v673
      %v732 = vmul.f32 %v673, %v731
      %v733 = vsub.f32 1.0, %v732
      %v734 = vmul.f32 %v731, %v733
      %v735 = vadd.f32 %v731, %v734
      %vm736 = vweird.f32 %v673
      %vm737 = vweird.f32 %v731
      %vm738 = vmor %vm736, %vm737
      %v739 = vsel %vm738, %v731, %v735
      %v740 = vand.u32 2147483647, %v673
      %vm741 = vcmp.eq.f32.partialorder %v740, 8.507059e+37
      %v742 = vand.u32 %v673, 2147483648
      %v743 = vor.u32 1.1754944e-38, %v742
      %v744 = vsel %vm741, %v743, %v739
      %v745 = vmul.f32 %v653, %v744
      %v746 = vrcp.pop %v676
      %v747 = vmul.f32 %v676, %v746
      %v748 = vsub.f32 1.0, %v747
      %v749 = vmul.f32 %v746, %v748
      %v750 = vadd.f32 %v746, %v749
      %vm751 = vweird.f32 %v676
      %vm752 = vweird.f32 %v746
      %vm753 = vmor %vm751, %vm752
      %v754 = vsel %vm753, %v746, %v750
      %v755 = vand.u32 2147483647, %v676
      %vm756 = vcmp.eq.f32.partialorder %v755, 8.507059e+37
      %v757 = vand.u32 %v676, 2147483648
      %v758 = vor.u32 1.1754944e-38, %v757
      %v759 = vsel %vm756, %v758, %v754
      %v760 = vmul.f32 %v655, %v759
      %v761 = vrcp.pop %v679
      %v762 = vmul.f32 %v679, %v761
      %v763 = vsub.f32 1.0, %v762
      %v764 = vmul.f32 %v761, %v763
      %v765 = vadd.f32 %v761, %v764
      %vm766 = vweird.f32 %v679
      %vm767 = vweird.f32 %v761
      %vm768 = vmor %vm766, %vm767
      %v769 = vsel %vm768, %v761, %v765
      %v770 = vand.u32 2147483647, %v679
      %vm771 = vcmp.eq.f32.partialorder %v770, 8.507059e+37
      %v772 = vand.u32 %v679, 2147483648
      %v773 = vor.u32 1.1754944e-38, %v772
      %v774 = vsel %vm771, %v773, %v769
      %v775 = vmul.f32 %v657, %v774
      %v776 = vrcp.pop %v682
      %v777 = vmul.f32 %v682, %v776
      %v778 = vsub.f32 1.0, %v777
      %v779 = vmul.f32 %v776, %v778
      %v780 = vadd.f32 %v776, %v779
      %vm781 = vweird.f32 %v682
      %vm782 = vweird.f32 %v776
      %vm783 = vmor %vm781, %vm782
      %v784 = vsel %vm783, %v776, %v780
      %v785 = vand.u32 2147483647, %v682
      %vm786 = vcmp.eq.f32.partialorder %v785, 8.507059e+37
      %v787 = vand.u32 %v682, 2147483648
      %v788 = vor.u32 1.1754944e-38, %v787
      %v789 = vsel %vm786, %v788, %v784
      %v790 = vmul.f32 %v659, %v789
      %v791 = vrcp.pop %v685
      %v792 = vmul.f32 %v685, %v791
      %v793 = vsub.f32 1.0, %v792
      %v794 = vmul.f32 %v791, %v793
      %v795 = vadd.f32 %v791, %v794
      %vm796 = vweird.f32 %v685
      %vm797 = vweird.f32 %v791
      %vm798 = vmor %vm796, %vm797
      %v799 = vsel %vm798, %v791, %v795
      %v800 = vand.u32 2147483647, %v685
      %vm801 = vcmp.eq.f32.partialorder %v800, 8.507059e+37
      %v802 = vand.u32 %v685, 2147483648
      %v803 = vor.u32 1.1754944e-38, %v802
      %v804 = vsel %vm801, %v803, %v799
      %v805 = vmul.f32 %v661, %v804
      %806 = vrot.lane.b32.xlu0 %v407, 64
      %v807 = vpop.permute.xlu0 %806
      %808 = vrot.lane.b32.xlu0 %v410, 64
      %v809 = vpop.permute.xlu0 %808
      %v813 = vsel %vm613, %v700, 0
      %v816 = vsel %vm613, %v715, 0
      %818 = vmatpush.msra.mxu0 0.0
      %819 = vmatpush.msra.mxu0 0.0
      %820 = vmatpush.msra.mxu0 0.0
      %821 = vmatpush.msra.mxu0 0.0
      %822 = vmatpush.msra.mxu0 0.0
      %823 = vmatpush.msra.mxu0 0.0
      %824 = vmatpush.msra.mxu0 0.0
      %825 = vmatpush.msra.mxu0 0.0
      %826 = vmatpush.msra.mxu0 0.0
      %827 = vmatpush.msra.mxu0 0.0
      %828 = vmatpush.msra.mxu0 0.0
      %829 = vmatpush.msra.mxu0 0.0
      %830 = vmatpush.msra.mxu0 0.0
      %831 = vmatpush.msra.mxu0 0.0
      %832 = vmatpush.msra.mxu0 %v809
      %833 = vmatpush.msra.mxu0 %v807
      %834 = vmatmul.f32.gmra.mxu0 %v813
      %v835 = vpop.f32.mrf.mxu0
      %v836 = vadd.f32 0.0, %v835
      %837 = vmatmul.f32.gmra.mxu0 %v816
      %v838 = vpop.f32.mrf.mxu0
      %v839 = vadd.f32 0.0, %v838
      %840 = vdwg.mxu0
      %841 = vrot.lane.b32.xlu0 %v413, 64
      %v842 = vpop.permute.xlu0 %841
      %843 = vrot.lane.b32.xlu0 %v416, 64
      %v844 = vpop.permute.xlu0 %843
      %v848 = vsel %vm613, %v730, 0
      %v851 = vsel %vm613, %v745, 0
      %853 = vmatpush.msra.mxu0 0.0
      %854 = vmatpush.msra.mxu0 0.0
      %855 = vmatpush.msra.mxu0 0.0
      %856 = vmatpush.msra.mxu0 0.0
      %857 = vmatpush.msra.mxu0 0.0
      %858 = vmatpush.msra.mxu0 0.0
      %859 = vmatpush.msra.mxu0 0.0
      %860 = vmatpush.msra.mxu0 0.0
      %861 = vmatpush.msra.mxu0 0.0
      %862 = vmatpush.msra.mxu0 0.0
      %863 = vmatpush.msra.mxu0 0.0
      %864 = vmatpush.msra.mxu0 0.0
      %865 = vmatpush.msra.mxu0 0.0
      %866 = vmatpush.msra.mxu0 0.0
      %867 = vmatpush.msra.mxu0 %v844
      %868 = vmatpush.msra.mxu0 %v842
      %869 = vmatmul.f32.gmra.mxu0 %v848
      %v870 = vpop.f32.mrf.mxu0
      %v871 = vadd.f32 0.0, %v870
      %872 = vmatmul.f32.gmra.mxu0 %v851
      %v873 = vpop.f32.mrf.mxu0
      %v874 = vadd.f32 0.0, %v873
      %875 = vdwg.mxu0
      %876 = vrot.lane.b32.xlu0 %v419, 64
      %v877 = vpop.permute.xlu0 %876
      %878 = vrot.lane.b32.xlu0 %v422, 64
      %v879 = vpop.permute.xlu0 %878
      %v883 = vsel %vm613, %v760, 0
      %v886 = vsel %vm613, %v775, 0
      %888 = vmatpush.msra.mxu0 0.0
      %889 = vmatpush.msra.mxu0 0.0
      %890 = vmatpush.msra.mxu0 0.0
      %891 = vmatpush.msra.mxu0 0.0
      %892 = vmatpush.msra.mxu0 0.0
      %893 = vmatpush.msra.mxu0 0.0
      %894 = vmatpush.msra.mxu0 0.0
      %895 = vmatpush.msra.mxu0 0.0
      %896 = vmatpush.msra.mxu0 0.0
      %897 = vmatpush.msra.mxu0 0.0
      %898 = vmatpush.msra.mxu0 0.0
      %899 = vmatpush.msra.mxu0 0.0
      %900 = vmatpush.msra.mxu0 0.0
      %901 = vmatpush.msra.mxu0 0.0
      %902 = vmatpush.msra.mxu0 %v879
      %903 = vmatpush.msra.mxu0 %v877
      %904 = vmatmul.f32.gmra.mxu0 %v883
      %v905 = vpop.f32.mrf.mxu0
      %v906 = vadd.f32 0.0, %v905
      %907 = vmatmul.f32.gmra.mxu0 %v886
      %v908 = vpop.f32.mrf.mxu0
      %v909 = vadd.f32 0.0, %v908
      %910 = vdwg.mxu0
      %911 = vrot.lane.b32.xlu0 %v425, 64
      %v912 = vpop.permute.xlu0 %911
      %913 = vrot.lane.b32.xlu0 %v428, 64
      %v914 = vpop.permute.xlu0 %913
      %v918 = vsel %vm613, %v790, 0
      %v921 = vsel %vm613, %v805, 0
      %923 = vmatpush.msra.mxu0 0.0
      %924 = vmatpush.msra.mxu0 0.0
      %925 = vmatpush.msra.mxu0 0.0
      %926 = vmatpush.msra.mxu0 0.0
      %927 = vmatpush.msra.mxu0 0.0
      %928 = vmatpush.msra.mxu0 0.0
      %929 = vmatpush.msra.mxu0 0.0
      %930 = vmatpush.msra.mxu0 0.0
      %931 = vmatpush.msra.mxu0 0.0
      %932 = vmatpush.msra.mxu0 0.0
      %933 = vmatpush.msra.mxu0 0.0
      %934 = vmatpush.msra.mxu0 0.0
      %935 = vmatpush.msra.mxu0 0.0
      %936 = vmatpush.msra.mxu0 0.0
      %937 = vmatpush.msra.mxu0 %v914
      %938 = vmatpush.msra.mxu0 %v912
      %939 = vmatmul.f32.gmra.mxu0 %v918
      %v940 = vpop.f32.mrf.mxu0
      %v941 = vadd.f32 0.0, %v940
      %942 = vmatmul.f32.gmra.mxu0 %v921
      %v943 = vpop.f32.mrf.mxu0
      %v944 = vadd.f32 0.0, %v943
      %945 = vdwg.mxu0
      %s946 = scalar_lea.vmem %s5, 16
      %v947 = vld [vmem:[%s946] sm:$0xff]
      %v948 = vld [vmem:[%s946 + $0x8] sm:$0xff]
      %949 = vrot.lane.b32.xlu0 %v438, 120
      %v950 = vpop.permute.xlu0 %949
      %951 = vrot.lane.b32.xlu0 %v439, 120
      %v952 = vpop.permute.xlu0 %951
      %953 = vrot.lane.b32.xlu0 %v407, 88
      %v954 = vpop.permute.xlu0 %953
      %955 = vrot.lane.b32.xlu0 %v410, 88
      %v956 = vpop.permute.xlu0 %955
      %v957 = vsel %vm454, %v950, 0
      %v959 = vsel %vm454, %v952, 0
      %v961 = vsel %vm454, %v954, 0
      %v963 = vsel %vm454, %v956, 0
      %965 = vmatpush.xpose.msra.mxu0 0.0
      %966 = vmatpush.xpose.msra.mxu0 0.0
      %967 = vmatpush.xpose.msra.mxu0 0.0
      %968 = vmatpush.xpose.msra.mxu0 0.0
      %969 = vmatpush.xpose.msra.mxu0 0.0
      %970 = vmatpush.xpose.msra.mxu0 0.0
      %971 = vmatpush.xpose.msra.mxu0 0.0
      %972 = vmatpush.xpose.msra.mxu0 0.0
      %973 = vmatpush.xpose.msra.mxu0 0.0
      %974 = vmatpush.xpose.msra.mxu0 0.0
      %975 = vmatpush.xpose.msra.mxu0 0.0
      %976 = vmatpush.xpose.msra.mxu0 0.0
      %977 = vmatpush.xpose.msra.mxu0 0.0
      %978 = vmatpush.xpose.msra.mxu0 0.0
      %979 = vmatpush.xpose.msra.mxu0 %v963
      %980 = vmatpush.xpose.msra.mxu0 %v961
      %981 = vmatmul.f32.gmra.mxu0 %v957
      %v982 = vpop.f32.mrf.mxu0
      %v983 = vadd.f32 %v947, %v982
      %984 = vmatmul.f32.gmra.mxu0 %v959
      %v985 = vpop.f32.mrf.mxu0
      %v986 = vadd.f32 %v948, %v985
      %987 = vdwg.mxu0
      %988 = vrot.lane.b32.xlu0 %v440, 120
      %v989 = vpop.permute.xlu0 %988
      %990 = vrot.lane.b32.xlu0 %v441, 120
      %v991 = vpop.permute.xlu0 %990
      %992 = vrot.lane.b32.xlu0 %v413, 88
      %v993 = vpop.permute.xlu0 %992
      %994 = vrot.lane.b32.xlu0 %v416, 88
      %v995 = vpop.permute.xlu0 %994
      %v996 = vsel %vm454, %v989, 0
      %v998 = vsel %vm454, %v991, 0
      %v1000 = vsel %vm454, %v993, 0
      %v1002 = vsel %vm454, %v995, 0
      %1004 = vmatpush.xpose.msra.mxu0 0.0
      %1005 = vmatpush.xpose.msra.mxu0 0.0
      %1006 = vmatpush.xpose.msra.mxu0 0.0
      %1007 = vmatpush.xpose.msra.mxu0 0.0
      %1008 = vmatpush.xpose.msra.mxu0 0.0
      %1009 = vmatpush.xpose.msra.mxu0 0.0
      %1010 = vmatpush.xpose.msra.mxu0 0.0
      %1011 = vmatpush.xpose.msra.mxu0 0.0
      %1012 = vmatpush.xpose.msra.mxu0 0.0
      %1013 = vmatpush.xpose.msra.mxu0 0.0
      %1014 = vmatpush.xpose.msra.mxu0 0.0
      %1015 = vmatpush.xpose.msra.mxu0 0.0
      %1016 = vmatpush.xpose.msra.mxu0 0.0
      %1017 = vmatpush.xpose.msra.mxu0 0.0
      %1018 = vmatpush.xpose.msra.mxu0 %v1002
      %1019 = vmatpush.xpose.msra.mxu0 %v1000
      %1020 = vmatmul.f32.gmra.mxu0 %v996
      %v1021 = vpop.f32.mrf.mxu0
      %v1022 = vadd.f32 %v947, %v1021
      %1023 = vmatmul.f32.gmra.mxu0 %v998
      %v1024 = vpop.f32.mrf.mxu0
      %v1025 = vadd.f32 %v948, %v1024
      %1026 = vdwg.mxu0
      %1027 = vrot.lane.b32.xlu0 %v442, 120
      %v1028 = vpop.permute.xlu0 %1027
      %1029 = vrot.lane.b32.xlu0 %v443, 120
      %v1030 = vpop.permute.xlu0 %1029
      %1031 = vrot.lane.b32.xlu0 %v419, 88
      %v1032 = vpop.permute.xlu0 %1031
      %1033 = vrot.lane.b32.xlu0 %v422, 88
      %v1034 = vpop.permute.xlu0 %1033
      %v1035 = vsel %vm454, %v1028, 0
      %v1037 = vsel %vm454, %v1030, 0
      %v1039 = vsel %vm454, %v1032, 0
      %v1041 = vsel %vm454, %v1034, 0
      %1043 = vmatpush.xpose.msra.mxu0 0.0
      %1044 = vmatpush.xpose.msra.mxu0 0.0
      %1045 = vmatpush.xpose.msra.mxu0 0.0
      %1046 = vmatpush.xpose.msra.mxu0 0.0
      %1047 = vmatpush.xpose.msra.mxu0 0.0
      %1048 = vmatpush.xpose.msra.mxu0 0.0
      %1049 = vmatpush.xpose.msra.mxu0 0.0
      %1050 = vmatpush.xpose.msra.mxu0 0.0
      %1051 = vmatpush.xpose.msra.mxu0 0.0
      %1052 = vmatpush.xpose.msra.mxu0 0.0
      %1053 = vmatpush.xpose.msra.mxu0 0.0
      %1054 = vmatpush.xpose.msra.mxu0 0.0
      %1055 = vmatpush.xpose.msra.mxu0 0.0
      %1056 = vmatpush.xpose.msra.mxu0 0.0
      %1057 = vmatpush.xpose.msra.mxu0 %v1041
      %1058 = vmatpush.xpose.msra.mxu0 %v1039
      %1059 = vmatmul.f32.gmra.mxu0 %v1035
      %v1060 = vpop.f32.mrf.mxu0
      %v1061 = vadd.f32 %v947, %v1060
      %1062 = vmatmul.f32.gmra.mxu0 %v1037
      %v1063 = vpop.f32.mrf.mxu0
      %v1064 = vadd.f32 %v948, %v1063
      %1065 = vdwg.mxu0
      %1066 = vrot.lane.b32.xlu0 %v444, 120
      %v1067 = vpop.permute.xlu0 %1066
      %1068 = vrot.lane.b32.xlu0 %v445, 120
      %v1069 = vpop.permute.xlu0 %1068
      %1070 = vrot.lane.b32.xlu0 %v425, 88
      %v1071 = vpop.permute.xlu0 %1070
      %1072 = vrot.lane.b32.xlu0 %v428, 88
      %v1073 = vpop.permute.xlu0 %1072
      %v1074 = vsel %vm454, %v1067, 0
      %v1076 = vsel %vm454, %v1069, 0
      %v1078 = vsel %vm454, %v1071, 0
      %v1080 = vsel %vm454, %v1073, 0
      %1082 = vmatpush.xpose.msra.mxu0 0.0
      %1083 = vmatpush.xpose.msra.mxu0 0.0
      %1084 = vmatpush.xpose.msra.mxu0 0.0
      %1085 = vmatpush.xpose.msra.mxu0 0.0
      %1086 = vmatpush.xpose.msra.mxu0 0.0
      %1087 = vmatpush.xpose.msra.mxu0 0.0
      %1088 = vmatpush.xpose.msra.mxu0 0.0
      %1089 = vmatpush.xpose.msra.mxu0 0.0
      %1090 = vmatpush.xpose.msra.mxu0 0.0
      %1091 = vmatpush.xpose.msra.mxu0 0.0
      %1092 = vmatpush.xpose.msra.mxu0 0.0
      %1093 = vmatpush.xpose.msra.mxu0 0.0
      %1094 = vmatpush.xpose.msra.mxu0 0.0
      %1095 = vmatpush.xpose.msra.mxu0 0.0
      %1096 = vmatpush.xpose.msra.mxu0 %v1080
      %1097 = vmatpush.xpose.msra.mxu0 %v1078
      %1098 = vmatmul.f32.gmra.mxu0 %v1074
      %v1099 = vpop.f32.mrf.mxu0
      %v1100 = vadd.f32 %v947, %v1099
      %1101 = vmatmul.f32.gmra.mxu0 %v1076
      %v1102 = vpop.f32.mrf.mxu0
      %v1103 = vadd.f32 %v948, %v1102
      %1104 = vdwg.mxu0
      %v1105 = vadd.f32 %v983, %v430
      %v1106 = vadd.f32 %v986, %v431
      %v1107 = vadd.f32 %v1022, %v432
      %v1108 = vadd.f32 %v1025, %v433
      %v1109 = vadd.f32 %v1061, %v434
      %v1110 = vadd.f32 %v1064, %v435
      %v1111 = vadd.f32 %v1100, %v436
      %v1112 = vadd.f32 %v1103, %v437
      %v1113 = vsel %vm613, %v1105, -inf
      %1114 = vmax.xlane.f32.xlu0 %v1113
      %v1115 = vpop.xlane.xlu0 %1114
      %v1116 = vsel %vm613, %v1106, -inf
      %1117 = vmax.xlane.f32.xlu0 %v1116
      %v1118 = vpop.xlane.xlu0 %1117
      %v1119 = vsel %vm613, %v1107, -inf
      %1120 = vmax.xlane.f32.xlu0 %v1119
      %v1121 = vpop.xlane.xlu0 %1120
      %v1122 = vsel %vm613, %v1108, -inf
      %1123 = vmax.xlane.f32.xlu0 %v1122
      %v1124 = vpop.xlane.xlu0 %1123
      %v1125 = vsel %vm613, %v1109, -inf
      %1126 = vmax.xlane.f32.xlu0 %v1125
      %v1127 = vpop.xlane.xlu0 %1126
      %v1128 = vsel %vm613, %v1110, -inf
      %1129 = vmax.xlane.f32.xlu0 %v1128
      %v1130 = vpop.xlane.xlu0 %1129
      %v1131 = vsel %vm613, %v1111, -inf
      %1132 = vmax.xlane.f32.xlu0 %v1131
      %v1133 = vpop.xlane.xlu0 %1132
      %v1134 = vsel %vm613, %v1112, -inf
      %1135 = vmax.xlane.f32.xlu0 %v1134
      %v1136 = vpop.xlane.xlu0 %1135
      %v1137 = vsub.f32 %v1105, %v1115
      %v1138 = vsub.f32 %v1106, %v1118
      %v1139 = vsub.f32 %v1107, %v1121
      %v1140 = vsub.f32 %v1108, %v1124
      %v1141 = vsub.f32 %v1109, %v1127
      %v1142 = vsub.f32 %v1110, %v1130
      %v1143 = vsub.f32 %v1111, %v1133
      %v1144 = vsub.f32 %v1112, %v1136
      %v1145 = vmul.f32 %v1137, 1.442695
      %v1146 = vpow.pop %v1145
      %v1147 = vmul.f32 %v1138, 1.442695
      %v1148 = vpow.pop %v1147
      %v1149 = vmul.f32 %v1139, 1.442695
      %v1150 = vpow.pop %v1149
      %v1151 = vmul.f32 %v1140, 1.442695
      %v1152 = vpow.pop %v1151
      %v1153 = vmul.f32 %v1141, 1.442695
      %v1154 = vpow.pop %v1153
      %v1155 = vmul.f32 %v1142, 1.442695
      %v1156 = vpow.pop %v1155
      %v1157 = vmul.f32 %v1143, 1.442695
      %v1158 = vpow.pop %v1157
      %v1159 = vmul.f32 %v1144, 1.442695
      %v1160 = vpow.pop %v1159
      %v1161 = vsel %vm613, %v1146, 0.0
      %1162 = vadd.xlane.f32.xlu0 %v1161
      %v1163 = vpop.xlane.xlu0 %1162
      %v1164 = vsel %vm613, %v1148, 0.0
      %1165 = vadd.xlane.f32.xlu0 %v1164
      %v1166 = vpop.xlane.xlu0 %1165
      %v1167 = vsel %vm613, %v1150, 0.0
      %1168 = vadd.xlane.f32.xlu0 %v1167
      %v1169 = vpop.xlane.xlu0 %1168
      %v1170 = vsel %vm613, %v1152, 0.0
      %1171 = vadd.xlane.f32.xlu0 %v1170
      %v1172 = vpop.xlane.xlu0 %1171
      %v1173 = vsel %vm613, %v1154, 0.0
      %1174 = vadd.xlane.f32.xlu0 %v1173
      %v1175 = vpop.xlane.xlu0 %1174
      %v1176 = vsel %vm613, %v1156, 0.0
      %1177 = vadd.xlane.f32.xlu0 %v1176
      %v1178 = vpop.xlane.xlu0 %1177
      %v1179 = vsel %vm613, %v1158, 0.0
      %1180 = vadd.xlane.f32.xlu0 %v1179
      %v1181 = vpop.xlane.xlu0 %1180
      %v1182 = vsel %vm613, %v1160, 0.0
      %1183 = vadd.xlane.f32.xlu0 %v1182
      %v1184 = vpop.xlane.xlu0 %1183
      %v1185 = vrcp.pop %v1163
      %v1186 = vmul.f32 %v1163, %v1185
      %v1187 = vsub.f32 1.0, %v1186
      %v1188 = vmul.f32 %v1185, %v1187
      %v1189 = vadd.f32 %v1185, %v1188
      %vm1190 = vweird.f32 %v1163
      %vm1191 = vweird.f32 %v1185
      %vm1192 = vmor %vm1190, %vm1191
      %v1193 = vsel %vm1192, %v1185, %v1189
      %v1194 = vand.u32 2147483647, %v1163
      %vm1195 = vcmp.eq.f32.partialorder %v1194, 8.507059e+37
      %v1196 = vand.u32 %v1163, 2147483648
      %v1197 = vor.u32 1.1754944e-38, %v1196
      %v1198 = vsel %vm1195, %v1197, %v1193
      %v1199 = vmul.f32 %v1146, %v1198
      %v1200 = vrcp.pop %v1166
      %v1201 = vmul.f32 %v1166, %v1200
      %v1202 = vsub.f32 1.0, %v1201
      %v1203 = vmul.f32 %v1200, %v1202
      %v1204 = vadd.f32 %v1200, %v1203
      %vm1205 = vweird.f32 %v1166
      %vm1206 = vweird.f32 %v1200
      %vm1207 = vmor %vm1205, %vm1206
      %v1208 = vsel %vm1207, %v1200, %v1204
      %v1209 = vand.u32 2147483647, %v1166
      %vm1210 = vcmp.eq.f32.partialorder %v1209, 8.507059e+37
      %v1211 = vand.u32 %v1166, 2147483648
      %v1212 = vor.u32 1.1754944e-38, %v1211
      %v1213 = vsel %vm1210, %v1212, %v1208
      %v1214 = vmul.f32 %v1148, %v1213
      %v1215 = vrcp.pop %v1169
      %v1216 = vmul.f32 %v1169, %v1215
      %v1217 = vsub.f32 1.0, %v1216
      %v1218 = vmul.f32 %v1215, %v1217
      %v1219 = vadd.f32 %v1215, %v1218
      %vm1220 = vweird.f32 %v1169
      %vm1221 = vweird.f32 %v1215
      %vm1222 = vmor %vm1220, %vm1221
      %v1223 = vsel %vm1222, %v1215, %v1219
      %v1224 = vand.u32 2147483647, %v1169
      %vm1225 = vcmp.eq.f32.partialorder %v1224, 8.507059e+37
      %v1226 = vand.u32 %v1169, 2147483648
      %v1227 = vor.u32 1.1754944e-38, %v1226
      %v1228 = vsel %vm1225, %v1227, %v1223
      %v1229 = vmul.f32 %v1150, %v1228
      %v1230 = vrcp.pop %v1172
      %v1231 = vmul.f32 %v1172, %v1230
      %v1232 = vsub.f32 1.0, %v1231
      %v1233 = vmul.f32 %v1230, %v1232
      %v1234 = vadd.f32 %v1230, %v1233
      %vm1235 = vweird.f32 %v1172
      %vm1236 = vweird.f32 %v1230
      %vm1237 = vmor %vm1235, %vm1236
      %v1238 = vsel %vm1237, %v1230, %v1234
      %v1239 = vand.u32 2147483647, %v1172
      %vm1240 = vcmp.eq.f32.partialorder %v1239, 8.507059e+37
      %v1241 = vand.u32 %v1172, 2147483648
      %v1242 = vor.u32 1.1754944e-38, %v1241
      %v1243 = vsel %vm1240, %v1242, %v1238
      %v1244 = vmul.f32 %v1152, %v1243
      %v1245 = vrcp.pop %v1175
      %v1246 = vmul.f32 %v1175, %v1245
      %v1247 = vsub.f32 1.0, %v1246
      %v1248 = vmul.f32 %v1245, %v1247
      %v1249 = vadd.f32 %v1245, %v1248
      %vm1250 = vweird.f32 %v1175
      %vm1251 = vweird.f32 %v1245
      %vm1252 = vmor %vm1250, %vm1251
      %v1253 = vsel %vm1252, %v1245, %v1249
      %v1254 = vand.u32 2147483647, %v1175
      %vm1255 = vcmp.eq.f32.partialorder %v1254, 8.507059e+37
      %v1256 = vand.u32 %v1175, 2147483648
      %v1257 = vor.u32 1.1754944e-38, %v1256
      %v1258 = vsel %vm1255, %v1257, %v1253
      %v1259 = vmul.f32 %v1154, %v1258
      %v1260 = vrcp.pop %v1178
      %v1261 = vmul.f32 %v1178, %v1260
      %v1262 = vsub.f32 1.0, %v1261
      %v1263 = vmul.f32 %v1260, %v1262
      %v1264 = vadd.f32 %v1260, %v1263
      %vm1265 = vweird.f32 %v1178
      %vm1266 = vweird.f32 %v1260
      %vm1267 = vmor %vm1265, %vm1266
      %v1268 = vsel %vm1267, %v1260, %v1264
      %v1269 = vand.u32 2147483647, %v1178
      %vm1270 = vcmp.eq.f32.partialorder %v1269, 8.507059e+37
      %v1271 = vand.u32 %v1178, 2147483648
      %v1272 = vor.u32 1.1754944e-38, %v1271
      %v1273 = vsel %vm1270, %v1272, %v1268
      %v1274 = vmul.f32 %v1156, %v1273
      %v1275 = vrcp.pop %v1181
      %v1276 = vmul.f32 %v1181, %v1275
      %v1277 = vsub.f32 1.0, %v1276
      %v1278 = vmul.f32 %v1275, %v1277
      %v1279 = vadd.f32 %v1275, %v1278
      %vm1280 = vweird.f32 %v1181
      %vm1281 = vweird.f32 %v1275
      %vm1282 = vmor %vm1280, %vm1281
      %v1283 = vsel %vm1282, %v1275, %v1279
      %v1284 = vand.u32 2147483647, %v1181
      %vm1285 = vcmp.eq.f32.partialorder %v1284, 8.507059e+37
      %v1286 = vand.u32 %v1181, 2147483648
      %v1287 = vor.u32 1.1754944e-38, %v1286
      %v1288 = vsel %vm1285, %v1287, %v1283
      %v1289 = vmul.f32 %v1158, %v1288
      %v1290 = vrcp.pop %v1184
      %v1291 = vmul.f32 %v1184, %v1290
      %v1292 = vsub.f32 1.0, %v1291
      %v1293 = vmul.f32 %v1290, %v1292
      %v1294 = vadd.f32 %v1290, %v1293
      %vm1295 = vweird.f32 %v1184
      %vm1296 = vweird.f32 %v1290
      %vm1297 = vmor %vm1295, %vm1296
      %v1298 = vsel %vm1297, %v1290, %v1294
      %v1299 = vand.u32 2147483647, %v1184
      %vm1300 = vcmp.eq.f32.partialorder %v1299, 8.507059e+37
      %v1301 = vand.u32 %v1184, 2147483648
      %v1302 = vor.u32 1.1754944e-38, %v1301
      %v1303 = vsel %vm1300, %v1302, %v1298
      %v1304 = vmul.f32 %v1160, %v1303
      %1305 = vrot.lane.b32.xlu0 %v407, 56
      %v1306 = vpop.permute.xlu0 %1305
      %1307 = vrot.lane.b32.xlu0 %v410, 56
      %v1308 = vpop.permute.xlu0 %1307
      %v1312 = vsel %vm613, %v1199, 0
      %v1315 = vsel %vm613, %v1214, 0
      %1317 = vmatpush.msra.mxu0 0.0
      %1318 = vmatpush.msra.mxu0 0.0
      %1319 = vmatpush.msra.mxu0 0.0
      %1320 = vmatpush.msra.mxu0 0.0
      %1321 = vmatpush.msra.mxu0 0.0
      %1322 = vmatpush.msra.mxu0 0.0
      %1323 = vmatpush.msra.mxu0 0.0
      %1324 = vmatpush.msra.mxu0 0.0
      %1325 = vmatpush.msra.mxu0 0.0
      %1326 = vmatpush.msra.mxu0 0.0
      %1327 = vmatpush.msra.mxu0 0.0
      %1328 = vmatpush.msra.mxu0 0.0
      %1329 = vmatpush.msra.mxu0 0.0
      %1330 = vmatpush.msra.mxu0 0.0
      %1331 = vmatpush.msra.mxu0 %v1308
      %1332 = vmatpush.msra.mxu0 %v1306
      %1333 = vmatmul.f32.gmra.mxu0 %v1312
      %v1334 = vpop.f32.mrf.mxu0
      %v1335 = vadd.f32 0.0, %v1334
      %1336 = vmatmul.f32.gmra.mxu0 %v1315
      %v1337 = vpop.f32.mrf.mxu0
      %v1338 = vadd.f32 0.0, %v1337
      %1339 = vdwg.mxu0
      %1340 = vrot.lane.b32.xlu0 %v413, 56
      %v1341 = vpop.permute.xlu0 %1340
      %1342 = vrot.lane.b32.xlu0 %v416, 56
      %v1343 = vpop.permute.xlu0 %1342
      %v1347 = vsel %vm613, %v1229, 0
      %v1350 = vsel %vm613, %v1244, 0
      %1352 = vmatpush.msra.mxu0 0.0
      %1353 = vmatpush.msra.mxu0 0.0
      %1354 = vmatpush.msra.mxu0 0.0
      %1355 = vmatpush.msra.mxu0 0.0
      %1356 = vmatpush.msra.mxu0 0.0
      %1357 = vmatpush.msra.mxu0 0.0
      %1358 = vmatpush.msra.mxu0 0.0
      %1359 = vmatpush.msra.mxu0 0.0
      %1360 = vmatpush.msra.mxu0 0.0
      %1361 = vmatpush.msra.mxu0 0.0
      %1362 = vmatpush.msra.mxu0 0.0
      %1363 = vmatpush.msra.mxu0 0.0
      %1364 = vmatpush.msra.mxu0 0.0
      %1365 = vmatpush.msra.mxu0 0.0
      %1366 = vmatpush.msra.mxu0 %v1343
      %1367 = vmatpush.msra.mxu0 %v1341
      %1368 = vmatmul.f32.gmra.mxu0 %v1347
      %v1369 = vpop.f32.mrf.mxu0
      %v1370 = vadd.f32 0.0, %v1369
      %1371 = vmatmul.f32.gmra.mxu0 %v1350
      %v1372 = vpop.f32.mrf.mxu0
      %v1373 = vadd.f32 0.0, %v1372
      %1374 = vdwg.mxu0
      %1375 = vrot.lane.b32.xlu0 %v419, 56
      %v1376 = vpop.permute.xlu0 %1375
      %1377 = vrot.lane.b32.xlu0 %v422, 56
      %v1378 = vpop.permute.xlu0 %1377
      %v1382 = vsel %vm613, %v1259, 0
      %v1385 = vsel %vm613, %v1274, 0
      %1387 = vmatpush.msra.mxu0 0.0
      %1388 = vmatpush.msra.mxu0 0.0
      %1389 = vmatpush.msra.mxu0 0.0
      %1390 = vmatpush.msra.mxu0 0.0
      %1391 = vmatpush.msra.mxu0 0.0
      %1392 = vmatpush.msra.mxu0 0.0
      %1393 = vmatpush.msra.mxu0 0.0
      %1394 = vmatpush.msra.mxu0 0.0
      %1395 = vmatpush.msra.mxu0 0.0
      %1396 = vmatpush.msra.mxu0 0.0
      %1397 = vmatpush.msra.mxu0 0.0
      %1398 = vmatpush.msra.mxu0 0.0
      %1399 = vmatpush.msra.mxu0 0.0
      %1400 = vmatpush.msra.mxu0 0.0
      %1401 = vmatpush.msra.mxu0 %v1378
      %1402 = vmatpush.msra.mxu0 %v1376
      %1403 = vmatmul.f32.gmra.mxu0 %v1382
      %v1404 = vpop.f32.mrf.mxu0
      %v1405 = vadd.f32 0.0, %v1404
      %1406 = vmatmul.f32.gmra.mxu0 %v1385
      %v1407 = vpop.f32.mrf.mxu0
      %v1408 = vadd.f32 0.0, %v1407
      %1409 = vdwg.mxu0
      %1410 = vrot.lane.b32.xlu0 %v425, 56
      %v1411 = vpop.permute.xlu0 %1410
      %1412 = vrot.lane.b32.xlu0 %v428, 56
      %v1413 = vpop.permute.xlu0 %1412
      %v1417 = vsel %vm613, %v1289, 0
      %v1420 = vsel %vm613, %v1304, 0
      %1422 = vmatpush.msra.mxu0 0.0
      %1423 = vmatpush.msra.mxu0 0.0
      %1424 = vmatpush.msra.mxu0 0.0
      %1425 = vmatpush.msra.mxu0 0.0
      %1426 = vmatpush.msra.mxu0 0.0
      %1427 = vmatpush.msra.mxu0 0.0
      %1428 = vmatpush.msra.mxu0 0.0
      %1429 = vmatpush.msra.mxu0 0.0
      %1430 = vmatpush.msra.mxu0 0.0
      %1431 = vmatpush.msra.mxu0 0.0
      %1432 = vmatpush.msra.mxu0 0.0
      %1433 = vmatpush.msra.mxu0 0.0
      %1434 = vmatpush.msra.mxu0 0.0
      %1435 = vmatpush.msra.mxu0 0.0
      %1436 = vmatpush.msra.mxu0 %v1413
      %1437 = vmatpush.msra.mxu0 %v1411
      %1438 = vmatmul.f32.gmra.mxu0 %v1417
      %v1439 = vpop.f32.mrf.mxu0
      %v1440 = vadd.f32 0.0, %v1439
      %1441 = vmatmul.f32.gmra.mxu0 %v1420
      %v1442 = vpop.f32.mrf.mxu0
      %v1443 = vadd.f32 0.0, %v1442
      %1444 = vdwg.mxu0
      %s1445 = scalar_lea.vmem %s5, 32
      %v1446 = vld [vmem:[%s1445] sm:$0xff]
      %v1447 = vld [vmem:[%s1445 + $0x8] sm:$0xff]
      %1448 = vrot.lane.b32.xlu0 %v438, 112
      %v1449 = vpop.permute.xlu0 %1448
      %1450 = vrot.lane.b32.xlu0 %v439, 112
      %v1451 = vpop.permute.xlu0 %1450
      %1452 = vrot.lane.b32.xlu0 %v407, 80
      %v1453 = vpop.permute.xlu0 %1452
      %1454 = vrot.lane.b32.xlu0 %v410, 80
      %v1455 = vpop.permute.xlu0 %1454
      %v1456 = vsel %vm454, %v1449, 0
      %v1458 = vsel %vm454, %v1451, 0
      %v1460 = vsel %vm454, %v1453, 0
      %v1462 = vsel %vm454, %v1455, 0
      %1464 = vmatpush.xpose.msra.mxu0 0.0
      %1465 = vmatpush.xpose.msra.mxu0 0.0
      %1466 = vmatpush.xpose.msra.mxu0 0.0
      %1467 = vmatpush.xpose.msra.mxu0 0.0
      %1468 = vmatpush.xpose.msra.mxu0 0.0
      %1469 = vmatpush.xpose.msra.mxu0 0.0
      %1470 = vmatpush.xpose.msra.mxu0 0.0
      %1471 = vmatpush.xpose.msra.mxu0 0.0
      %1472 = vmatpush.xpose.msra.mxu0 0.0
      %1473 = vmatpush.xpose.msra.mxu0 0.0
      %1474 = vmatpush.xpose.msra.mxu0 0.0
      %1475 = vmatpush.xpose.msra.mxu0 0.0
      %1476 = vmatpush.xpose.msra.mxu0 0.0
      %1477 = vmatpush.xpose.msra.mxu0 0.0
      %1478 = vmatpush.xpose.msra.mxu0 %v1462
      %1479 = vmatpush.xpose.msra.mxu0 %v1460
      %1480 = vmatmul.f32.gmra.mxu0 %v1456
      %v1481 = vpop.f32.mrf.mxu0
      %v1482 = vadd.f32 %v1446, %v1481
      %1483 = vmatmul.f32.gmra.mxu0 %v1458
      %v1484 = vpop.f32.mrf.mxu0
      %v1485 = vadd.f32 %v1447, %v1484
      %1486 = vdwg.mxu0
      %1487 = vrot.lane.b32.xlu0 %v440, 112
      %v1488 = vpop.permute.xlu0 %1487
      %1489 = vrot.lane.b32.xlu0 %v441, 112
      %v1490 = vpop.permute.xlu0 %1489
      %1491 = vrot.lane.b32.xlu0 %v413, 80
      %v1492 = vpop.permute.xlu0 %1491
      %1493 = vrot.lane.b32.xlu0 %v416, 80
      %v1494 = vpop.permute.xlu0 %1493
      %v1495 = vsel %vm454, %v1488, 0
      %v1497 = vsel %vm454, %v1490, 0
      %v1499 = vsel %vm454, %v1492, 0
      %v1501 = vsel %vm454, %v1494, 0
      %1503 = vmatpush.xpose.msra.mxu0 0.0
      %1504 = vmatpush.xpose.msra.mxu0 0.0
      %1505 = vmatpush.xpose.msra.mxu0 0.0
      %1506 = vmatpush.xpose.msra.mxu0 0.0
      %1507 = vmatpush.xpose.msra.mxu0 0.0
      %1508 = vmatpush.xpose.msra.mxu0 0.0
      %1509 = vmatpush.xpose.msra.mxu0 0.0
      %1510 = vmatpush.xpose.msra.mxu0 0.0
      %1511 = vmatpush.xpose.msra.mxu0 0.0
      %1512 = vmatpush.xpose.msra.mxu0 0.0
      %1513 = vmatpush.xpose.msra.mxu0 0.0
      %1514 = vmatpush.xpose.msra.mxu0 0.0
      %1515 = vmatpush.xpose.msra.mxu0 0.0
      %1516 = vmatpush.xpose.msra.mxu0 0.0
      %1517 = vmatpush.xpose.msra.mxu0 %v1501
      %1518 = vmatpush.xpose.msra.mxu0 %v1499
      %1519 = vmatmul.f32.gmra.mxu0 %v1495
      %v1520 = vpop.f32.mrf.mxu0
      %v1521 = vadd.f32 %v1446, %v1520
      %1522 = vmatmul.f32.gmra.mxu0 %v1497
      %v1523 = vpop.f32.mrf.mxu0
      %v1524 = vadd.f32 %v1447, %v1523
      %1525 = vdwg.mxu0
      %1526 = vrot.lane.b32.xlu0 %v442, 112
      %v1527 = vpop.permute.xlu0 %1526
      %1528 = vrot.lane.b32.xlu0 %v443, 112
      %v1529 = vpop.permute.xlu0 %1528
      %1530 = vrot.lane.b32.xlu0 %v419, 80
      %v1531 = vpop.permute.xlu0 %1530
      %1532 = vrot.lane.b32.xlu0 %v422, 80
      %v1533 = vpop.permute.xlu0 %1532
      %v1534 = vsel %vm454, %v1527, 0
      %v1536 = vsel %vm454, %v1529, 0
      %v1538 = vsel %vm454, %v1531, 0
      %v1540 = vsel %vm454, %v1533, 0
      %1542 = vmatpush.xpose.msra.mxu0 0.0
      %1543 = vmatpush.xpose.msra.mxu0 0.0
      %1544 = vmatpush.xpose.msra.mxu0 0.0
      %1545 = vmatpush.xpose.msra.mxu0 0.0
      %1546 = vmatpush.xpose.msra.mxu0 0.0
      %1547 = vmatpush.xpose.msra.mxu0 0.0
      %1548 = vmatpush.xpose.msra.mxu0 0.0
      %1549 = vmatpush.xpose.msra.mxu0 0.0
      %1550 = vmatpush.xpose.msra.mxu0 0.0
      %1551 = vmatpush.xpose.msra.mxu0 0.0
      %1552 = vmatpush.xpose.msra.mxu0 0.0
      %1553 = vmatpush.xpose.msra.mxu0 0.0
      %1554 = vmatpush.xpose.msra.mxu0 0.0
      %1555 = vmatpush.xpose.msra.mxu0 0.0
      %1556 = vmatpush.xpose.msra.mxu0 %v1540
      %1557 = vmatpush.xpose.msra.mxu0 %v1538
      %1558 = vmatmul.f32.gmra.mxu0 %v1534
      %v1559 = vpop.f32.mrf.mxu0
      %v1560 = vadd.f32 %v1446, %v1559
      %1561 = vmatmul.f32.gmra.mxu0 %v1536
      %v1562 = vpop.f32.mrf.mxu0
      %v1563 = vadd.f32 %v1447, %v1562
      %1564 = vdwg.mxu0
      %1565 = vrot.lane.b32.xlu0 %v444, 112
      %v1566 = vpop.permute.xlu0 %1565
      %1567 = vrot.lane.b32.xlu0 %v445, 112
      %v1568 = vpop.permute.xlu0 %1567
      %1569 = vrot.lane.b32.xlu0 %v425, 80
      %v1570 = vpop.permute.xlu0 %1569
      %1571 = vrot.lane.b32.xlu0 %v428, 80
      %v1572 = vpop.permute.xlu0 %1571
      %v1573 = vsel %vm454, %v1566, 0
      %v1575 = vsel %vm454, %v1568, 0
      %v1577 = vsel %vm454, %v1570, 0
      %v1579 = vsel %vm454, %v1572, 0
      %1581 = vmatpush.xpose.msra.mxu0 0.0
      %1582 = vmatpush.xpose.msra.mxu0 0.0
      %1583 = vmatpush.xpose.msra.mxu0 0.0
      %1584 = vmatpush.xpose.msra.mxu0 0.0
      %1585 = vmatpush.xpose.msra.mxu0 0.0
      %1586 = vmatpush.xpose.msra.mxu0 0.0
      %1587 = vmatpush.xpose.msra.mxu0 0.0
      %1588 = vmatpush.xpose.msra.mxu0 0.0
      %1589 = vmatpush.xpose.msra.mxu0 0.0
      %1590 = vmatpush.xpose.msra.mxu0 0.0
      %1591 = vmatpush.xpose.msra.mxu0 0.0
      %1592 = vmatpush.xpose.msra.mxu0 0.0
      %1593 = vmatpush.xpose.msra.mxu0 0.0
      %1594 = vmatpush.xpose.msra.mxu0 0.0
      %1595 = vmatpush.xpose.msra.mxu0 %v1579
      %1596 = vmatpush.xpose.msra.mxu0 %v1577
      %1597 = vmatmul.f32.gmra.mxu0 %v1573
      %v1598 = vpop.f32.mrf.mxu0
      %v1599 = vadd.f32 %v1446, %v1598
      %1600 = vmatmul.f32.gmra.mxu0 %v1575
      %v1601 = vpop.f32.mrf.mxu0
      %v1602 = vadd.f32 %v1447, %v1601
      %1603 = vdwg.mxu0
      %v1604 = vadd.f32 %v1482, %v430
      %v1605 = vadd.f32 %v1485, %v431
      %v1606 = vadd.f32 %v1521, %v432
      %v1607 = vadd.f32 %v1524, %v433
      %v1608 = vadd.f32 %v1560, %v434
      %v1609 = vadd.f32 %v1563, %v435
      %v1610 = vadd.f32 %v1599, %v436
      %v1611 = vadd.f32 %v1602, %v437
      %v1612 = vsel %vm613, %v1604, -inf
      %1613 = vmax.xlane.f32.xlu0 %v1612
      %v1614 = vpop.xlane.xlu0 %1613
      %v1615 = vsel %vm613, %v1605, -inf
      %1616 = vmax.xlane.f32.xlu0 %v1615
      %v1617 = vpop.xlane.xlu0 %1616
      %v1618 = vsel %vm613, %v1606, -inf
      %1619 = vmax.xlane.f32.xlu0 %v1618
      %v1620 = vpop.xlane.xlu0 %1619
      %v1621 = vsel %vm613, %v1607, -inf
      %1622 = vmax.xlane.f32.xlu0 %v1621
      %v1623 = vpop.xlane.xlu0 %1622
      %v1624 = vsel %vm613, %v1608, -inf
      %1625 = vmax.xlane.f32.xlu0 %v1624
      %v1626 = vpop.xlane.xlu0 %1625
      %v1627 = vsel %vm613, %v1609, -inf
      %1628 = vmax.xlane.f32.xlu0 %v1627
      %v1629 = vpop.xlane.xlu0 %1628
      %v1630 = vsel %vm613, %v1610, -inf
      %1631 = vmax.xlane.f32.xlu0 %v1630
      %v1632 = vpop.xlane.xlu0 %1631
      %v1633 = vsel %vm613, %v1611, -inf
      %1634 = vmax.xlane.f32.xlu0 %v1633
      %v1635 = vpop.xlane.xlu0 %1634
      %v1636 = vsub.f32 %v1604, %v1614
      %v1637 = vsub.f32 %v1605, %v1617
      %v1638 = vsub.f32 %v1606, %v1620
      %v1639 = vsub.f32 %v1607, %v1623
      %v1640 = vsub.f32 %v1608, %v1626
      %v1641 = vsub.f32 %v1609, %v1629
      %v1642 = vsub.f32 %v1610, %v1632
      %v1643 = vsub.f32 %v1611, %v1635
      %v1644 = vmul.f32 %v1636, 1.442695
      %v1645 = vpow.pop %v1644
      %v1646 = vmul.f32 %v1637, 1.442695
      %v1647 = vpow.pop %v1646
      %v1648 = vmul.f32 %v1638, 1.442695
      %v1649 = vpow.pop %v1648
      %v1650 = vmul.f32 %v1639, 1.442695
      %v1651 = vpow.pop %v1650
      %v1652 = vmul.f32 %v1640, 1.442695
      %v1653 = vpow.pop %v1652
      %v1654 = vmul.f32 %v1641, 1.442695
      %v1655 = vpow.pop %v1654
      %v1656 = vmul.f32 %v1642, 1.442695
      %v1657 = vpow.pop %v1656
      %v1658 = vmul.f32 %v1643, 1.442695
      %v1659 = vpow.pop %v1658
      %v1660 = vsel %vm613, %v1645, 0.0
      %1661 = vadd.xlane.f32.xlu0 %v1660
      %v1662 = vpop.xlane.xlu0 %1661
      %v1663 = vsel %vm613, %v1647, 0.0
      %1664 = vadd.xlane.f32.xlu0 %v1663
      %v1665 = vpop.xlane.xlu0 %1664
      %v1666 = vsel %vm613, %v1649, 0.0
      %1667 = vadd.xlane.f32.xlu0 %v1666
      %v1668 = vpop.xlane.xlu0 %1667
      %v1669 = vsel %vm613, %v1651, 0.0
      %1670 = vadd.xlane.f32.xlu0 %v1669
      %v1671 = vpop.xlane.xlu0 %1670
      %v1672 = vsel %vm613, %v1653, 0.0
      %1673 = vadd.xlane.f32.xlu0 %v1672
      %v1674 = vpop.xlane.xlu0 %1673
      %v1675 = vsel %vm613, %v1655, 0.0
      %1676 = vadd.xlane.f32.xlu0 %v1675
      %v1677 = vpop.xlane.xlu0 %1676
      %v1678 = vsel %vm613, %v1657, 0.0
      %1679 = vadd.xlane.f32.xlu0 %v1678
      %v1680 = vpop.xlane.xlu0 %1679
      %v1681 = vsel %vm613, %v1659, 0.0
      %1682 = vadd.xlane.f32.xlu0 %v1681
      %v1683 = vpop.xlane.xlu0 %1682
      %v1684 = vrcp.pop %v1662
      %v1685 = vmul.f32 %v1662, %v1684
      %v1686 = vsub.f32 1.0, %v1685
      %v1687 = vmul.f32 %v1684, %v1686
      %v1688 = vadd.f32 %v1684, %v1687
      %vm1689 = vweird.f32 %v1662
      %vm1690 = vweird.f32 %v1684
      %vm1691 = vmor %vm1689, %vm1690
      %v1692 = vsel %vm1691, %v1684, %v1688
      %v1693 = vand.u32 2147483647, %v1662
      %vm1694 = vcmp.eq.f32.partialorder %v1693, 8.507059e+37
      %v1695 = vand.u32 %v1662, 2147483648
      %v1696 = vor.u32 1.1754944e-38, %v1695
      %v1697 = vsel %vm1694, %v1696, %v1692
      %v1698 = vmul.f32 %v1645, %v1697
      %v1699 = vrcp.pop %v1665
      %v1700 = vmul.f32 %v1665, %v1699
      %v1701 = vsub.f32 1.0, %v1700
      %v1702 = vmul.f32 %v1699, %v1701
      %v1703 = vadd.f32 %v1699, %v1702
      %vm1704 = vweird.f32 %v1665
      %vm1705 = vweird.f32 %v1699
      %vm1706 = vmor %vm1704, %vm1705
      %v1707 = vsel %vm1706, %v1699, %v1703
      %v1708 = vand.u32 2147483647, %v1665
      %vm1709 = vcmp.eq.f32.partialorder %v1708, 8.507059e+37
      %v1710 = vand.u32 %v1665, 2147483648
      %v1711 = vor.u32 1.1754944e-38, %v1710
      %v1712 = vsel %vm1709, %v1711, %v1707
      %v1713 = vmul.f32 %v1647, %v1712
      %v1714 = vrcp.pop %v1668
      %v1715 = vmul.f32 %v1668, %v1714
      %v1716 = vsub.f32 1.0, %v1715
      %v1717 = vmul.f32 %v1714, %v1716
      %v1718 = vadd.f32 %v1714, %v1717
      %vm1719 = vweird.f32 %v1668
      %vm1720 = vweird.f32 %v1714
      %vm1721 = vmor %vm1719, %vm1720
      %v1722 = vsel %vm1721, %v1714, %v1718
      %v1723 = vand.u32 2147483647, %v1668
      %vm1724 = vcmp.eq.f32.partialorder %v1723, 8.507059e+37
      %v1725 = vand.u32 %v1668, 2147483648
      %v1726 = vor.u32 1.1754944e-38, %v1725
      %v1727 = vsel %vm1724, %v1726, %v1722
      %v1728 = vmul.f32 %v1649, %v1727
      %v1729 = vrcp.pop %v1671
      %v1730 = vmul.f32 %v1671, %v1729
      %v1731 = vsub.f32 1.0, %v1730
      %v1732 = vmul.f32 %v1729, %v1731
      %v1733 = vadd.f32 %v1729, %v1732
      %vm1734 = vweird.f32 %v1671
      %vm1735 = vweird.f32 %v1729
      %vm1736 = vmor %vm1734, %vm1735
      %v1737 = vsel %vm1736, %v1729, %v1733
      %v1738 = vand.u32 2147483647, %v1671
      %vm1739 = vcmp.eq.f32.partialorder %v1738, 8.507059e+37
      %v1740 = vand.u32 %v1671, 2147483648
      %v1741 = vor.u32 1.1754944e-38, %v1740
      %v1742 = vsel %vm1739, %v1741, %v1737
      %v1743 = vmul.f32 %v1651, %v1742
      %v1744 = vrcp.pop %v1674
      %v1745 = vmul.f32 %v1674, %v1744
      %v1746 = vsub.f32 1.0, %v1745
      %v1747 = vmul.f32 %v1744, %v1746
      %v1748 = vadd.f32 %v1744, %v1747
      %vm1749 = vweird.f32 %v1674
      %vm1750 = vweird.f32 %v1744
      %vm1751 = vmor %vm1749, %vm1750
      %v1752 = vsel %vm1751, %v1744, %v1748
      %v1753 = vand.u32 2147483647, %v1674
      %vm1754 = vcmp.eq.f32.partialorder %v1753, 8.507059e+37
      %v1755 = vand.u32 %v1674, 2147483648
      %v1756 = vor.u32 1.1754944e-38, %v1755
      %v1757 = vsel %vm1754, %v1756, %v1752
      %v1758 = vmul.f32 %v1653, %v1757
      %v1759 = vrcp.pop %v1677
      %v1760 = vmul.f32 %v1677, %v1759
      %v1761 = vsub.f32 1.0, %v1760
      %v1762 = vmul.f32 %v1759, %v1761
      %v1763 = vadd.f32 %v1759, %v1762
      %vm1764 = vweird.f32 %v1677
      %vm1765 = vweird.f32 %v1759
      %vm1766 = vmor %vm1764, %vm1765
      %v1767 = vsel %vm1766, %v1759, %v1763
      %v1768 = vand.u32 2147483647, %v1677
      %vm1769 = vcmp.eq.f32.partialorder %v1768, 8.507059e+37
      %v1770 = vand.u32 %v1677, 2147483648
      %v1771 = vor.u32 1.1754944e-38, %v1770
      %v1772 = vsel %vm1769, %v1771, %v1767
      %v1773 = vmul.f32 %v1655, %v1772
      %v1774 = vrcp.pop %v1680
      %v1775 = vmul.f32 %v1680, %v1774
      %v1776 = vsub.f32 1.0, %v1775
      %v1777 = vmul.f32 %v1774, %v1776
      %v1778 = vadd.f32 %v1774, %v1777
      %vm1779 = vweird.f32 %v1680
      %vm1780 = vweird.f32 %v1774
      %vm1781 = vmor %vm1779, %vm1780
      %v1782 = vsel %vm1781, %v1774, %v1778
      %v1783 = vand.u32 2147483647, %v1680
      %vm1784 = vcmp.eq.f32.partialorder %v1783, 8.507059e+37
      %v1785 = vand.u32 %v1680, 2147483648
      %v1786 = vor.u32 1.1754944e-38, %v1785
      %v1787 = vsel %vm1784, %v1786, %v1782
      %v1788 = vmul.f32 %v1657, %v1787
      %v1789 = vrcp.pop %v1683
      %v1790 = vmul.f32 %v1683, %v1789
      %v1791 = vsub.f32 1.0, %v1790
      %v1792 = vmul.f32 %v1789, %v1791
      %v1793 = vadd.f32 %v1789, %v1792
      %vm1794 = vweird.f32 %v1683
      %vm1795 = vweird.f32 %v1789
      %vm1796 = vmor %vm1794, %vm1795
      %v1797 = vsel %vm1796, %v1789, %v1793
      %v1798 = vand.u32 2147483647, %v1683
      %vm1799 = vcmp.eq.f32.partialorder %v1798, 8.507059e+37
      %v1800 = vand.u32 %v1683, 2147483648
      %v1801 = vor.u32 1.1754944e-38, %v1800
      %v1802 = vsel %vm1799, %v1801, %v1797
      %v1803 = vmul.f32 %v1659, %v1802
      %1804 = vrot.lane.b32.xlu0 %v407, 48
      %v1805 = vpop.permute.xlu0 %1804
      %1806 = vrot.lane.b32.xlu0 %v410, 48
      %v1807 = vpop.permute.xlu0 %1806
      %v1811 = vsel %vm613, %v1698, 0
      %v1814 = vsel %vm613, %v1713, 0
      %1816 = vmatpush.msra.mxu0 0.0
      %1817 = vmatpush.msra.mxu0 0.0
      %1818 = vmatpush.msra.mxu0 0.0
      %1819 = vmatpush.msra.mxu0 0.0
      %1820 = vmatpush.msra.mxu0 0.0
      %1821 = vmatpush.msra.mxu0 0.0
      %1822 = vmatpush.msra.mxu0 0.0
      %1823 = vmatpush.msra.mxu0 0.0
      %1824 = vmatpush.msra.mxu0 0.0
      %1825 = vmatpush.msra.mxu0 0.0
      %1826 = vmatpush.msra.mxu0 0.0
      %1827 = vmatpush.msra.mxu0 0.0
      %1828 = vmatpush.msra.mxu0 0.0
      %1829 = vmatpush.msra.mxu0 0.0
      %1830 = vmatpush.msra.mxu0 %v1807
      %1831 = vmatpush.msra.mxu0 %v1805
      %1832 = vmatmul.f32.gmra.mxu0 %v1811
      %v1833 = vpop.f32.mrf.mxu0
      %v1834 = vadd.f32 0.0, %v1833
      %1835 = vmatmul.f32.gmra.mxu0 %v1814
      %v1836 = vpop.f32.mrf.mxu0
      %v1837 = vadd.f32 0.0, %v1836
      %1838 = vdwg.mxu0
      %1839 = vrot.lane.b32.xlu0 %v413, 48
      %v1840 = vpop.permute.xlu0 %1839
      %1841 = vrot.lane.b32.xlu0 %v416, 48
      %v1842 = vpop.permute.xlu0 %1841
      %v1846 = vsel %vm613, %v1728, 0
      %v1849 = vsel %vm613, %v1743, 0
      %1851 = vmatpush.msra.mxu0 0.0
      %1852 = vmatpush.msra.mxu0 0.0
      %1853 = vmatpush.msra.mxu0 0.0
      %1854 = vmatpush.msra.mxu0 0.0
      %1855 = vmatpush.msra.mxu0 0.0
      %1856 = vmatpush.msra.mxu0 0.0
      %1857 = vmatpush.msra.mxu0 0.0
      %1858 = vmatpush.msra.mxu0 0.0
      %1859 = vmatpush.msra.mxu0 0.0
      %1860 = vmatpush.msra.mxu0 0.0
      %1861 = vmatpush.msra.mxu0 0.0
      %1862 = vmatpush.msra.mxu0 0.0
      %1863 = vmatpush.msra.mxu0 0.0
      %1864 = vmatpush.msra.mxu0 0.0
      %1865 = vmatpush.msra.mxu0 %v1842
      %1866 = vmatpush.msra.mxu0 %v1840
      %1867 = vmatmul.f32.gmra.mxu0 %v1846
      %v1868 = vpop.f32.mrf.mxu0
      %v1869 = vadd.f32 0.0, %v1868
      %1870 = vmatmul.f32.gmra.mxu0 %v1849
      %v1871 = vpop.f32.mrf.mxu0
      %v1872 = vadd.f32 0.0, %v1871
      %1873 = vdwg.mxu0
      %1874 = vrot.lane.b32.xlu0 %v419, 48
      %v1875 = vpop.permute.xlu0 %1874
      %1876 = vrot.lane.b32.xlu0 %v422, 48
      %v1877 = vpop.permute.xlu0 %1876
      %v1881 = vsel %vm613, %v1758, 0
      %v1884 = vsel %vm613, %v1773, 0
      %1886 = vmatpush.msra.mxu0 0.0
      %1887 = vmatpush.msra.mxu0 0.0
      %1888 = vmatpush.msra.mxu0 0.0
      %1889 = vmatpush.msra.mxu0 0.0
      %1890 = vmatpush.msra.mxu0 0.0
      %1891 = vmatpush.msra.mxu0 0.0
      %1892 = vmatpush.msra.mxu0 0.0
      %1893 = vmatpush.msra.mxu0 0.0
      %1894 = vmatpush.msra.mxu0 0.0
      %1895 = vmatpush.msra.mxu0 0.0
      %1896 = vmatpush.msra.mxu0 0.0
      %1897 = vmatpush.msra.mxu0 0.0
      %1898 = vmatpush.msra.mxu0 0.0
      %1899 = vmatpush.msra.mxu0 0.0
      %1900 = vmatpush.msra.mxu0 %v1877
      %1901 = vmatpush.msra.mxu0 %v1875
      %1902 = vmatmul.f32.gmra.mxu0 %v1881
      %v1903 = vpop.f32.mrf.mxu0
      %v1904 = vadd.f32 0.0, %v1903
      %1905 = vmatmul.f32.gmra.mxu0 %v1884
      %v1906 = vpop.f32.mrf.mxu0
      %v1907 = vadd.f32 0.0, %v1906
      %1908 = vdwg.mxu0
      %1909 = vrot.lane.b32.xlu0 %v425, 48
      %v1910 = vpop.permute.xlu0 %1909
      %1911 = vrot.lane.b32.xlu0 %v428, 48
      %v1912 = vpop.permute.xlu0 %1911
      %v1916 = vsel %vm613, %v1788, 0
      %v1919 = vsel %vm613, %v1803, 0
      %1921 = vmatpush.msra.mxu0 0.0
      %1922 = vmatpush.msra.mxu0 0.0
      %1923 = vmatpush.msra.mxu0 0.0
      %1924 = vmatpush.msra.mxu0 0.0
      %1925 = vmatpush.msra.mxu0 0.0
      %1926 = vmatpush.msra.mxu0 0.0
      %1927 = vmatpush.msra.mxu0 0.0
      %1928 = vmatpush.msra.mxu0 0.0
      %1929 = vmatpush.msra.mxu0 0.0
      %1930 = vmatpush.msra.mxu0 0.0
      %1931 = vmatpush.msra.mxu0 0.0
      %1932 = vmatpush.msra.mxu0 0.0
      %1933 = vmatpush.msra.mxu0 0.0
      %1934 = vmatpush.msra.mxu0 0.0
      %1935 = vmatpush.msra.mxu0 %v1912
      %1936 = vmatpush.msra.mxu0 %v1910
      %1937 = vmatmul.f32.gmra.mxu0 %v1916
      %v1938 = vpop.f32.mrf.mxu0
      %v1939 = vadd.f32 0.0, %v1938
      %1940 = vmatmul.f32.gmra.mxu0 %v1919
      %v1941 = vpop.f32.mrf.mxu0
      %v1942 = vadd.f32 0.0, %v1941
      %1943 = vdwg.mxu0
      %s1944 = scalar_lea.vmem %s5, 48
      %v1945 = vld [vmem:[%s1944] sm:$0xff]
      %v1946 = vld [vmem:[%s1944 + $0x8] sm:$0xff]
      %1947 = vrot.lane.b32.xlu0 %v438, 104
      %v1948 = vpop.permute.xlu0 %1947
      %1949 = vrot.lane.b32.xlu0 %v439, 104
      %v1950 = vpop.permute.xlu0 %1949
      %1951 = vrot.lane.b32.xlu0 %v407, 72
      %v1952 = vpop.permute.xlu0 %1951
      %1953 = vrot.lane.b32.xlu0 %v410, 72
      %v1954 = vpop.permute.xlu0 %1953
      %v1955 = vsel %vm454, %v1948, 0
      %v1957 = vsel %vm454, %v1950, 0
      %v1959 = vsel %vm454, %v1952, 0
      %v1961 = vsel %vm454, %v1954, 0
      %1963 = vmatpush.xpose.msra.mxu0 0.0
      %1964 = vmatpush.xpose.msra.mxu0 0.0
      %1965 = vmatpush.xpose.msra.mxu0 0.0
      %1966 = vmatpush.xpose.msra.mxu0 0.0
      %1967 = vmatpush.xpose.msra.mxu0 0.0
      %1968 = vmatpush.xpose.msra.mxu0 0.0
      %1969 = vmatpush.xpose.msra.mxu0 0.0
      %1970 = vmatpush.xpose.msra.mxu0 0.0
      %1971 = vmatpush.xpose.msra.mxu0 0.0
      %1972 = vmatpush.xpose.msra.mxu0 0.0
      %1973 = vmatpush.xpose.msra.mxu0 0.0
      %1974 = vmatpush.xpose.msra.mxu0 0.0
      %1975 = vmatpush.xpose.msra.mxu0 0.0
      %1976 = vmatpush.xpose.msra.mxu0 0.0
      %1977 = vmatpush.xpose.msra.mxu0 %v1961
      %1978 = vmatpush.xpose.msra.mxu0 %v1959
      %1979 = vmatmul.f32.gmra.mxu0 %v1955
      %v1980 = vpop.f32.mrf.mxu0
      %v1981 = vadd.f32 %v1945, %v1980
      %1982 = vmatmul.f32.gmra.mxu0 %v1957
      %v1983 = vpop.f32.mrf.mxu0
      %v1984 = vadd.f32 %v1946, %v1983
      %1985 = vdwg.mxu0
      %1986 = vrot.lane.b32.xlu0 %v440, 104
      %v1987 = vpop.permute.xlu0 %1986
      %1988 = vrot.lane.b32.xlu0 %v441, 104
      %v1989 = vpop.permute.xlu0 %1988
      %1990 = vrot.lane.b32.xlu0 %v413, 72
      %v1991 = vpop.permute.xlu0 %1990
      %1992 = vrot.lane.b32.xlu0 %v416, 72
      %v1993 = vpop.permute.xlu0 %1992
      %v1994 = vsel %vm454, %v1987, 0
      %v1996 = vsel %vm454, %v1989, 0
      %v1998 = vsel %vm454, %v1991, 0
      %v2000 = vsel %vm454, %v1993, 0
      %2002 = vmatpush.xpose.msra.mxu0 0.0
      %2003 = vmatpush.xpose.msra.mxu0 0.0
      %2004 = vmatpush.xpose.msra.mxu0 0.0
      %2005 = vmatpush.xpose.msra.mxu0 0.0
      %2006 = vmatpush.xpose.msra.mxu0 0.0
      %2007 = vmatpush.xpose.msra.mxu0 0.0
      %2008 = vmatpush.xpose.msra.mxu0 0.0
      %2009 = vmatpush.xpose.msra.mxu0 0.0
      %2010 = vmatpush.xpose.msra.mxu0 0.0
      %2011 = vmatpush.xpose.msra.mxu0 0.0
      %2012 = vmatpush.xpose.msra.mxu0 0.0
      %2013 = vmatpush.xpose.msra.mxu0 0.0
      %2014 = vmatpush.xpose.msra.mxu0 0.0
      %2015 = vmatpush.xpose.msra.mxu0 0.0
      %2016 = vmatpush.xpose.msra.mxu0 %v2000
      %2017 = vmatpush.xpose.msra.mxu0 %v1998
      %2018 = vmatmul.f32.gmra.mxu0 %v1994
      %v2019 = vpop.f32.mrf.mxu0
      %v2020 = vadd.f32 %v1945, %v2019
      %2021 = vmatmul.f32.gmra.mxu0 %v1996
      %v2022 = vpop.f32.mrf.mxu0
      %v2023 = vadd.f32 %v1946, %v2022
      %2024 = vdwg.mxu0
      %2025 = vrot.lane.b32.xlu0 %v442, 104
      %v2026 = vpop.permute.xlu0 %2025
      %2027 = vrot.lane.b32.xlu0 %v443, 104
      %v2028 = vpop.permute.xlu0 %2027
      %2029 = vrot.lane.b32.xlu0 %v419, 72
      %v2030 = vpop.permute.xlu0 %2029
      %2031 = vrot.lane.b32.xlu0 %v422, 72
      %v2032 = vpop.permute.xlu0 %2031
      %v2033 = vsel %vm454, %v2026, 0
      %v2035 = vsel %vm454, %v2028, 0
      %v2037 = vsel %vm454, %v2030, 0
      %v2039 = vsel %vm454, %v2032, 0
      %2041 = vmatpush.xpose.msra.mxu0 0.0
      %2042 = vmatpush.xpose.msra.mxu0 0.0
      %2043 = vmatpush.xpose.msra.mxu0 0.0
      %2044 = vmatpush.xpose.msra.mxu0 0.0
      %2045 = vmatpush.xpose.msra.mxu0 0.0
      %2046 = vmatpush.xpose.msra.mxu0 0.0
      %2047 = vmatpush.xpose.msra.mxu0 0.0
      %2048 = vmatpush.xpose.msra.mxu0 0.0
      %2049 = vmatpush.xpose.msra.mxu0 0.0
      %2050 = vmatpush.xpose.msra.mxu0 0.0
      %2051 = vmatpush.xpose.msra.mxu0 0.0
      %2052 = vmatpush.xpose.msra.mxu0 0.0
      %2053 = vmatpush.xpose.msra.mxu0 0.0
      %2054 = vmatpush.xpose.msra.mxu0 0.0
      %2055 = vmatpush.xpose.msra.mxu0 %v2039
      %2056 = vmatpush.xpose.msra.mxu0 %v2037
      %2057 = vmatmul.f32.gmra.mxu0 %v2033
      %v2058 = vpop.f32.mrf.mxu0
      %v2059 = vadd.f32 %v1945, %v2058
      %2060 = vmatmul.f32.gmra.mxu0 %v2035
      %v2061 = vpop.f32.mrf.mxu0
      %v2062 = vadd.f32 %v1946, %v2061
      %2063 = vdwg.mxu0
      %2064 = vrot.lane.b32.xlu0 %v444, 104
      %v2065 = vpop.permute.xlu0 %2064
      %2066 = vrot.lane.b32.xlu0 %v445, 104
      %v2067 = vpop.permute.xlu0 %2066
      %2068 = vrot.lane.b32.xlu0 %v425, 72
      %v2069 = vpop.permute.xlu0 %2068
      %2070 = vrot.lane.b32.xlu0 %v428, 72
      %v2071 = vpop.permute.xlu0 %2070
      %v2072 = vsel %vm454, %v2065, 0
      %v2074 = vsel %vm454, %v2067, 0
      %v2076 = vsel %vm454, %v2069, 0
      %v2078 = vsel %vm454, %v2071, 0
      %2080 = vmatpush.xpose.msra.mxu0 0.0
      %2081 = vmatpush.xpose.msra.mxu0 0.0
      %2082 = vmatpush.xpose.msra.mxu0 0.0
      %2083 = vmatpush.xpose.msra.mxu0 0.0
      %2084 = vmatpush.xpose.msra.mxu0 0.0
      %2085 = vmatpush.xpose.msra.mxu0 0.0
      %2086 = vmatpush.xpose.msra.mxu0 0.0
      %2087 = vmatpush.xpose.msra.mxu0 0.0
      %2088 = vmatpush.xpose.msra.mxu0 0.0
      %2089 = vmatpush.xpose.msra.mxu0 0.0
      %2090 = vmatpush.xpose.msra.mxu0 0.0
      %2091 = vmatpush.xpose.msra.mxu0 0.0
      %2092 = vmatpush.xpose.msra.mxu0 0.0
      %2093 = vmatpush.xpose.msra.mxu0 0.0
      %2094 = vmatpush.xpose.msra.mxu0 %v2078
      %2095 = vmatpush.xpose.msra.mxu0 %v2076
      %2096 = vmatmul.f32.gmra.mxu0 %v2072
      %v2097 = vpop.f32.mrf.mxu0
      %v2098 = vadd.f32 %v1945, %v2097
      %2099 = vmatmul.f32.gmra.mxu0 %v2074
      %v2100 = vpop.f32.mrf.mxu0
      %v2101 = vadd.f32 %v1946, %v2100
      %2102 = vdwg.mxu0
      %v2103 = vadd.f32 %v1981, %v430
      %v2104 = vadd.f32 %v1984, %v431
      %v2105 = vadd.f32 %v2020, %v432
      %v2106 = vadd.f32 %v2023, %v433
      %v2107 = vadd.f32 %v2059, %v434
      %v2108 = vadd.f32 %v2062, %v435
      %v2109 = vadd.f32 %v2098, %v436
      %v2110 = vadd.f32 %v2101, %v437
      %v2111 = vsel %vm613, %v2103, -inf
      %2112 = vmax.xlane.f32.xlu0 %v2111
      %v2113 = vpop.xlane.xlu0 %2112
      %v2114 = vsel %vm613, %v2104, -inf
      %2115 = vmax.xlane.f32.xlu0 %v2114
      %v2116 = vpop.xlane.xlu0 %2115
      %v2117 = vsel %vm613, %v2105, -inf
      %2118 = vmax.xlane.f32.xlu0 %v2117
      %v2119 = vpop.xlane.xlu0 %2118
      %v2120 = vsel %vm613, %v2106, -inf
      %2121 = vmax.xlane.f32.xlu0 %v2120
      %v2122 = vpop.xlane.xlu0 %2121
      %v2123 = vsel %vm613, %v2107, -inf
      %2124 = vmax.xlane.f32.xlu0 %v2123
      %v2125 = vpop.xlane.xlu0 %2124
      %v2126 = vsel %vm613, %v2108, -inf
      %2127 = vmax.xlane.f32.xlu0 %v2126
      %v2128 = vpop.xlane.xlu0 %2127
      %v2129 = vsel %vm613, %v2109, -inf
      %2130 = vmax.xlane.f32.xlu0 %v2129
      %v2131 = vpop.xlane.xlu0 %2130
      %v2132 = vsel %vm613, %v2110, -inf
      %2133 = vmax.xlane.f32.xlu0 %v2132
      %v2134 = vpop.xlane.xlu0 %2133
      %v2135 = vsub.f32 %v2103, %v2113
      %v2136 = vsub.f32 %v2104, %v2116
      %v2137 = vsub.f32 %v2105, %v2119
      %v2138 = vsub.f32 %v2106, %v2122
      %v2139 = vsub.f32 %v2107, %v2125
      %v2140 = vsub.f32 %v2108, %v2128
      %v2141 = vsub.f32 %v2109, %v2131
      %v2142 = vsub.f32 %v2110, %v2134
      %v2143 = vmul.f32 %v2135, 1.442695
      %v2144 = vpow.pop %v2143
      %v2145 = vmul.f32 %v2136, 1.442695
      %v2146 = vpow.pop %v2145
      %v2147 = vmul.f32 %v2137, 1.442695
      %v2148 = vpow.pop %v2147
      %v2149 = vmul.f32 %v2138, 1.442695
      %v2150 = vpow.pop %v2149
      %v2151 = vmul.f32 %v2139, 1.442695
      %v2152 = vpow.pop %v2151
      %v2153 = vmul.f32 %v2140, 1.442695
      %v2154 = vpow.pop %v2153
      %v2155 = vmul.f32 %v2141, 1.442695
      %v2156 = vpow.pop %v2155
      %v2157 = vmul.f32 %v2142, 1.442695
      %v2158 = vpow.pop %v2157
      %v2159 = vsel %vm613, %v2144, 0.0
      %2160 = vadd.xlane.f32.xlu0 %v2159
      %v2161 = vpop.xlane.xlu0 %2160
      %v2162 = vsel %vm613, %v2146, 0.0
      %2163 = vadd.xlane.f32.xlu0 %v2162
      %v2164 = vpop.xlane.xlu0 %2163
      %v2165 = vsel %vm613, %v2148, 0.0
      %2166 = vadd.xlane.f32.xlu0 %v2165
      %v2167 = vpop.xlane.xlu0 %2166
      %v2168 = vsel %vm613, %v2150, 0.0
      %2169 = vadd.xlane.f32.xlu0 %v2168
      %v2170 = vpop.xlane.xlu0 %2169
      %v2171 = vsel %vm613, %v2152, 0.0
      %2172 = vadd.xlane.f32.xlu0 %v2171
      %v2173 = vpop.xlane.xlu0 %2172
      %v2174 = vsel %vm613, %v2154, 0.0
      %2175 = vadd.xlane.f32.xlu0 %v2174
      %v2176 = vpop.xlane.xlu0 %2175
      %v2177 = vsel %vm613, %v2156, 0.0
      %2178 = vadd.xlane.f32.xlu0 %v2177
      %v2179 = vpop.xlane.xlu0 %2178
      %v2180 = vsel %vm613, %v2158, 0.0
      %2181 = vadd.xlane.f32.xlu0 %v2180
      %v2182 = vpop.xlane.xlu0 %2181
      %v2183 = vrcp.pop %v2161
      %v2184 = vmul.f32 %v2161, %v2183
      %v2185 = vsub.f32 1.0, %v2184
      %v2186 = vmul.f32 %v2183, %v2185
      %v2187 = vadd.f32 %v2183, %v2186
      %vm2188 = vweird.f32 %v2161
      %vm2189 = vweird.f32 %v2183
      %vm2190 = vmor %vm2188, %vm2189
      %v2191 = vsel %vm2190, %v2183, %v2187
      %v2192 = vand.u32 2147483647, %v2161
      %vm2193 = vcmp.eq.f32.partialorder %v2192, 8.507059e+37
      %v2194 = vand.u32 %v2161, 2147483648
      %v2195 = vor.u32 1.1754944e-38, %v2194
      %v2196 = vsel %vm2193, %v2195, %v2191
      %v2197 = vmul.f32 %v2144, %v2196
      %v2198 = vrcp.pop %v2164
      %v2199 = vmul.f32 %v2164, %v2198
      %v2200 = vsub.f32 1.0, %v2199
      %v2201 = vmul.f32 %v2198, %v2200
      %v2202 = vadd.f32 %v2198, %v2201
      %vm2203 = vweird.f32 %v2164
      %vm2204 = vweird.f32 %v2198
      %vm2205 = vmor %vm2203, %vm2204
      %v2206 = vsel %vm2205, %v2198, %v2202
      %v2207 = vand.u32 2147483647, %v2164
      %vm2208 = vcmp.eq.f32.partialorder %v2207, 8.507059e+37
      %v2209 = vand.u32 %v2164, 2147483648
      %v2210 = vor.u32 1.1754944e-38, %v2209
      %v2211 = vsel %vm2208, %v2210, %v2206
      %v2212 = vmul.f32 %v2146, %v2211
      %v2213 = vrcp.pop %v2167
      %v2214 = vmul.f32 %v2167, %v2213
      %v2215 = vsub.f32 1.0, %v2214
      %v2216 = vmul.f32 %v2213, %v2215
      %v2217 = vadd.f32 %v2213, %v2216
      %vm2218 = vweird.f32 %v2167
      %vm2219 = vweird.f32 %v2213
      %vm2220 = vmor %vm2218, %vm2219
      %v2221 = vsel %vm2220, %v2213, %v2217
      %v2222 = vand.u32 2147483647, %v2167
      %vm2223 = vcmp.eq.f32.partialorder %v2222, 8.507059e+37
      %v2224 = vand.u32 %v2167, 2147483648
      %v2225 = vor.u32 1.1754944e-38, %v2224
      %v2226 = vsel %vm2223, %v2225, %v2221
      %v2227 = vmul.f32 %v2148, %v2226
      %v2228 = vrcp.pop %v2170
      %v2229 = vmul.f32 %v2170, %v2228
      %v2230 = vsub.f32 1.0, %v2229
      %v2231 = vmul.f32 %v2228, %v2230
      %v2232 = vadd.f32 %v2228, %v2231
      %vm2233 = vweird.f32 %v2170
      %vm2234 = vweird.f32 %v2228
      %vm2235 = vmor %vm2233, %vm2234
      %v2236 = vsel %vm2235, %v2228, %v2232
      %v2237 = vand.u32 2147483647, %v2170
      %vm2238 = vcmp.eq.f32.partialorder %v2237, 8.507059e+37
      %v2239 = vand.u32 %v2170, 2147483648
      %v2240 = vor.u32 1.1754944e-38, %v2239
      %v2241 = vsel %vm2238, %v2240, %v2236
      %v2242 = vmul.f32 %v2150, %v2241
      %v2243 = vrcp.pop %v2173
      %v2244 = vmul.f32 %v2173, %v2243
      %v2245 = vsub.f32 1.0, %v2244
      %v2246 = vmul.f32 %v2243, %v2245
      %v2247 = vadd.f32 %v2243, %v2246
      %vm2248 = vweird.f32 %v2173
      %vm2249 = vweird.f32 %v2243
      %vm2250 = vmor %vm2248, %vm2249
      %v2251 = vsel %vm2250, %v2243, %v2247
      %v2252 = vand.u32 2147483647, %v2173
      %vm2253 = vcmp.eq.f32.partialorder %v2252, 8.507059e+37
      %v2254 = vand.u32 %v2173, 2147483648
      %v2255 = vor.u32 1.1754944e-38, %v2254
      %v2256 = vsel %vm2253, %v2255, %v2251
      %v2257 = vmul.f32 %v2152, %v2256
      %v2258 = vrcp.pop %v2176
      %v2259 = vmul.f32 %v2176, %v2258
      %v2260 = vsub.f32 1.0, %v2259
      %v2261 = vmul.f32 %v2258, %v2260
      %v2262 = vadd.f32 %v2258, %v2261
      %vm2263 = vweird.f32 %v2176
      %vm2264 = vweird.f32 %v2258
      %vm2265 = vmor %vm2263, %vm2264
      %v2266 = vsel %vm2265, %v2258, %v2262
      %v2267 = vand.u32 2147483647, %v2176
      %vm2268 = vcmp.eq.f32.partialorder %v2267, 8.507059e+37
      %v2269 = vand.u32 %v2176, 2147483648
      %v2270 = vor.u32 1.1754944e-38, %v2269
      %v2271 = vsel %vm2268, %v2270, %v2266
      %v2272 = vmul.f32 %v2154, %v2271
      %v2273 = vrcp.pop %v2179
      %v2274 = vmul.f32 %v2179, %v2273
      %v2275 = vsub.f32 1.0, %v2274
      %v2276 = vmul.f32 %v2273, %v2275
      %v2277 = vadd.f32 %v2273, %v2276
      %vm2278 = vweird.f32 %v2179
      %vm2279 = vweird.f32 %v2273
      %vm2280 = vmor %vm2278, %vm2279
      %v2281 = vsel %vm2280, %v2273, %v2277
      %v2282 = vand.u32 2147483647, %v2179
      %vm2283 = vcmp.eq.f32.partialorder %v2282, 8.507059e+37
      %v2284 = vand.u32 %v2179, 2147483648
      %v2285 = vor.u32 1.1754944e-38, %v2284
      %v2286 = vsel %vm2283, %v2285, %v2281
      %v2287 = vmul.f32 %v2156, %v2286
      %v2288 = vrcp.pop %v2182
      %v2289 = vmul.f32 %v2182, %v2288
      %v2290 = vsub.f32 1.0, %v2289
      %v2291 = vmul.f32 %v2288, %v2290
      %v2292 = vadd.f32 %v2288, %v2291
      %vm2293 = vweird.f32 %v2182
      %vm2294 = vweird.f32 %v2288
      %vm2295 = vmor %vm2293, %vm2294
      %v2296 = vsel %vm2295, %v2288, %v2292
      %v2297 = vand.u32 2147483647, %v2182
      %vm2298 = vcmp.eq.f32.partialorder %v2297, 8.507059e+37
      %v2299 = vand.u32 %v2182, 2147483648
      %v2300 = vor.u32 1.1754944e-38, %v2299
      %v2301 = vsel %vm2298, %v2300, %v2296
      %v2302 = vmul.f32 %v2158, %v2301
      %2303 = vrot.lane.b32.xlu0 %v407, 40
      %v2304 = vpop.permute.xlu0 %2303
      %2305 = vrot.lane.b32.xlu0 %v410, 40
      %v2306 = vpop.permute.xlu0 %2305
      %v2310 = vsel %vm613, %v2197, 0
      %v2313 = vsel %vm613, %v2212, 0
      %2315 = vmatpush.msra.mxu0 0.0
      %2316 = vmatpush.msra.mxu0 0.0
      %2317 = vmatpush.msra.mxu0 0.0
      %2318 = vmatpush.msra.mxu0 0.0
      %2319 = vmatpush.msra.mxu0 0.0
      %2320 = vmatpush.msra.mxu0 0.0
      %2321 = vmatpush.msra.mxu0 0.0
      %2322 = vmatpush.msra.mxu0 0.0
      %2323 = vmatpush.msra.mxu0 0.0
      %2324 = vmatpush.msra.mxu0 0.0
      %2325 = vmatpush.msra.mxu0 0.0
      %2326 = vmatpush.msra.mxu0 0.0
      %2327 = vmatpush.msra.mxu0 0.0
      %2328 = vmatpush.msra.mxu0 0.0
      %2329 = vmatpush.msra.mxu0 %v2306
      %2330 = vmatpush.msra.mxu0 %v2304
      %2331 = vmatmul.f32.gmra.mxu0 %v2310
      %v2332 = vpop.f32.mrf.mxu0
      %v2333 = vadd.f32 0.0, %v2332
      %2334 = vmatmul.f32.gmra.mxu0 %v2313
      %v2335 = vpop.f32.mrf.mxu0
      %v2336 = vadd.f32 0.0, %v2335
      %2337 = vdwg.mxu0
      %2338 = vrot.lane.b32.xlu0 %v413, 40
      %v2339 = vpop.permute.xlu0 %2338
      %2340 = vrot.lane.b32.xlu0 %v416, 40
      %v2341 = vpop.permute.xlu0 %2340
      %v2345 = vsel %vm613, %v2227, 0
      %v2348 = vsel %vm613, %v2242, 0
      %2350 = vmatpush.msra.mxu0 0.0
      %2351 = vmatpush.msra.mxu0 0.0
      %2352 = vmatpush.msra.mxu0 0.0
      %2353 = vmatpush.msra.mxu0 0.0
      %2354 = vmatpush.msra.mxu0 0.0
      %2355 = vmatpush.msra.mxu0 0.0
      %2356 = vmatpush.msra.mxu0 0.0
      %2357 = vmatpush.msra.mxu0 0.0
      %2358 = vmatpush.msra.mxu0 0.0
      %2359 = vmatpush.msra.mxu0 0.0
      %2360 = vmatpush.msra.mxu0 0.0
      %2361 = vmatpush.msra.mxu0 0.0
      %2362 = vmatpush.msra.mxu0 0.0
      %2363 = vmatpush.msra.mxu0 0.0
      %2364 = vmatpush.msra.mxu0 %v2341
      %2365 = vmatpush.msra.mxu0 %v2339
      %2366 = vmatmul.f32.gmra.mxu0 %v2345
      %v2367 = vpop.f32.mrf.mxu0
      %v2368 = vadd.f32 0.0, %v2367
      %2369 = vmatmul.f32.gmra.mxu0 %v2348
      %v2370 = vpop.f32.mrf.mxu0
      %v2371 = vadd.f32 0.0, %v2370
      %2372 = vdwg.mxu0
      %2373 = vrot.lane.b32.xlu0 %v419, 40
      %v2374 = vpop.permute.xlu0 %2373
      %2375 = vrot.lane.b32.xlu0 %v422, 40
      %v2376 = vpop.permute.xlu0 %2375
      %v2380 = vsel %vm613, %v2257, 0
      %v2383 = vsel %vm613, %v2272, 0
      %2385 = vmatpush.msra.mxu0 0.0
      %2386 = vmatpush.msra.mxu0 0.0
      %2387 = vmatpush.msra.mxu0 0.0
      %2388 = vmatpush.msra.mxu0 0.0
      %2389 = vmatpush.msra.mxu0 0.0
      %2390 = vmatpush.msra.mxu0 0.0
      %2391 = vmatpush.msra.mxu0 0.0
      %2392 = vmatpush.msra.mxu0 0.0
      %2393 = vmatpush.msra.mxu0 0.0
      %2394 = vmatpush.msra.mxu0 0.0
      %2395 = vmatpush.msra.mxu0 0.0
      %2396 = vmatpush.msra.mxu0 0.0
      %2397 = vmatpush.msra.mxu0 0.0
      %2398 = vmatpush.msra.mxu0 0.0
      %2399 = vmatpush.msra.mxu0 %v2376
      %2400 = vmatpush.msra.mxu0 %v2374
      %2401 = vmatmul.f32.gmra.mxu0 %v2380
      %v2402 = vpop.f32.mrf.mxu0
      %v2403 = vadd.f32 0.0, %v2402
      %2404 = vmatmul.f32.gmra.mxu0 %v2383
      %v2405 = vpop.f32.mrf.mxu0
      %v2406 = vadd.f32 0.0, %v2405
      %2407 = vdwg.mxu0
      %2408 = vrot.lane.b32.xlu0 %v425, 40
      %v2409 = vpop.permute.xlu0 %2408
      %2410 = vrot.lane.b32.xlu0 %v428, 40
      %v2411 = vpop.permute.xlu0 %2410
      %v2415 = vsel %vm613, %v2287, 0
      %v2418 = vsel %vm613, %v2302, 0
      %2420 = vmatpush.msra.mxu0 0.0
      %2421 = vmatpush.msra.mxu0 0.0
      %2422 = vmatpush.msra.mxu0 0.0
      %2423 = vmatpush.msra.mxu0 0.0
      %2424 = vmatpush.msra.mxu0 0.0
      %2425 = vmatpush.msra.mxu0 0.0
      %2426 = vmatpush.msra.mxu0 0.0
      %2427 = vmatpush.msra.mxu0 0.0
      %2428 = vmatpush.msra.mxu0 0.0
      %2429 = vmatpush.msra.mxu0 0.0
      %2430 = vmatpush.msra.mxu0 0.0
      %2431 = vmatpush.msra.mxu0 0.0
      %2432 = vmatpush.msra.mxu0 0.0
      %2433 = vmatpush.msra.mxu0 0.0
      %2434 = vmatpush.msra.mxu0 %v2411
      %2435 = vmatpush.msra.mxu0 %v2409
      %2436 = vmatmul.f32.gmra.mxu0 %v2415
      %v2437 = vpop.f32.mrf.mxu0
      %v2438 = vadd.f32 0.0, %v2437
      %2439 = vmatmul.f32.gmra.mxu0 %v2418
      %v2440 = vpop.f32.mrf.mxu0
      %v2441 = vadd.f32 0.0, %v2440
      %2442 = vdwg.mxu0
      %2451 = vrot.lane.b32.xlu0 %v1335, 8
      %v2452 = vpop.permute.xlu0 %2451
      %2453 = vrot.lane.b32.xlu0 %v1338, 8
      %v2454 = vpop.permute.xlu0 %2453
      %2455 = vrot.lane.b32.xlu0 %v1370, 8
      %v2456 = vpop.permute.xlu0 %2455
      %2457 = vrot.lane.b32.xlu0 %v1373, 8
      %v2458 = vpop.permute.xlu0 %2457
      %2459 = vrot.lane.b32.xlu0 %v1405, 8
      %v2460 = vpop.permute.xlu0 %2459
      %2461 = vrot.lane.b32.xlu0 %v1408, 8
      %v2462 = vpop.permute.xlu0 %2461
      %2463 = vrot.lane.b32.xlu0 %v1440, 8
      %v2464 = vpop.permute.xlu0 %2463
      %2465 = vrot.lane.b32.xlu0 %v1443, 8
      %v2466 = vpop.permute.xlu0 %2465
      %2483 = vrot.lane.b32.xlu0 %v1834, 16
      %v2484 = vpop.permute.xlu0 %2483
      %2485 = vrot.lane.b32.xlu0 %v1837, 16
      %v2486 = vpop.permute.xlu0 %2485
      %2487 = vrot.lane.b32.xlu0 %v1869, 16
      %v2488 = vpop.permute.xlu0 %2487
      %2489 = vrot.lane.b32.xlu0 %v1872, 16
      %v2490 = vpop.permute.xlu0 %2489
      %2491 = vrot.lane.b32.xlu0 %v1904, 16
      %v2492 = vpop.permute.xlu0 %2491
      %2493 = vrot.lane.b32.xlu0 %v1907, 16
      %v2494 = vpop.permute.xlu0 %2493
      %2495 = vrot.lane.b32.xlu0 %v1939, 16
      %v2496 = vpop.permute.xlu0 %2495
      %2497 = vrot.lane.b32.xlu0 %v1942, 16
      %v2498 = vpop.permute.xlu0 %2497
      %2515 = vrot.lane.b32.xlu0 %v2333, 24
      %v2516 = vpop.permute.xlu0 %2515
      %2517 = vrot.lane.b32.xlu0 %v2336, 24
      %v2518 = vpop.permute.xlu0 %2517
      %2519 = vrot.lane.b32.xlu0 %v2368, 24
      %v2520 = vpop.permute.xlu0 %2519
      %2521 = vrot.lane.b32.xlu0 %v2371, 24
      %v2522 = vpop.permute.xlu0 %2521
      %2523 = vrot.lane.b32.xlu0 %v2403, 24
      %v2524 = vpop.permute.xlu0 %2523
      %2525 = vrot.lane.b32.xlu0 %v2406, 24
      %v2526 = vpop.permute.xlu0 %2525
      %2527 = vrot.lane.b32.xlu0 %v2438, 24
      %v2528 = vpop.permute.xlu0 %2527
      %2529 = vrot.lane.b32.xlu0 %v2441, 24
      %v2530 = vpop.permute.xlu0 %2529
      %v2539 = vsel %vm454, %v836, %v2452
      %v2540 = vsel %vm454, %v839, %v2454
      %v2541 = vsel %vm454, %v871, %v2456
      %v2542 = vsel %vm454, %v874, %v2458
      %v2543 = vsel %vm454, %v906, %v2460
      %v2544 = vsel %vm454, %v909, %v2462
      %v2545 = vsel %vm454, %v941, %v2464
      %v2546 = vsel %vm454, %v944, %v2466
      %v2547 = vsel %vm613, %v2539, %v2484
      %v2548 = vsel %vm613, %v2540, %v2486
      %v2549 = vsel %vm613, %v2541, %v2488
      %v2550 = vsel %vm613, %v2542, %v2490
      %v2551 = vsel %vm613, %v2543, %v2492
      %v2552 = vsel %vm613, %v2544, %v2494
      %v2553 = vsel %vm613, %v2545, %v2496
      %v2554 = vsel %vm613, %v2546, %v2498
      %vm2555 = vcmask 195584
      %v2556 = vsel %vm2555, %v2547, %v2516
      %v2557 = vsel %vm2555, %v2548, %v2518
      %v2558 = vsel %vm2555, %v2549, %v2520
      %v2559 = vsel %vm2555, %v2550, %v2522
      %v2560 = vsel %vm2555, %v2551, %v2524
      %v2561 = vsel %vm2555, %v2552, %v2526
      %v2562 = vsel %vm2555, %v2553, %v2528
      %v2563 = vsel %vm2555, %v2554, %v2530
      %v2564 = vld [vmem:[%s3] sm:$0xff]
      %v2565 = vld [vmem:[%s3 + $0x8] sm:$0xff]
      %v2566 = vld [vmem:[%s3 + $0x10] sm:$0xff]
      %v2567 = vld [vmem:[%s3 + $0x18] sm:$0xff]
      %v2568 = vld [vmem:[%s4] sm:$0x1]
      %v2570 = vperm.slane %v2568, 0
      %v2573 = vsel %vm364, %v2556, 0
      %v2576 = vsel %vm364, %v2557, 0
      %v2579 = vsel %vm364, %v2558, 0
      %v2582 = vsel %vm364, %v2559, 0
      %v2585 = vsel %vm364, %v2560, 0
      %v2588 = vsel %vm364, %v2561, 0
      %v2591 = vsel %vm364, %v2562, 0
      %v2594 = vsel %vm364, %v2563, 0
      %2596 = vmatpush.msra.mxu0 0.0
      %2597 = vmatpush.msra.mxu0 0.0
      %2598 = vmatpush.msra.mxu0 0.0
      %2599 = vmatpush.msra.mxu0 0.0
      %2600 = vmatpush.msra.mxu0 0.0
      %2601 = vmatpush.msra.mxu0 0.0
      %2602 = vmatpush.msra.mxu0 0.0
      %2603 = vmatpush.msra.mxu0 0.0
      %2604 = vmatpush.msra.mxu0 0.0
      %2605 = vmatpush.msra.mxu0 0.0
      %2606 = vmatpush.msra.mxu0 0.0
      %2607 = vmatpush.msra.mxu0 0.0
      %2608 = vmatpush.msra.mxu0 %v2567
      %2609 = vmatpush.msra.mxu0 %v2566
      %2610 = vmatpush.msra.mxu0 %v2565
      %2611 = vmatpush.msra.mxu0 %v2564
      %2612 = vmatmul.f32.gmra.mxu0 %v2573
      %v2613 = vpop.f32.mrf.mxu0
      %v2614 = vadd.f32 %v2570, %v2613
      %2615 = vmatmul.f32.gmra.mxu0 %v2576
      %v2616 = vpop.f32.mrf.mxu0
      %v2617 = vadd.f32 %v2570, %v2616
      %2618 = vmatmul.f32.gmra.mxu0 %v2579
      %v2619 = vpop.f32.mrf.mxu0
      %v2620 = vadd.f32 %v2570, %v2619
      %2621 = vmatmul.f32.gmra.mxu0 %v2582
      %v2622 = vpop.f32.mrf.mxu0
      %v2623 = vadd.f32 %v2570, %v2622
      %2624 = vmatmul.f32.gmra.mxu0 %v2585
      %v2625 = vpop.f32.mrf.mxu0
      %v2626 = vadd.f32 %v2570, %v2625
      %2627 = vmatmul.f32.gmra.mxu0 %v2588
      %v2628 = vpop.f32.mrf.mxu0
      %v2629 = vadd.f32 %v2570, %v2628
      %2630 = vmatmul.f32.gmra.mxu0 %v2591
      %v2631 = vpop.f32.mrf.mxu0
      %v2632 = vadd.f32 %v2570, %v2631
      %2633 = vmatmul.f32.gmra.mxu0 %v2594
      %v2634 = vpop.f32.mrf.mxu0
      %v2635 = vadd.f32 %v2570, %v2634
      %2636 = vdwg.mxu0
      %2637 = vst.msk [vmem:[%s346] sm:$0xff] %vm364, %v2614
      %2638 = vst.msk [vmem:[%s346 + $0x8] sm:$0xff] %vm364, %v2617
      %2639 = vst.msk [vmem:[%s346 + $0x10] sm:$0xff] %vm364, %v2620
      %2640 = vst.msk [vmem:[%s346 + $0x18] sm:$0xff] %vm364, %v2623
      %2641 = vst.msk [vmem:[%s346 + $0x20] sm:$0xff] %vm364, %v2626
      %2642 = vst.msk [vmem:[%s346 + $0x28] sm:$0xff] %vm364, %v2629
      %2643 = vst.msk [vmem:[%s346 + $0x30] sm:$0xff] %vm364, %v2632
      %2644 = vst.msk [vmem:[%s346 + $0x38] sm:$0xff] %vm364, %v2635
      %s2645 = smul.u32 4, %s23
      %p2646 = scmp.lt.s32.totalorder %s22, 1
      %s2647 = scalar_select %p2646, %s22, 1
      %p2648 = scmp.lt.s32.totalorder %s2645, 3
      %s2649 = scalar_select %p2648, %s2645, 3
      %s2650 = smul.addr %s2649, 2
      %s2651 = smul.addr %s2647, 8
      %s2652 = sadd.s32 %s2650, %s2651
      %s2653 = smul.addr %s2652, 8
      %s2654 = scalar_lea.vmem %s7, %s2653
      // Predicated region
      $region49: #{basic_layer_forward.7} parent=47 // pred_check
        %p2655 = pneg %p209
      $region50: #{basic_layer_forward.7} parent=47 // pred_check_branch
        %2657 = sbr.rel (%p2655) target = $region52
      $region51: #{basic_layer_forward.7} parent=47 // pred_region
        %s2658 = smul.u32 4, %s23
      $region52: #{basic_layer_forward.7} parent=47 // pred_fallthru
        _
    $region48: #{basic_layer_forward.7} parent=5 // pred_fallthru
      _
    %p2659 = scmp.le.s32.totalorder 2, %s13
    // Predicated region
    $region53: #{basic_layer_forward.7} parent=5 // pred_check
      %p2660 = pneg %p2659
    $region54: #{basic_layer_forward.7} parent=5 // pred_check_branch
      %2662 = sbr.rel (%p2660) target = $region56
    $region55: #{basic_layer_forward.7} parent=5 // pred_region
      %s2663 = ssub.s32 %s13, 2
      // Predicated region
      $region57: #{basic_layer_forward.7} parent=55 // pred_check
        %p2664 = pneg %p215
      $region58: #{basic_layer_forward.7} parent=55 // pred_check_branch
        %2666 = sbr.rel (%p2664) target = $region60
      $region59: #{basic_layer_forward.7} parent=55 // pred_region
        %s2667 = smul.u32 4, %s25
        %p2668 = scmp.lt.s32.totalorder %s24, 1
        %s2669 = scalar_select %p2668, %s24, 1
        %p2670 = scmp.lt.s32.totalorder %s2667, 3
        %s2671 = scalar_select %p2670, %s2667, 3
        %s2672 = smul.addr %s2671, 2
        %s2673 = smul.addr %s2669, 8
        %s2674 = sadd.s32 %s2672, %s2673
        %s2675 = smul.addr %s2674, 8
        %s2676 = scalar_lea.vmem %s7, %s2675
      $region60: #{basic_layer_forward.7} parent=55 // pred_fallthru
        _
    $region56: #{basic_layer_forward.7} parent=5 // pred_fallthru
      _
  $region6: #{basic_layer_forward.7} parent=0 // loop_footer
    %s17 = sadd.s32 1, %s13
  $region7: #{basic_layer_forward.7} parent=0 // loop_footer_branch
    %12 = sbr.rel target = $region3
  $region8: #{basic_layer_forward.7} parent=0 // loop_exit
    _

</llo_original>
